<compile_context>
chip_gen: v5e
topology: v5e:2x2
jax: 0.10.0
libtpu: 0.0.40
codegen_flags: <defaults>
</compile_context>

<pallas_src>
import functools

import jax
import jax.numpy as jnp
from jax.experimental import pallas as pl
from jax.experimental.pallas import tpu as pltpu

LANE = 128
NUM_CLASSES = 5


def _round_up(x, m):
    return -(-x // m) * m


# ---------------------------------------------------------------------------
# Pallas kernels
# ---------------------------------------------------------------------------

def _conv3x3_bn_relu_kernel(x_ref, w_ref, b_ref, o_ref, *, H, W):
    """Fused 3x3 'same' conv (9 shifted-tap matmuls) + folded-BN bias + ReLU.

    x_ref: (1, H+2, W+2, Cp)  bf16  (zero spatial halo, zero channel pad)
    w_ref: (9, Cp, Coutp)     bf16  (tap-major: t = 3*dy + dx)
    b_ref: (1, Coutp)         f32
    o_ref: (1, H*W, Coutp)    bf16
    """
    x = x_ref[0]                                    # (H+2, W+2, Cp) bf16
    cp = x.shape[-1]
    coutp = o_ref.shape[-1]
    acc = jnp.zeros((H * W, coutp), jnp.float32)
    for dy in range(3):
        for dx in range(3):
            xs = x[dy:dy + H, dx:dx + W, :].reshape(H * W, cp)
            acc = acc + jnp.dot(xs, w_ref[3 * dy + dx],
                                preferred_element_type=jnp.float32)
    acc = jnp.maximum(acc + b_ref[...], 0.0)
    o_ref[0] = acc.astype(o_ref.dtype)


def _conv3x3_gap_head_kernel(x_ref, w_ref, b_ref, wc_ref, bc_ref, o_ref, *, H, W):
    """conv2 + folded-BN + ReLU + global-average-pool + linear head, fully fused.

    x_ref : (1, H+2, W+2, Cp)  bf16
    w_ref : (9, Cp, Cmidp)     bf16
    b_ref : (1, Cmidp)         f32
    wc_ref: (Cmidp, Ncp)       f32   (zero-padded 32->128, 5->128)
    bc_ref: (1, Ncp)           f32
    o_ref : (1, 8, Ncp)        f32   (logits broadcast over the 8 sublanes)
    """
    x = x_ref[0]
    cp = x.shape[-1]
    cmidp = b_ref.shape[-1]
    acc = jnp.zeros((H * W, cmidp), jnp.float32)
    for dy in range(3):
        for dx in range(3):
            xs = x[dy:dy + H, dx:dx + W, :].reshape(H * W, cp)
            acc = acc + jnp.dot(xs, w_ref[3 * dy + dx],
                                preferred_element_type=jnp.float32)
    h = jnp.maximum(acc + b_ref[...], 0.0)           # (H*W, Cmidp) f32
    # GAP over the TRUE H*W rows (no row padding in this layout).
    pooled = jnp.mean(h, axis=0, keepdims=True)      # (1, Cmidp) f32
    logits = jnp.dot(pooled, wc_ref[...],
                     preferred_element_type=jnp.float32) + bc_ref[...]
    o_ref[0] = jnp.broadcast_to(logits, (8, logits.shape[-1]))


# ---------------------------------------------------------------------------
# Pallas wrappers
# ---------------------------------------------------------------------------

def pallas_conv3x3_bn_relu(x_pad, w_taps, bias):
    """x_pad: (B, H+2, W+2, Cp) bf16 -> (B, H*W, Coutp) bf16."""
    B, hp2, wp2, cp = x_pad.shape
    H, W = hp2 - 2, wp2 - 2
    coutp = w_taps.shape[-1]
    flops = 2 * B * H * W * (9 * cp) * coutp
    bytes_accessed = (x_pad.size * x_pad.dtype.itemsize
                      + w_taps.size * w_taps.dtype.itemsize
                      + bias.size * bias.dtype.itemsize
                      + B * H * W * coutp * 2)
    return pl.pallas_call(
        functools.partial(_conv3x3_bn_relu_kernel, H=H, W=W),
        grid=(B,),
        out_shape=jax.ShapeDtypeStruct((B, H * W, coutp), jnp.bfloat16),
        in_specs=[
            pl.BlockSpec((1, hp2, wp2, cp), lambda b: (b, 0, 0, 0)),
            pl.BlockSpec((9, cp, coutp), lambda b: (0, 0, 0)),   # VMEM-resident
            pl.BlockSpec((1, coutp), lambda b: (0, 0)),          # VMEM-resident
        ],
        out_specs=pl.BlockSpec((1, H * W, coutp), lambda b: (b, 0, 0)),
        compiler_params=pltpu.CompilerParams(
            dimension_semantics=("parallel",)),
        cost_estimate=pl.CostEstimate(
            flops=flops, transcendentals=0, bytes_accessed=bytes_accessed),
    )(x_pad, w_taps, bias)


def pallas_conv3x3_gap_head(x_pad, w_taps, bias, wc, bc):
    """x_pad: (B, H+2, W+2, Cp) bf16 -> (B, Ncp) f32 padded logits."""
    B, hp2, wp2, cp = x_pad.shape
    H, W = hp2 - 2, wp2 - 2
    cmidp = w_taps.shape[-1]
    ncp = wc.shape[-1]
    flops = 2 * B * H * W * (9 * cp) * cmidp + 2 * B * cmidp * ncp
    bytes_accessed = (x_pad.size * x_pad.dtype.itemsize
                      + w_taps.size * w_taps.dtype.itemsize
                      + bias.size * bias.dtype.itemsize
                      + wc.size * 4 + bc.size * 4 + B * 8 * ncp * 4)
    out = pl.pallas_call(
        functools.partial(_conv3x3_gap_head_kernel, H=H, W=W),
        grid=(B,),
        out_shape=jax.ShapeDtypeStruct((B, 8, ncp), jnp.float32),
        in_specs=[
            pl.BlockSpec((1, hp2, wp2, cp), lambda b: (b, 0, 0, 0)),
            pl.BlockSpec((9, cp, cmidp), lambda b: (0, 0, 0)),   # VMEM-resident
            pl.BlockSpec((1, cmidp), lambda b: (0, 0)),
            pl.BlockSpec((cmidp, ncp), lambda b: (0, 0)),
            pl.BlockSpec((1, ncp), lambda b: (0, 0)),
        ],
        out_specs=pl.BlockSpec((1, 8, ncp), lambda b: (b, 0, 0)),
        compiler_params=pltpu.CompilerParams(
            dimension_semantics=("parallel",)),
        cost_estimate=pl.CostEstimate(
            flops=flops, transcendentals=0, bytes_accessed=bytes_accessed),
    )(x_pad, w_taps, bias, wc, bc)
    return out[:, 0, :]          # (B, Ncp)


# ---------------------------------------------------------------------------
# Parameter construction (BN folding, lane padding, bf16 packing)
# ---------------------------------------------------------------------------

def _fold_bn(w_hwio, gamma, beta, mean, var, eps=1e-5):
    scale = gamma / jnp.sqrt(var + eps)
    return w_hwio * scale[None, None, None, :], beta - mean * scale


def _pack_conv(w_hwio, b, cin_p, cout_p):
    kh, kw, cin, cout = w_hwio.shape
    wp = jnp.pad(w_hwio, ((0, 0), (0, 0), (0, cin_p - cin), (0, cout_p - cout)))
    wp = wp.reshape(kh * kw, cin_p, cout_p).astype(jnp.bfloat16)
    bp = jnp.pad(b, (0, cout_p - cout)).reshape(1, cout_p).astype(jnp.float32)
    return wp, bp


def init_raw_params(key, c_in=4, c_mid=32, num_classes=NUM_CLASSES):
    ks = jax.random.split(key, 12)

    def bn(k0, k1, k2, k3, c):
        g = 1.0 + 0.05 * jax.random.normal(k0, (c,), jnp.float32)
        b = 0.05 * jax.random.normal(k1, (c,), jnp.float32)
        m = 0.05 * jax.random.normal(k2, (c,), jnp.float32)
        v = 1.0 + 0.05 * jax.nn.softplus(jax.random.normal(k3, (c,), jnp.float32))
        return g, b, m, v

    w1 = 0.1 * jax.random.normal(ks[0], (3, 3, c_in, c_mid), jnp.float32)
    w1, b1 = _fold_bn(w1, *bn(ks[1], ks[2], ks[3], ks[4], c_mid))
    w2 = 0.1 * jax.random.normal(ks[5], (3, 3, c_mid, c_mid), jnp.float32)
    w2, b2 = _fold_bn(w2, *bn(ks[6], ks[7], ks[8], ks[9], c_mid))
    wc = 0.1 * jax.random.normal(ks[10], (c_mid, num_classes), jnp.float32)
    bc = 0.01 * jax.random.normal(ks[11], (num_classes,), jnp.float32)
    return dict(w1=w1, b1=b1, w2=w2, b2=b2, wc=wc, bc=bc)


def pack_params(raw):
    c_in, c_mid = raw['w1'].shape[2], raw['w1'].shape[3]
    num_classes = raw['wc'].shape[1]
    cin_p = _round_up(c_in, LANE)
    cmid_p = _round_up(c_mid, LANE)
    nc_p = _round_up(num_classes, LANE)
    w1p, b1p = _pack_conv(raw['w1'], raw['b1'], cin_p, cmid_p)
    w2p, b2p = _pack_conv(raw['w2'], raw['b2'], cmid_p, cmid_p)
    wcp = jnp.pad(raw['wc'], ((0, cmid_p - c_mid),
                              (0, nc_p - num_classes))).astype(jnp.float32)
    bcp = jnp.pad(raw['bc'], (0, nc_p - num_classes)).reshape(1, nc_p).astype(jnp.float32)
    return dict(w1=w1p, b1=b1p, w2=w2p, b2=b2p, wc=wcp, bc=bcp)


# ---------------------------------------------------------------------------
# Forward pass (Pallas) and pure-JAX reference
# ---------------------------------------------------------------------------

def dr_classifier_forward(x_nchw, p):
    """x_nchw: (B, C, H, W) f32 -> logits (B, NUM_CLASSES) f32."""
    x = jnp.transpose(x_nchw, (0, 2, 3, 1)).astype(jnp.float32)   # NCHW -> NHWC
    B, H, W, C = x.shape
    cin_p = p['w1'].shape[1]
    # channel pad to 128 lanes + 1-pixel zero halo; bf16 at the kernel boundary
    x = jnp.pad(x, ((0, 0), (1, 1), (1, 1), (0, cin_p - C))).astype(jnp.bfloat16)

    h1 = pallas_conv3x3_bn_relu(x, p['w1'], p['b1'])              # (B, H*W, 128) bf16
    cmid_p = h1.shape[-1]
    h1 = h1.reshape(B, H, W, cmid_p)
    h1 = jnp.pad(h1, ((0, 0), (1, 1), (1, 1), (0, 0)))            # spatial halo only;
                                                                  # channels stay 128-lane padded
    logits_p = pallas_conv3x3_gap_head(h1, p['w2'], p['b2'], p['wc'], p['bc'])
    return logits_p[:, :NUM_CLASSES]


def reference_forward(x_nchw, raw):
    """Pure-JAX f32 reference of the same backbone (for correctness check)."""
    x = jnp.transpose(x_nchw, (0, 2, 3, 1)).astype(jnp.float32)

    def conv(h, w, b):
        y = jax.lax.conv_general_dilated(
            h, w, window_strides=(1, 1), padding='SAME',
            dimension_numbers=('NHWC', 'HWIO', 'NHWC'))
        return jnp.maximum(y + b, 0.0)

    h1 = conv(x, raw['w1'], raw['b1'])
    h2 = conv(h1, raw['w2'], raw['b2'])
    pooled = jnp.mean(h2, axis=(1, 2))
    return pooled @ raw['wc'] + raw['bc']


# ---------------------------------------------------------------------------
# main
# ---------------------------------------------------------------------------

if __name__ == "__main__":
    key = jax.random.PRNGKey(0)
    k_x, k_p = jax.random.split(key)

    B, C, H, W = 2, 4, 16, 16
    x = jax.random.normal(k_x, (B, C, H, W), jnp.float32)

    raw = init_raw_params(k_p, c_in=C, c_mid=32, num_classes=NUM_CLASSES)
    packed = pack_params(raw)

    fwd = jax.jit(dr_classifier_forward)
    logits = jax.block_until_ready(fwd(x, packed))

    assert logits.shape == (B, NUM_CLASSES), logits.shape
    assert logits.dtype == jnp.float32, logits.dtype

    ref = jax.block_until_ready(reference_forward(x, raw))
    max_err = float(jnp.max(jnp.abs(logits - ref)))
    assert max_err < 5e-2, f"max abs diff vs f32 reference: {max_err}"

    print("KERNEL_OK")
</pallas_src>

<mosaic_0001>
module attributes {stable_mosaic.version = 11 : i64} {
  func.func @_conv3x3_bn_relu_kernel(%arg0: i32, %arg1: memref<1x18x18x128xbf16, #tpu.memory_space<vmem>>, %arg2: memref<9x128x128xbf16, #tpu.memory_space<vmem>>, %arg3: memref<1x128xf32, #tpu.memory_space<vmem>>, %arg4: memref<1x256x128xbf16, #tpu.memory_space<vmem>>) attributes {dimension_semantics = [#tpu.dimension_semantics<parallel>], iteration_bounds = array<i64: 2>, scalar_prefetch = 0 : i64, scratch_operands = 0 : i64, tpu.core_type = #tpu.core_type<tc>, window_params = [{transform_indices = @transform_0, window_bounds = array<i64: 1, 18, 18, 128>}, {pipeline_mode = #tpu.pipeline_mode<synchronous>, transform_indices = @transform_1, window_bounds = array<i64: 9, 128, 128>}, {pipeline_mode = #tpu.pipeline_mode<synchronous>, transform_indices = @transform_2, window_bounds = array<i64: 1, 128>}, {transform_indices = @transform_3, window_bounds = array<i64: 1, 256, 128>}]} {
    %c0 = arith.constant 0 : index
    %c0_0 = arith.constant 0 : index
    %c0_1 = arith.constant 0 : index
    %c0_2 = arith.constant 0 : index
    %0 = vector.load %arg1[%c0, %c0_0, %c0_1, %c0_2] : memref<1x18x18x128xbf16, #tpu.memory_space<vmem>>, vector<1x18x18x128xbf16>
    %1 = vector.shape_cast %0 : vector<1x18x18x128xbf16> to vector<18x18x128xbf16>
    %cst = arith.constant 0.000000e+00 : f32
    %2 = vector.broadcast %cst : f32 to vector<256x128xf32>
    %3 = vector.extract_strided_slice %1 {offsets = [0, 0, 0], sizes = [16, 16, 128], strides = [1, 1, 1]} : vector<18x18x128xbf16> to vector<16x16x128xbf16>
    %4 = vector.shape_cast %3 : vector<16x16x128xbf16> to vector<256x128xbf16>
    %c0_3 = arith.constant 0 : index
    %c0_4 = arith.constant 0 : index
    %c0_5 = arith.constant 0 : index
    %5 = vector.load %arg2[%c0_3, %c0_4, %c0_5] : memref<9x128x128xbf16, #tpu.memory_space<vmem>>, vector<1x128x128xbf16>
    %6 = vector.shape_cast %5 : vector<1x128x128xbf16> to vector<128x128xbf16>
    %cst_6 = arith.constant dense<0.000000e+00> : vector<256x128xf32>
    %7 = tpu.matmul %4, %6, %cst_6 {dimension_numbers = #tpu.dot_dimension_numbers<[1], [0], [0], [1], [0, 0, 1, 1], [], []>} : vector<256x128xbf16>, vector<128x128xbf16>, vector<256x128xf32> -> vector<256x128xf32>
    %8 = arith.addf %2, %7 : vector<256x128xf32>
    %9 = vector.extract_strided_slice %1 {offsets = [0, 1, 0], sizes = [16, 16, 128], strides = [1, 1, 1]} : vector<18x18x128xbf16> to vector<16x16x128xbf16>
    %10 = vector.shape_cast %9 : vector<16x16x128xbf16> to vector<256x128xbf16>
    %c1 = arith.constant 1 : index
    %c0_7 = arith.constant 0 : index
    %c0_8 = arith.constant 0 : index
    %11 = vector.load %arg2[%c1, %c0_7, %c0_8] : memref<9x128x128xbf16, #tpu.memory_space<vmem>>, vector<1x128x128xbf16>
    %12 = vector.shape_cast %11 : vector<1x128x128xbf16> to vector<128x128xbf16>
    %cst_9 = arith.constant dense<0.000000e+00> : vector<256x128xf32>
    %13 = tpu.matmul %10, %12, %cst_9 {dimension_numbers = #tpu.dot_dimension_numbers<[1], [0], [0], [1], [0, 0, 1, 1], [], []>} : vector<256x128xbf16>, vector<128x128xbf16>, vector<256x128xf32> -> vector<256x128xf32>
    %14 = arith.addf %8, %13 : vector<256x128xf32>
    %15 = vector.extract_strided_slice %1 {offsets = [0, 2, 0], sizes = [16, 16, 128], strides = [1, 1, 1]} : vector<18x18x128xbf16> to vector<16x16x128xbf16>
    %16 = vector.shape_cast %15 : vector<16x16x128xbf16> to vector<256x128xbf16>
    %c2 = arith.constant 2 : index
    %c0_10 = arith.constant 0 : index
    %c0_11 = arith.constant 0 : index
    %17 = vector.load %arg2[%c2, %c0_10, %c0_11] : memref<9x128x128xbf16, #tpu.memory_space<vmem>>, vector<1x128x128xbf16>
    %18 = vector.shape_cast %17 : vector<1x128x128xbf16> to vector<128x128xbf16>
    %cst_12 = arith.constant dense<0.000000e+00> : vector<256x128xf32>
    %19 = tpu.matmul %16, %18, %cst_12 {dimension_numbers = #tpu.dot_dimension_numbers<[1], [0], [0], [1], [0, 0, 1, 1], [], []>} : vector<256x128xbf16>, vector<128x128xbf16>, vector<256x128xf32> -> vector<256x128xf32>
    %20 = arith.addf %14, %19 : vector<256x128xf32>
    %21 = vector.extract_strided_slice %1 {offsets = [1, 0, 0], sizes = [16, 16, 128], strides = [1, 1, 1]} : vector<18x18x128xbf16> to vector<16x16x128xbf16>
    %22 = vector.shape_cast %21 : vector<16x16x128xbf16> to vector<256x128xbf16>
    %c3 = arith.constant 3 : index
    %c0_13 = arith.constant 0 : index
    %c0_14 = arith.constant 0 : index
    %23 = vector.load %arg2[%c3, %c0_13, %c0_14] : memref<9x128x128xbf16, #tpu.memory_space<vmem>>, vector<1x128x128xbf16>
    %24 = vector.shape_cast %23 : vector<1x128x128xbf16> to vector<128x128xbf16>
    %cst_15 = arith.constant dense<0.000000e+00> : vector<256x128xf32>
    %25 = tpu.matmul %22, %24, %cst_15 {dimension_numbers = #tpu.dot_dimension_numbers<[1], [0], [0], [1], [0, 0, 1, 1], [], []>} : vector<256x128xbf16>, vector<128x128xbf16>, vector<256x128xf32> -> vector<256x128xf32>
    %26 = arith.addf %20, %25 : vector<256x128xf32>
    %27 = vector.extract_strided_slice %1 {offsets = [1, 1, 0], sizes = [16, 16, 128], strides = [1, 1, 1]} : vector<18x18x128xbf16> to vector<16x16x128xbf16>
    %28 = vector.shape_cast %27 : vector<16x16x128xbf16> to vector<256x128xbf16>
    %c4 = arith.constant 4 : index
    %c0_16 = arith.constant 0 : index
    %c0_17 = arith.constant 0 : index
    %29 = vector.load %arg2[%c4, %c0_16, %c0_17] : memref<9x128x128xbf16, #tpu.memory_space<vmem>>, vector<1x128x128xbf16>
    %30 = vector.shape_cast %29 : vector<1x128x128xbf16> to vector<128x128xbf16>
    %cst_18 = arith.constant dense<0.000000e+00> : vector<256x128xf32>
    %31 = tpu.matmul %28, %30, %cst_18 {dimension_numbers = #tpu.dot_dimension_numbers<[1], [0], [0], [1], [0, 0, 1, 1], [], []>} : vector<256x128xbf16>, vector<128x128xbf16>, vector<256x128xf32> -> vector<256x128xf32>
    %32 = arith.addf %26, %31 : vector<256x128xf32>
    %33 = vector.extract_strided_slice %1 {offsets = [1, 2, 0], sizes = [16, 16, 128], strides = [1, 1, 1]} : vector<18x18x128xbf16> to vector<16x16x128xbf16>
    %34 = vector.shape_cast %33 : vector<16x16x128xbf16> to vector<256x128xbf16>
    %c5 = arith.constant 5 : index
    %c0_19 = arith.constant 0 : index
    %c0_20 = arith.constant 0 : index
    %35 = vector.load %arg2[%c5, %c0_19, %c0_20] : memref<9x128x128xbf16, #tpu.memory_space<vmem>>, vector<1x128x128xbf16>
    %36 = vector.shape_cast %35 : vector<1x128x128xbf16> to vector<128x128xbf16>
    %cst_21 = arith.constant dense<0.000000e+00> : vector<256x128xf32>
    %37 = tpu.matmul %34, %36, %cst_21 {dimension_numbers = #tpu.dot_dimension_numbers<[1], [0], [0], [1], [0, 0, 1, 1], [], []>} : vector<256x128xbf16>, vector<128x128xbf16>, vector<256x128xf32> -> vector<256x128xf32>
    %38 = arith.addf %32, %37 : vector<256x128xf32>
    %39 = vector.extract_strided_slice %1 {offsets = [2, 0, 0], sizes = [16, 16, 128], strides = [1, 1, 1]} : vector<18x18x128xbf16> to vector<16x16x128xbf16>
    %40 = vector.shape_cast %39 : vector<16x16x128xbf16> to vector<256x128xbf16>
    %c6 = arith.constant 6 : index
    %c0_22 = arith.constant 0 : index
    %c0_23 = arith.constant 0 : index
    %41 = vector.load %arg2[%c6, %c0_22, %c0_23] : memref<9x128x128xbf16, #tpu.memory_space<vmem>>, vector<1x128x128xbf16>
    %42 = vector.shape_cast %41 : vector<1x128x128xbf16> to vector<128x128xbf16>
    %cst_24 = arith.constant dense<0.000000e+00> : vector<256x128xf32>
    %43 = tpu.matmul %40, %42, %cst_24 {dimension_numbers = #tpu.dot_dimension_numbers<[1], [0], [0], [1], [0, 0, 1, 1], [], []>} : vector<256x128xbf16>, vector<128x128xbf16>, vector<256x128xf32> -> vector<256x128xf32>
    %44 = arith.addf %38, %43 : vector<256x128xf32>
    %45 = vector.extract_strided_slice %1 {offsets = [2, 1, 0], sizes = [16, 16, 128], strides = [1, 1, 1]} : vector<18x18x128xbf16> to vector<16x16x128xbf16>
    %46 = vector.shape_cast %45 : vector<16x16x128xbf16> to vector<256x128xbf16>
    %c7 = arith.constant 7 : index
    %c0_25 = arith.constant 0 : index
    %c0_26 = arith.constant 0 : index
    %47 = vector.load %arg2[%c7, %c0_25, %c0_26] : memref<9x128x128xbf16, #tpu.memory_space<vmem>>, vector<1x128x128xbf16>
    %48 = vector.shape_cast %47 : vector<1x128x128xbf16> to vector<128x128xbf16>
    %cst_27 = arith.constant dense<0.000000e+00> : vector<256x128xf32>
    %49 = tpu.matmul %46, %48, %cst_27 {dimension_numbers = #tpu.dot_dimension_numbers<[1], [0], [0], [1], [0, 0, 1, 1], [], []>} : vector<256x128xbf16>, vector<128x128xbf16>, vector<256x128xf32> -> vector<256x128xf32>
    %50 = arith.addf %44, %49 : vector<256x128xf32>
    %51 = vector.extract_strided_slice %1 {offsets = [2, 2, 0], sizes = [16, 16, 128], strides = [1, 1, 1]} : vector<18x18x128xbf16> to vector<16x16x128xbf16>
    %52 = vector.shape_cast %51 : vector<16x16x128xbf16> to vector<256x128xbf16>
    %c8 = arith.constant 8 : index
    %c0_28 = arith.constant 0 : index
    %c0_29 = arith.constant 0 : index
    %53 = vector.load %arg2[%c8, %c0_28, %c0_29] : memref<9x128x128xbf16, #tpu.memory_space<vmem>>, vector<1x128x128xbf16>
    %54 = vector.shape_cast %53 : vector<1x128x128xbf16> to vector<128x128xbf16>
    %cst_30 = arith.constant dense<0.000000e+00> : vector<256x128xf32>
    %55 = tpu.matmul %52, %54, %cst_30 {dimension_numbers = #tpu.dot_dimension_numbers<[1], [0], [0], [1], [0, 0, 1, 1], [], []>} : vector<256x128xbf16>, vector<128x128xbf16>, vector<256x128xf32> -> vector<256x128xf32>
    %56 = arith.addf %50, %55 : vector<256x128xf32>
    %c0_31 = arith.constant 0 : index
    %c0_32 = arith.constant 0 : index
    %57 = vector.load %arg3[%c0_31, %c0_32] : memref<1x128xf32, #tpu.memory_space<vmem>>, vector<1x128xf32>
    %58 = vector.broadcast %57 : vector<1x128xf32> to vector<256x128xf32>
    %59 = arith.addf %56, %58 : vector<256x128xf32>
    %cst_33 = arith.constant 0.000000e+00 : f32
    %60 = vector.broadcast %cst_33 : f32 to vector<256x128xf32>
    %61 = arith.maximumf %59, %60 : vector<256x128xf32>
    %62 = arith.truncf %61 : vector<256x128xf32> to vector<256x128xbf16>
    %c0_34 = arith.constant 0 : index
    %c0_35 = arith.constant 0 : index
    %c0_36 = arith.constant 0 : index
    %63 = vector.load %arg4[%c0_34, %c0_35, %c0_36] : memref<1x256x128xbf16, #tpu.memory_space<vmem>>, vector<1x256x128xbf16>
    %64 = vector.shape_cast %63 : vector<1x256x128xbf16> to vector<256x128xbf16>
    %65 = vector.shape_cast %62 : vector<256x128xbf16> to vector<1x256x128xbf16>
    tpu.vector_store %arg4[%c0_34, %c0_35, %c0_36], %65 {strides = array<i32>} : memref<1x256x128xbf16, #tpu.memory_space<vmem>>, vector<1x256x128xbf16>,
    return
  }
  func.func @transform_0(%arg0: i32) -> (i32, i32, i32, i32) {
    %c0_i32 = arith.constant 0 : i32
    %c0_i32_0 = arith.constant 0 : i32
    %c0_i32_1 = arith.constant 0 : i32
    %c0_i32_2 = arith.constant 0 : i32
    return %arg0, %c0_i32, %c0_i32_0, %c0_i32_1 : i32, i32, i32, i32
  }
  func.func @transform_1(%arg0: i32) -> (i32, i32, i32) {
    %c0_i32 = arith.constant 0 : i32
    %c0_i32_0 = arith.constant 0 : i32
    %c0_i32_1 = arith.constant 0 : i32
    %c0_i32_2 = arith.constant 0 : i32
    return %c0_i32, %c0_i32_0, %c0_i32_1 : i32, i32, i32
  }
  func.func @transform_2(%arg0: i32) -> (i32, i32) {
    %c0_i32 = arith.constant 0 : i32
    %c0_i32_0 = arith.constant 0 : i32
    %c0_i32_1 = arith.constant 0 : i32
    return %c0_i32, %c0_i32_0 : i32, i32
  }
  func.func @transform_3(%arg0: i32) -> (i32, i32, i32) {
    %c0_i32 = arith.constant 0 : i32
    %c0_i32_0 = arith.constant 0 : i32
    %c0_i32_1 = arith.constant 0 : i32
    return %arg0, %c0_i32, %c0_i32_0 : i32, i32, i32
  }
}

module attributes {stable_mosaic.version = 11 : i64} {
  func.func @_conv3x3_gap_head_kernel(%arg0: i32, %arg1: memref<1x18x18x128xbf16, #tpu.memory_space<vmem>>, %arg2: memref<9x128x128xbf16, #tpu.memory_space<vmem>>, %arg3: memref<1x128xf32, #tpu.memory_space<vmem>>, %arg4: memref<128x128xf32, #tpu.memory_space<vmem>>, %arg5: memref<1x128xf32, #tpu.memory_space<vmem>>, %arg6: memref<1x8x128xf32, #tpu.memory_space<vmem>>) attributes {dimension_semantics = [#tpu.dimension_semantics<parallel>], iteration_bounds = array<i64: 2>, scalar_prefetch = 0 : i64, scratch_operands = 0 : i64, tpu.core_type = #tpu.core_type<tc>, window_params = [{transform_indices = @transform_0, window_bounds = array<i64: 1, 18, 18, 128>}, {pipeline_mode = #tpu.pipeline_mode<synchronous>, transform_indices = @transform_1, window_bounds = array<i64: 9, 128, 128>}, {pipeline_mode = #tpu.pipeline_mode<synchronous>, transform_indices = @transform_2, window_bounds = array<i64: 1, 128>}, {pipeline_mode = #tpu.pipeline_mode<synchronous>, transform_indices = @transform_3, window_bounds = array<i64: 128, 128>}, {pipeline_mode = #tpu.pipeline_mode<synchronous>, transform_indices = @transform_4, window_bounds = array<i64: 1, 128>}, {transform_indices = @transform_5, window_bounds = array<i64: 1, 8, 128>}]} {
    %c0 = arith.constant 0 : index
    %c0_0 = arith.constant 0 : index
    %c0_1 = arith.constant 0 : index
    %c0_2 = arith.constant 0 : index
    %0 = vector.load %arg1[%c0, %c0_0, %c0_1, %c0_2] : memref<1x18x18x128xbf16, #tpu.memory_space<vmem>>, vector<1x18x18x128xbf16>
    %1 = vector.shape_cast %0 : vector<1x18x18x128xbf16> to vector<18x18x128xbf16>
    %cst = arith.constant 0.000000e+00 : f32
    %2 = vector.broadcast %cst : f32 to vector<256x128xf32>
    %3 = vector.extract_strided_slice %1 {offsets = [0, 0, 0], sizes = [16, 16, 128], strides = [1, 1, 1]} : vector<18x18x128xbf16> to vector<16x16x128xbf16>
    %4 = vector.shape_cast %3 : vector<16x16x128xbf16> to vector<256x128xbf16>
    %c0_3 = arith.constant 0 : index
    %c0_4 = arith.constant 0 : index
    %c0_5 = arith.constant 0 : index
    %5 = vector.load %arg2[%c0_3, %c0_4, %c0_5] : memref<9x128x128xbf16, #tpu.memory_space<vmem>>, vector<1x128x128xbf16>
    %6 = vector.shape_cast %5 : vector<1x128x128xbf16> to vector<128x128xbf16>
    %cst_6 = arith.constant dense<0.000000e+00> : vector<256x128xf32>
    %7 = tpu.matmul %4, %6, %cst_6 {dimension_numbers = #tpu.dot_dimension_numbers<[1], [0], [0], [1], [0, 0, 1, 1], [], []>} : vector<256x128xbf16>, vector<128x128xbf16>, vector<256x128xf32> -> vector<256x128xf32>
    %8 = arith.addf %2, %7 : vector<256x128xf32>
    %9 = vector.extract_strided_slice %1 {offsets = [0, 1, 0], sizes = [16, 16, 128], strides = [1, 1, 1]} : vector<18x18x128xbf16> to vector<16x16x128xbf16>
    %10 = vector.shape_cast %9 : vector<16x16x128xbf16> to vector<256x128xbf16>
    %c1 = arith.constant 1 : index
    %c0_7 = arith.constant 0 : index
    %c0_8 = arith.constant 0 : index
    %11 = vector.load %arg2[%c1, %c0_7, %c0_8] : memref<9x128x128xbf16, #tpu.memory_space<vmem>>, vector<1x128x128xbf16>
    %12 = vector.shape_cast %11 : vector<1x128x128xbf16> to vector<128x128xbf16>
    %cst_9 = arith.constant dense<0.000000e+00> : vector<256x128xf32>
    %13 = tpu.matmul %10, %12, %cst_9 {dimension_numbers = #tpu.dot_dimension_numbers<[1], [0], [0], [1], [0, 0, 1, 1], [], []>} : vector<256x128xbf16>, vector<128x128xbf16>, vector<256x128xf32> -> vector<256x128xf32>
    %14 = arith.addf %8, %13 : vector<256x128xf32>
    %15 = vector.extract_strided_slice %1 {offsets = [0, 2, 0], sizes = [16, 16, 128], strides = [1, 1, 1]} : vector<18x18x128xbf16> to vector<16x16x128xbf16>
    %16 = vector.shape_cast %15 : vector<16x16x128xbf16> to vector<256x128xbf16>
    %c2 = arith.constant 2 : index
    %c0_10 = arith.constant 0 : index
    %c0_11 = arith.constant 0 : index
    %17 = vector.load %arg2[%c2, %c0_10, %c0_11] : memref<9x128x128xbf16, #tpu.memory_space<vmem>>, vector<1x128x128xbf16>
    %18 = vector.shape_cast %17 : vector<1x128x128xbf16> to vector<128x128xbf16>
    %cst_12 = arith.constant dense<0.000000e+00> : vector<256x128xf32>
    %19 = tpu.matmul %16, %18, %cst_12 {dimension_numbers = #tpu.dot_dimension_numbers<[1], [0], [0], [1], [0, 0, 1, 1], [], []>} : vector<256x128xbf16>, vector<128x128xbf16>, vector<256x128xf32> -> vector<256x128xf32>
    %20 = arith.addf %14, %19 : vector<256x128xf32>
    %21 = vector.extract_strided_slice %1 {offsets = [1, 0, 0], sizes = [16, 16, 128], strides = [1, 1, 1]} : vector<18x18x128xbf16> to vector<16x16x128xbf16>
    %22 = vector.shape_cast %21 : vector<16x16x128xbf16> to vector<256x128xbf16>
    %c3 = arith.constant 3 : index
    %c0_13 = arith.constant 0 : index
    %c0_14 = arith.constant 0 : index
    %23 = vector.load %arg2[%c3, %c0_13, %c0_14] : memref<9x128x128xbf16, #tpu.memory_space<vmem>>, vector<1x128x128xbf16>
    %24 = vector.shape_cast %23 : vector<1x128x128xbf16> to vector<128x128xbf16>
    %cst_15 = arith.constant dense<0.000000e+00> : vector<256x128xf32>
    %25 = tpu.matmul %22, %24, %cst_15 {dimension_numbers = #tpu.dot_dimension_numbers<[1], [0], [0], [1], [0, 0, 1, 1], [], []>} : vector<256x128xbf16>, vector<128x128xbf16>, vector<256x128xf32> -> vector<256x128xf32>
    %26 = arith.addf %20, %25 : vector<256x128xf32>
    %27 = vector.extract_strided_slice %1 {offsets = [1, 1, 0], sizes = [16, 16, 128], strides = [1, 1, 1]} : vector<18x18x128xbf16> to vector<16x16x128xbf16>
    %28 = vector.shape_cast %27 : vector<16x16x128xbf16> to vector<256x128xbf16>
    %c4 = arith.constant 4 : index
    %c0_16 = arith.constant 0 : index
    %c0_17 = arith.constant 0 : index
    %29 = vector.load %arg2[%c4, %c0_16, %c0_17] : memref<9x128x128xbf16, #tpu.memory_space<vmem>>, vector<1x128x128xbf16>
    %30 = vector.shape_cast %29 : vector<1x128x128xbf16> to vector<128x128xbf16>
    %cst_18 = arith.constant dense<0.000000e+00> : vector<256x128xf32>
    %31 = tpu.matmul %28, %30, %cst_18 {dimension_numbers = #tpu.dot_dimension_numbers<[1], [0], [0], [1], [0, 0, 1, 1], [], []>} : vector<256x128xbf16>, vector<128x128xbf16>, vector<256x128xf32> -> vector<256x128xf32>
    %32 = arith.addf %26, %31 : vector<256x128xf32>
    %33 = vector.extract_strided_slice %1 {offsets = [1, 2, 0], sizes = [16, 16, 128], strides = [1, 1, 1]} : vector<18x18x128xbf16> to vector<16x16x128xbf16>
    %34 = vector.shape_cast %33 : vector<16x16x128xbf16> to vector<256x128xbf16>
    %c5 = arith.constant 5 : index
    %c0_19 = arith.constant 0 : index
    %c0_20 = arith.constant 0 : index
    %35 = vector.load %arg2[%c5, %c0_19, %c0_20] : memref<9x128x128xbf16, #tpu.memory_space<vmem>>, vector<1x128x128xbf16>
    %36 = vector.shape_cast %35 : vector<1x128x128xbf16> to vector<128x128xbf16>
    %cst_21 = arith.constant dense<0.000000e+00> : vector<256x128xf32>
    %37 = tpu.matmul %34, %36, %cst_21 {dimension_numbers = #tpu.dot_dimension_numbers<[1], [0], [0], [1], [0, 0, 1, 1], [], []>} : vector<256x128xbf16>, vector<128x128xbf16>, vector<256x128xf32> -> vector<256x128xf32>
    %38 = arith.addf %32, %37 : vector<256x128xf32>
    %39 = vector.extract_strided_slice %1 {offsets = [2, 0, 0], sizes = [16, 16, 128], strides = [1, 1, 1]} : vector<18x18x128xbf16> to vector<16x16x128xbf16>
    %40 = vector.shape_cast %39 : vector<16x16x128xbf16> to vector<256x128xbf16>
    %c6 = arith.constant 6 : index
    %c0_22 = arith.constant 0 : index
    %c0_23 = arith.constant 0 : index
    %41 = vector.load %arg2[%c6, %c0_22, %c0_23] : memref<9x128x128xbf16, #tpu.memory_space<vmem>>, vector<1x128x128xbf16>
    %42 = vector.shape_cast %41 : vector<1x128x128xbf16> to vector<128x128xbf16>
    %cst_24 = arith.constant dense<0.000000e+00> : vector<256x128xf32>
    %43 = tpu.matmul %40, %42, %cst_24 {dimension_numbers = #tpu.dot_dimension_numbers<[1], [0], [0], [1], [0, 0, 1, 1], [], []>} : vector<256x128xbf16>, vector<128x128xbf16>, vector<256x128xf32> -> vector<256x128xf32>
    %44 = arith.addf %38, %43 : vector<256x128xf32>
    %45 = vector.extract_strided_slice %1 {offsets = [2, 1, 0], sizes = [16, 16, 128], strides = [1, 1, 1]} : vector<18x18x128xbf16> to vector<16x16x128xbf16>
    %46 = vector.shape_cast %45 : vector<16x16x128xbf16> to vector<256x128xbf16>
    %c7 = arith.constant 7 : index
    %c0_25 = arith.constant 0 : index
    %c0_26 = arith.constant 0 : index
    %47 = vector.load %arg2[%c7, %c0_25, %c0_26] : memref<9x128x128xbf16, #tpu.memory_space<vmem>>, vector<1x128x128xbf16>
    %48 = vector.shape_cast %47 : vector<1x128x128xbf16> to vector<128x128xbf16>
    %cst_27 = arith.constant dense<0.000000e+00> : vector<256x128xf32>
    %49 = tpu.matmul %46, %48, %cst_27 {dimension_numbers = #tpu.dot_dimension_numbers<[1], [0], [0], [1], [0, 0, 1, 1], [], []>} : vector<256x128xbf16>, vector<128x128xbf16>, vector<256x128xf32> -> vector<256x128xf32>
    %50 = arith.addf %44, %49 : vector<256x128xf32>
    %51 = vector.extract_strided_slice %1 {offsets = [2, 2, 0], sizes = [16, 16, 128], strides = [1, 1, 1]} : vector<18x18x128xbf16> to vector<16x16x128xbf16>
    %52 = vector.shape_cast %51 : vector<16x16x128xbf16> to vector<256x128xbf16>
    %c8 = arith.constant 8 : index
    %c0_28 = arith.constant 0 : index
    %c0_29 = arith.constant 0 : index
    %53 = vector.load %arg2[%c8, %c0_28, %c0_29] : memref<9x128x128xbf16, #tpu.memory_space<vmem>>, vector<1x128x128xbf16>
    %54 = vector.shape_cast %53 : vector<1x128x128xbf16> to vector<128x128xbf16>
    %cst_30 = arith.constant dense<0.000000e+00> : vector<256x128xf32>
    %55 = tpu.matmul %52, %54, %cst_30 {dimension_numbers = #tpu.dot_dimension_numbers<[1], [0], [0], [1], [0, 0, 1, 1], [], []>} : vector<256x128xbf16>, vector<128x128xbf16>, vector<256x128xf32> -> vector<256x128xf32>
    %56 = arith.addf %50, %55 : vector<256x128xf32>
    %c0_31 = arith.constant 0 : index
    %c0_32 = arith.constant 0 : index
    %57 = vector.load %arg3[%c0_31, %c0_32] : memref<1x128xf32, #tpu.memory_space<vmem>>, vector<1x128xf32>
    %58 = vector.broadcast %57 : vector<1x128xf32> to vector<256x128xf32>
    %59 = arith.addf %56, %58 : vector<256x128xf32>
    %cst_33 = arith.constant 0.000000e+00 : f32
    %60 = vector.broadcast %cst_33 : f32 to vector<256x128xf32>
    %61 = arith.maximumf %59, %60 : vector<256x128xf32>
    %cst_34 = arith.constant dense<0.000000e+00> : vector<128xf32>
    %62 = vector.multi_reduction <add>, %61, %cst_34 [0] : vector<256x128xf32> to vector<128xf32>
    %63 = vector.shape_cast %62 : vector<128xf32> to vector<1x128xf32>
    %cst_35 = arith.constant 2.560000e+02 : f32
    %64 = vector.broadcast %cst_35 : f32 to vector<1x128xf32>
    %65 = arith.divf %63, %64 : vector<1x128xf32>
    %c0_36 = arith.constant 0 : index
    %c0_37 = arith.constant 0 : index
    %66 = vector.load %arg4[%c0_36, %c0_37] : memref<128x128xf32, #tpu.memory_space<vmem>>, vector<128x128xf32>
    %cst_38 = arith.constant dense<0.000000e+00> : vector<1x128xf32>
    %67 = tpu.matmul %65, %66, %cst_38 {dimension_numbers = #tpu.dot_dimension_numbers<[1], [0], [0], [1], [0, 0, 1, 1], [], []>} : vector<1x128xf32>, vector<128x128xf32>, vector<1x128xf32> -> vector<1x128xf32>
    %c0_39 = arith.constant 0 : index
    %c0_40 = arith.constant 0 : index
    %68 = vector.load %arg5[%c0_39, %c0_40] : memref<1x128xf32, #tpu.memory_space<vmem>>, vector<1x128xf32>
    %69 = arith.addf %67, %68 : vector<1x128xf32>
    %70 = vector.shape_cast %69 : vector<1x128xf32> to vector<1x128xf32>
    %71 = vector.broadcast %70 : vector<1x128xf32> to vector<8x128xf32>
    %c0_41 = arith.constant 0 : index
    %c0_42 = arith.constant 0 : index
    %c0_43 = arith.constant 0 : index
    %72 = vector.load %arg6[%c0_41, %c0_42, %c0_43] : memref<1x8x128xf32, #tpu.memory_space<vmem>>, vector<1x8x128xf32>
    %73 = vector.shape_cast %72 : vector<1x8x128xf32> to vector<8x128xf32>
    %74 = vector.shape_cast %71 : vector<8x128xf32> to vector<1x8x128xf32>
    tpu.vector_store %arg6[%c0_41, %c0_42, %c0_43], %74 {strides = array<i32>} : memref<1x8x128xf32, #tpu.memory_space<vmem>>, vector<1x8x128xf32>,
    return
  }
  func.func @transform_0(%arg0: i32) -> (i32, i32, i32, i32) {
    %c0_i32 = arith.constant 0 : i32
    %c0_i32_0 = arith.constant 0 : i32
    %c0_i32_1 = arith.constant 0 : i32
    %c0_i32_2 = arith.constant 0 : i32
    return %arg0, %c0_i32, %c0_i32_0, %c0_i32_1 : i32, i32, i32, i32
  }
  func.func @transform_1(%arg0: i32) -> (i32, i32, i32) {
    %c0_i32 = arith.constant 0 : i32
    %c0_i32_0 = arith.constant 0 : i32
    %c0_i32_1 = arith.constant 0 : i32
    %c0_i32_2 = arith.constant 0 : i32
    return %c0_i32, %c0_i32_0, %c0_i32_1 : i32, i32, i32
  }
  func.func @transform_2(%arg0: i32) -> (i32, i32) {
    %c0_i32 = arith.constant 0 : i32
    %c0_i32_0 = arith.constant 0 : i32
    %c0_i32_1 = arith.constant 0 : i32
    return %c0_i32, %c0_i32_0 : i32, i32
  }
  func.func @transform_3(%arg0: i32) -> (i32, i32) {
    %c0_i32 = arith.constant 0 : i32
    %c0_i32_0 = arith.constant 0 : i32
    %c0_i32_1 = arith.constant 0 : i32
    return %c0_i32, %c0_i32_0 : i32, i32
  }
  func.func @transform_4(%arg0: i32) -> (i32, i32) {
    %c0_i32 = arith.constant 0 : i32
    %c0_i32_0 = arith.constant 0 : i32
    %c0_i32_1 = arith.constant 0 : i32
    return %c0_i32, %c0_i32_0 : i32, i32
  }
  func.func @transform_5(%arg0: i32) -> (i32, i32, i32) {
    %c0_i32 = arith.constant 0 : i32
    %c0_i32_0 = arith.constant 0 : i32
    %c0_i32_1 = arith.constant 0 : i32
    return %arg0, %c0_i32, %c0_i32_0 : i32, i32, i32
  }
}

</mosaic_0001>

<llo_original>
// kernel: dr_classifier_forward.2
$region0: #{dr_classifier_forward.2}
  #allocation0 [shape = 'u32[]', space=smem, size = 0x4, offset = 0x4, fixed_abs, tag = 'smem constant byte address 0x4 - core index']
  #allocation1 [shape = 'u32[72,128]{1,0:T(1,128)}', space=vmem, size = 0x9000, scoped, tag = 'internal scratch']
  %s0 = inlined_call_operand.vmem [shape: bf16[2,18,18,128], index: 0, kind: input, shape index: {}]
  %s1 = inlined_call_operand.vmem [shape: bf16[9,128,128], index: 1, kind: input, shape index: {}]
  %s2 = inlined_call_operand.vmem [shape: f32[1,128], index: 2, kind: input, shape index: {}]
  %s3 = inlined_call_operand.vmem [shape: bf16[2,256,128], index: 3, kind: output, shape index: {}]
  %s4 = sld [smem:[#allocation0]]
  $region45: #{dr_classifier_forward.2} parent=0
    _
  %s6 = ssub.s32 1, %s4
  %s7 = scalar_select 0, %s6, %s4
  loop: start=0, step=1, limit=4
  $region2: #{dr_classifier_forward.2} parent=0 // loop_pre_header
    _
  $region3: #{dr_classifier_forward.2} parent=0 // loop_header
    %s9 = sphi 0, %s13
    %p10 = scmp.ge.s32.totalorder %s9, 4
    %s19 = sphi 0, %s21
    %s22 = sphi 0, %s19
    %s23 = sphi 0, %s22
    %s39 = sphi 0, %s23
    %s43 = sphi 0, %s43
    %s45 = sphi 0, %s43
    %s46 = sphi 0, %s45
    %s60 = sphi 0, %s46
    %s64 = sphi 0, %s64
    %s66 = sphi 0, %s64
    %s67 = sphi 0, %s66
    %s81 = sphi 0, %s67
    %s87 = sphi 0, %s89
    %s90 = sphi 0, %s87
    %s91 = sphi 0, %s90
    %s107 = sphi 0, %s91
  $region4: #{dr_classifier_forward.2} parent=0 // loop_header_branch
    %12 = sbr.rel (%p10) target = $region8
  $region5: #{dr_classifier_forward.2} parent=0 // loop_body
    %s14 = ssub.s32 %s9, 1
    %s15 = ssub.s32 %s9, 2
    %s16 = sadd.s32 %s9, 1
    %s17 = ssub.s32 %s9, %s16
    %p18 = scmp.eq.s32.totalorder %s17, 0
    %s20 = sadd.s32 %s19, 1
    %s21 = scalar_select %p18, %s19, %s20
    %p24 = pneg %p18
    %p25 = scmp.eq.s32.totalorder %s9, 1
    %p26 = por %p24, %p25
    %p27 = scmp.ne.s32.totalorder %s19, %s22
    %p28 = scmp.eq.s32.totalorder %s9, 0
    %p29 = por %p27, %p28
    %p30 = scmp.ne.s32.totalorder %s19, %s22
    %p31 = scmp.eq.s32.totalorder %s14, 1
    %p32 = por %p30, %p31
    %p33 = scmp.ne.s32.totalorder %s22, %s23
    %p34 = scmp.eq.s32.totalorder %s14, 0
    %p35 = por %p33, %p34
    %p36 = scmp.ne.s32.totalorder %s22, %s23
    %p37 = scmp.eq.s32.totalorder %s15, 1
    %p38 = por %p36, %p37
    %p40 = scmp.ne.s32.totalorder %s23, %s39
    %p41 = scmp.eq.s32.totalorder %s15, 0
    %p42 = por %p40, %p41
    %s44 = sadd.s32 %s43, 1
    %p47 = scmp.eq.s32.totalorder %s9, 1
    %p48 = scmp.ne.s32.totalorder %s43, %s45
    %p49 = scmp.eq.s32.totalorder %s9, 0
    %p50 = por %p48, %p49
    %p51 = scmp.ne.s32.totalorder %s43, %s45
    %p52 = scmp.eq.s32.totalorder %s14, 1
    %p53 = por %p51, %p52
    %p54 = scmp.ne.s32.totalorder %s45, %s46
    %p55 = scmp.eq.s32.totalorder %s14, 0
    %p56 = por %p54, %p55
    %p57 = scmp.ne.s32.totalorder %s45, %s46
    %p58 = scmp.eq.s32.totalorder %s15, 1
    %p59 = por %p57, %p58
    %p61 = scmp.ne.s32.totalorder %s46, %s60
    %p62 = scmp.eq.s32.totalorder %s15, 0
    %p63 = por %p61, %p62
    %s65 = sadd.s32 %s64, 1
    %p68 = scmp.eq.s32.totalorder %s9, 1
    %p69 = scmp.ne.s32.totalorder %s64, %s66
    %p70 = scmp.eq.s32.totalorder %s9, 0
    %p71 = por %p69, %p70
    %p72 = scmp.ne.s32.totalorder %s64, %s66
    %p73 = scmp.eq.s32.totalorder %s14, 1
    %p74 = por %p72, %p73
    %p75 = scmp.ne.s32.totalorder %s66, %s67
    %p76 = scmp.eq.s32.totalorder %s14, 0
    %p77 = por %p75, %p76
    %p78 = scmp.ne.s32.totalorder %s66, %s67
    %p79 = scmp.eq.s32.totalorder %s15, 1
    %p80 = por %p78, %p79
    %p82 = scmp.ne.s32.totalorder %s67, %s81
    %p83 = scmp.eq.s32.totalorder %s15, 0
    %p84 = por %p82, %p83
    %s85 = ssub.s32 %s9, %s16
    %p86 = scmp.eq.s32.totalorder %s85, 0
    %s88 = sadd.s32 %s87, 1
    %s89 = scalar_select %p86, %s87, %s88
    %p92 = pneg %p86
    %p93 = scmp.eq.s32.totalorder %s9, 1
    %p94 = por %p92, %p93
    %p95 = scmp.ne.s32.totalorder %s87, %s90
    %p96 = scmp.eq.s32.totalorder %s9, 0
    %p97 = por %p95, %p96
    %p98 = scmp.ne.s32.totalorder %s87, %s90
    %p99 = scmp.eq.s32.totalorder %s14, 1
    %p100 = por %p98, %p99
    %p101 = scmp.ne.s32.totalorder %s90, %s91
    %p102 = scmp.eq.s32.totalorder %s14, 0
    %p103 = por %p101, %p102
    %p104 = scmp.ne.s32.totalorder %s90, %s91
    %p105 = scmp.eq.s32.totalorder %s15, 1
    %p106 = por %p104, %p105
    %p108 = scmp.ne.s32.totalorder %s91, %s107
    %p109 = scmp.eq.s32.totalorder %s15, 0
    %p110 = por %p108, %p109
    %p111 = scmp.le.s32.totalorder 1, %s9
    %p112 = scmp.lt.s32.totalorder %s9, 3
    %p113 = pnand %p111, %p112
    %p114 = pneg %p113
    // Predicated region
    $region9: #{dr_classifier_forward.2} parent=5 // pred_check
      _
    $region10: #{dr_classifier_forward.2} parent=5 // pred_check_branch
      %116 = sbr.rel (%p113) target = $region12
    $region11: #{dr_classifier_forward.2} parent=5 // pred_region
      %s117 = ssub.s32 %s9, 1
      // Predicated region
      $region13: #{dr_classifier_forward.2} parent=11 // pred_check
        %p118 = pneg %p56
      $region14: #{dr_classifier_forward.2} parent=11 // pred_check_branch
        %120 = sbr.rel (%p118) target = $region16
      $region15: #{dr_classifier_forward.2} parent=11 // pred_region
        _
      $region16: #{dr_classifier_forward.2} parent=11 // pred_fallthru
        _
      // Predicated region
      $region17: #{dr_classifier_forward.2} parent=11 // pred_check
        %p121 = pneg %p77
      $region18: #{dr_classifier_forward.2} parent=11 // pred_check_branch
        %123 = sbr.rel (%p121) target = $region20
      $region19: #{dr_classifier_forward.2} parent=11 // pred_region
        _
      $region20: #{dr_classifier_forward.2} parent=11 // pred_fallthru
        _
    $region12: #{dr_classifier_forward.2} parent=5 // pred_fallthru
      _
    %p124 = scmp.lt.s32.totalorder %s9, 2
    // Predicated region
    $region21: #{dr_classifier_forward.2} parent=5 // pred_check
      %p125 = pneg %p124
    $region22: #{dr_classifier_forward.2} parent=5 // pred_check_branch
      %127 = sbr.rel (%p125) target = $region24
    $region23: #{dr_classifier_forward.2} parent=5 // pred_region
      // Predicated region
      $region25: #{dr_classifier_forward.2} parent=23 // pred_check
        %p128 = pneg %p29
      $region26: #{dr_classifier_forward.2} parent=23 // pred_check_branch
        %130 = sbr.rel (%p128) target = $region28
      $region27: #{dr_classifier_forward.2} parent=23 // pred_region
        %p131 = scmp.lt.s32.totalorder %s9, 1
        %s132 = scalar_select %p131, %s9, 1
        %s133 = smul.addr %s132, 54
        %s134 = smul.addr %s133, 4
        %s135 = scalar_lea.vmem %s0, %s134
      $region28: #{dr_classifier_forward.2} parent=23 // pred_fallthru
        _
    $region24: #{dr_classifier_forward.2} parent=5 // pred_fallthru
      _
    %p136 = scmp.le.s32.totalorder 1, %s9
    %p137 = scmp.lt.s32.totalorder %s9, 3
    %p138 = pnand %p136, %p137
    %p139 = pneg %p138
    // Predicated region
    $region29: #{dr_classifier_forward.2} parent=5 // pred_check
      _
    $region30: #{dr_classifier_forward.2} parent=5 // pred_check_branch
      %141 = sbr.rel (%p138) target = $region32
    $region31: #{dr_classifier_forward.2} parent=5 // pred_region
      %s142 = ssub.s32 %s9, 1
      %p143 = scmp.lt.s32.totalorder %s14, 1
      %s144 = scalar_select %p143, %s14, 1
      %s145 = smul.addr %s144, 54
      %s146 = smul.addr %s145, 4
      %s147 = scalar_lea.vmem %s0, %s146
      %p148 = pneg %p35
      %p149 = pneg %p32
      %p150 = pneg %p56
      %p151 = pneg %p53
      %p152 = pneg %p77
      %p153 = pneg %p74
      %p154 = pneg %p103
      %p155 = pneg %p100
      %p156 = scmp.lt.s32.totalorder %s14, 1
      %s157 = scalar_select %p156, %s14, 1
      %s158 = smul.addr %s157, 32
      %s159 = smul.addr %s158, 4
      %s160 = scalar_lea.vmem %s3, %s159
      %p161 = scmp.lt.s32.totalorder %s14, 1
      %s162 = scalar_select %p161, %s14, 1
      %s163 = smul.addr %s162, 54
      %s164 = smul.addr %s163, 4
      %s165 = scalar_lea.vmem %s0, %s164
      %p166 = scmp.lt.s32.totalorder %s14, 1
      %s167 = scalar_select %p166, %s14, 1
      %s168 = smul.addr %s167, 32
      %s169 = smul.addr %s168, 4
      %s170 = scalar_lea.vmem %s3, %s169
      %v171 = vld [vmem:[%s165] sm:$0xf]
      %v172 = vld [vmem:[%s165 + $0x4] sm:$0xf]
      %v173 = vld [vmem:[%s165 + $0x8] sm:$0x1]
      %v174 = vld [vmem:[%s165 + $0xc] sm:$0xf]
      %v175 = vld [vmem:[%s165 + $0x10] sm:$0xf]
      %v176 = vld [vmem:[%s165 + $0x14] sm:$0x1]
      %v177 = vld [vmem:[%s165 + $0x18] sm:$0xf]
      %v178 = vld [vmem:[%s165 + $0x1c] sm:$0xf]
      %v179 = vld [vmem:[%s165 + $0x20] sm:$0x1]
      %v180 = vld [vmem:[%s165 + $0x24] sm:$0xf]
      %v181 = vld [vmem:[%s165 + $0x28] sm:$0xf]
      %v182 = vld [vmem:[%s165 + $0x2c] sm:$0x1]
      %v183 = vld [vmem:[%s165 + $0x30] sm:$0xf]
      %v184 = vld [vmem:[%s165 + $0x34] sm:$0xf]
      %v185 = vld [vmem:[%s165 + $0x38] sm:$0x1]
      %v186 = vld [vmem:[%s165 + $0x3c] sm:$0xf]
      %v187 = vld [vmem:[%s165 + $0x40] sm:$0xf]
      %v188 = vld [vmem:[%s165 + $0x44] sm:$0x1]
      %v189 = vld [vmem:[%s165 + $0x48] sm:$0xf]
      %v190 = vld [vmem:[%s165 + $0x4c] sm:$0xf]
      %v191 = vld [vmem:[%s165 + $0x50] sm:$0x1]
      %v192 = vld [vmem:[%s165 + $0x54] sm:$0xf]
      %v193 = vld [vmem:[%s165 + $0x58] sm:$0xf]
      %v194 = vld [vmem:[%s165 + $0x5c] sm:$0x1]
      %v195 = vld [vmem:[%s165 + $0x60] sm:$0xf]
      %v196 = vld [vmem:[%s165 + $0x64] sm:$0xf]
      %v197 = vld [vmem:[%s165 + $0x68] sm:$0x1]
      %v198 = vld [vmem:[%s165 + $0x6c] sm:$0xf]
      %v199 = vld [vmem:[%s165 + $0x70] sm:$0xf]
      %v200 = vld [vmem:[%s165 + $0x74] sm:$0x1]
      %v201 = vld [vmem:[%s165 + $0x78] sm:$0xf]
      %v202 = vld [vmem:[%s165 + $0x7c] sm:$0xf]
      %v203 = vld [vmem:[%s165 + $0x80] sm:$0x1]
      %v204 = vld [vmem:[%s165 + $0x84] sm:$0xf]
      %v205 = vld [vmem:[%s165 + $0x88] sm:$0xf]
      %v206 = vld [vmem:[%s165 + $0x8c] sm:$0x1]
      %v207 = vld [vmem:[%s165 + $0x90] sm:$0xf]
      %v208 = vld [vmem:[%s165 + $0x94] sm:$0xf]
      %v209 = vld [vmem:[%s165 + $0x98] sm:$0x1]
      %v210 = vld [vmem:[%s165 + $0x9c] sm:$0xf]
      %v211 = vld [vmem:[%s165 + $0xa0] sm:$0xf]
      %v212 = vld [vmem:[%s165 + $0xa4] sm:$0x1]
      %v213 = vld [vmem:[%s165 + $0xa8] sm:$0xf]
      %v214 = vld [vmem:[%s165 + $0xac] sm:$0xf]
      %v215 = vld [vmem:[%s165 + $0xb0] sm:$0x1]
      %v216 = vld [vmem:[%s165 + $0xb4] sm:$0xf]
      %v217 = vld [vmem:[%s165 + $0xb8] sm:$0xf]
      %v218 = vld [vmem:[%s165 + $0xbc] sm:$0x1]
      %v219 = vld [vmem:[%s165 + $0xc0] sm:$0xf]
      %v220 = vld [vmem:[%s165 + $0xc4] sm:$0xf]
      %v221 = vld [vmem:[%s165 + $0xc8] sm:$0x1]
      %v222 = vld [vmem:[%s165 + $0xcc] sm:$0xf]
      %v223 = vld [vmem:[%s165 + $0xd0] sm:$0xf]
      %v224 = vld [vmem:[%s165 + $0xd4] sm:$0x1]
      %v225 = vld [vmem:[%s1] sm:$0xf]
      %v226 = vld [vmem:[%s1 + $0x4] sm:$0xf]
      %v227 = vld [vmem:[%s1 + $0x8] sm:$0xf]
      %v228 = vld [vmem:[%s1 + $0xc] sm:$0xf]
      %v229 = vld [vmem:[%s1 + $0x10] sm:$0xf]
      %v230 = vld [vmem:[%s1 + $0x14] sm:$0xf]
      %v231 = vld [vmem:[%s1 + $0x18] sm:$0xf]
      %v232 = vld [vmem:[%s1 + $0x1c] sm:$0xf]
      %v233 = vld [vmem:[%s1 + $0x20] sm:$0xf]
      %v234 = vld [vmem:[%s1 + $0x24] sm:$0xf]
      %v235 = vld [vmem:[%s1 + $0x28] sm:$0xf]
      %v236 = vld [vmem:[%s1 + $0x2c] sm:$0xf]
      %v237 = vld [vmem:[%s1 + $0x30] sm:$0xf]
      %v238 = vld [vmem:[%s1 + $0x34] sm:$0xf]
      %v239 = vld [vmem:[%s1 + $0x38] sm:$0xf]
      %v240 = vld [vmem:[%s1 + $0x3c] sm:$0xf]
      %vm241 = vsmask.f32 3328
      %vm242 = vsmask.f32 7440
      %vm243 = vmor %vm241, %vm242
      %v245 = vshrl.u32 %v171, 16
      %v247 = vrot.slane %v245, 4
      %v248 = vshll.u32 %v171, 16
      %v250 = vrot.slane %v248, 5
      %v251 = vor.u32 %v247, %v250
      %v252 = vrot.slane %v251, 4
      %v254 = vshll.u32 %v172, 16
      %v256 = vrot.slane %v254, 5
      %v257 = vsel %vm243, %v252, %v256
      %v258 = vshrl.u32 %v172, 16
      %v260 = vrot.slane %v258, 4
      %v261 = vor.u32 %v260, %v256
      %v262 = vrot.slane %v261, 4
      %v264 = vshll.u32 %v173, 16
      %v266 = vrot.slane %v264, 5
      %v267 = vsel %vm243, %v262, %v266
      %v269 = vshrl.u32 %v174, 16
      %v271 = vrot.slane %v269, 4
      %v272 = vshll.u32 %v174, 16
      %v274 = vrot.slane %v272, 5
      %v275 = vor.u32 %v271, %v274
      %v276 = vrot.slane %v275, 4
      %v278 = vshll.u32 %v175, 16
      %v280 = vrot.slane %v278, 5
      %v281 = vsel %vm243, %v276, %v280
      %v282 = vshrl.u32 %v175, 16
      %v284 = vrot.slane %v282, 4
      %v285 = vor.u32 %v284, %v280
      %v286 = vrot.slane %v285, 4
      %v288 = vshll.u32 %v176, 16
      %v290 = vrot.slane %v288, 5
      %v291 = vsel %vm243, %v286, %v290
      %v293 = vshrl.u32 %v177, 16
      %v295 = vrot.slane %v293, 4
      %v296 = vshll.u32 %v177, 16
      %v298 = vrot.slane %v296, 5
      %v299 = vor.u32 %v295, %v298
      %v300 = vrot.slane %v299, 4
      %v302 = vshll.u32 %v178, 16
      %v304 = vrot.slane %v302, 5
      %v305 = vsel %vm243, %v300, %v304
      %v306 = vshrl.u32 %v178, 16
      %v308 = vrot.slane %v306, 4
      %v309 = vor.u32 %v308, %v304
      %v310 = vrot.slane %v309, 4
      %v312 = vshll.u32 %v179, 16
      %v314 = vrot.slane %v312, 5
      %v315 = vsel %vm243, %v310, %v314
      %v317 = vshrl.u32 %v180, 16
      %v319 = vrot.slane %v317, 4
      %v320 = vshll.u32 %v180, 16
      %v322 = vrot.slane %v320, 5
      %v323 = vor.u32 %v319, %v322
      %v324 = vrot.slane %v323, 4
      %v326 = vshll.u32 %v181, 16
      %v328 = vrot.slane %v326, 5
      %v329 = vsel %vm243, %v324, %v328
      %v330 = vshrl.u32 %v181, 16
      %v332 = vrot.slane %v330, 4
      %v333 = vor.u32 %v332, %v328
      %v334 = vrot.slane %v333, 4
      %v336 = vshll.u32 %v182, 16
      %v338 = vrot.slane %v336, 5
      %v339 = vsel %vm243, %v334, %v338
      %v341 = vshrl.u32 %v183, 16
      %v343 = vrot.slane %v341, 4
      %v344 = vshll.u32 %v183, 16
      %v346 = vrot.slane %v344, 5
      %v347 = vor.u32 %v343, %v346
      %v348 = vrot.slane %v347, 4
      %v350 = vshll.u32 %v184, 16
      %v352 = vrot.slane %v350, 5
      %v353 = vsel %vm243, %v348, %v352
      %v354 = vshrl.u32 %v184, 16
      %v356 = vrot.slane %v354, 4
      %v357 = vor.u32 %v356, %v352
      %v358 = vrot.slane %v357, 4
      %v360 = vshll.u32 %v185, 16
      %v362 = vrot.slane %v360, 5
      %v363 = vsel %vm243, %v358, %v362
      %v365 = vshrl.u32 %v186, 16
      %v367 = vrot.slane %v365, 4
      %v368 = vshll.u32 %v186, 16
      %v370 = vrot.slane %v368, 5
      %v371 = vor.u32 %v367, %v370
      %v372 = vrot.slane %v371, 4
      %v374 = vshll.u32 %v187, 16
      %v376 = vrot.slane %v374, 5
      %v377 = vsel %vm243, %v372, %v376
      %v378 = vshrl.u32 %v187, 16
      %v380 = vrot.slane %v378, 4
      %v381 = vor.u32 %v380, %v376
      %v382 = vrot.slane %v381, 4
      %v384 = vshll.u32 %v188, 16
      %v386 = vrot.slane %v384, 5
      %v387 = vsel %vm243, %v382, %v386
      %v389 = vshrl.u32 %v189, 16
      %v391 = vrot.slane %v389, 4
      %v392 = vshll.u32 %v189, 16
      %v394 = vrot.slane %v392, 5
      %v395 = vor.u32 %v391, %v394
      %v396 = vrot.slane %v395, 4
      %v398 = vshll.u32 %v190, 16
      %v400 = vrot.slane %v398, 5
      %v401 = vsel %vm243, %v396, %v400
      %v402 = vshrl.u32 %v190, 16
      %v404 = vrot.slane %v402, 4
      %v405 = vor.u32 %v404, %v400
      %v406 = vrot.slane %v405, 4
      %v408 = vshll.u32 %v191, 16
      %v410 = vrot.slane %v408, 5
      %v411 = vsel %vm243, %v406, %v410
      %v413 = vshrl.u32 %v192, 16
      %v415 = vrot.slane %v413, 4
      %v416 = vshll.u32 %v192, 16
      %v418 = vrot.slane %v416, 5
      %v419 = vor.u32 %v415, %v418
      %v420 = vrot.slane %v419, 4
      %v422 = vshll.u32 %v193, 16
      %v424 = vrot.slane %v422, 5
      %v425 = vsel %vm243, %v420, %v424
      %v426 = vshrl.u32 %v193, 16
      %v428 = vrot.slane %v426, 4
      %v429 = vor.u32 %v428, %v424
      %v430 = vrot.slane %v429, 4
      %v432 = vshll.u32 %v194, 16
      %v434 = vrot.slane %v432, 5
      %v435 = vsel %vm243, %v430, %v434
      %v437 = vshrl.u32 %v195, 16
      %v439 = vrot.slane %v437, 4
      %v440 = vshll.u32 %v195, 16
      %v442 = vrot.slane %v440, 5
      %v443 = vor.u32 %v439, %v442
      %v444 = vrot.slane %v443, 4
      %v446 = vshll.u32 %v196, 16
      %v448 = vrot.slane %v446, 5
      %v449 = vsel %vm243, %v444, %v448
      %v450 = vshrl.u32 %v196, 16
      %v452 = vrot.slane %v450, 4
      %v453 = vor.u32 %v452, %v448
      %v454 = vrot.slane %v453, 4
      %v456 = vshll.u32 %v197, 16
      %v458 = vrot.slane %v456, 5
      %v459 = vsel %vm243, %v454, %v458
      %v461 = vshrl.u32 %v198, 16
      %v463 = vrot.slane %v461, 4
      %v464 = vshll.u32 %v198, 16
      %v466 = vrot.slane %v464, 5
      %v467 = vor.u32 %v463, %v466
      %v468 = vrot.slane %v467, 4
      %v470 = vshll.u32 %v199, 16
      %v472 = vrot.slane %v470, 5
      %v473 = vsel %vm243, %v468, %v472
      %v474 = vshrl.u32 %v199, 16
      %v476 = vrot.slane %v474, 4
      %v477 = vor.u32 %v476, %v472
      %v478 = vrot.slane %v477, 4
      %v480 = vshll.u32 %v200, 16
      %v482 = vrot.slane %v480, 5
      %v483 = vsel %vm243, %v478, %v482
      %v485 = vshrl.u32 %v201, 16
      %v487 = vrot.slane %v485, 4
      %v488 = vshll.u32 %v201, 16
      %v490 = vrot.slane %v488, 5
      %v491 = vor.u32 %v487, %v490
      %v492 = vrot.slane %v491, 4
      %v494 = vshll.u32 %v202, 16
      %v496 = vrot.slane %v494, 5
      %v497 = vsel %vm243, %v492, %v496
      %v498 = vshrl.u32 %v202, 16
      %v500 = vrot.slane %v498, 4
      %v501 = vor.u32 %v500, %v496
      %v502 = vrot.slane %v501, 4
      %v504 = vshll.u32 %v203, 16
      %v506 = vrot.slane %v504, 5
      %v507 = vsel %vm243, %v502, %v506
      %v509 = vshrl.u32 %v204, 16
      %v511 = vrot.slane %v509, 4
      %v512 = vshll.u32 %v204, 16
      %v514 = vrot.slane %v512, 5
      %v515 = vor.u32 %v511, %v514
      %v516 = vrot.slane %v515, 4
      %v518 = vshll.u32 %v205, 16
      %v520 = vrot.slane %v518, 5
      %v521 = vsel %vm243, %v516, %v520
      %v522 = vshrl.u32 %v205, 16
      %v524 = vrot.slane %v522, 4
      %v525 = vor.u32 %v524, %v520
      %v526 = vrot.slane %v525, 4
      %v528 = vshll.u32 %v206, 16
      %v530 = vrot.slane %v528, 5
      %v531 = vsel %vm243, %v526, %v530
      %v533 = vshrl.u32 %v207, 16
      %v535 = vrot.slane %v533, 4
      %v536 = vshll.u32 %v207, 16
      %v538 = vrot.slane %v536, 5
      %v539 = vor.u32 %v535, %v538
      %v540 = vrot.slane %v539, 4
      %v542 = vshll.u32 %v208, 16
      %v544 = vrot.slane %v542, 5
      %v545 = vsel %vm243, %v540, %v544
      %v546 = vshrl.u32 %v208, 16
      %v548 = vrot.slane %v546, 4
      %v549 = vor.u32 %v548, %v544
      %v550 = vrot.slane %v549, 4
      %v552 = vshll.u32 %v209, 16
      %v554 = vrot.slane %v552, 5
      %v555 = vsel %vm243, %v550, %v554
      %v557 = vshrl.u32 %v210, 16
      %v559 = vrot.slane %v557, 4
      %v560 = vshll.u32 %v210, 16
      %v562 = vrot.slane %v560, 5
      %v563 = vor.u32 %v559, %v562
      %v564 = vrot.slane %v563, 4
      %v566 = vshll.u32 %v211, 16
      %v568 = vrot.slane %v566, 5
      %v569 = vsel %vm243, %v564, %v568
      %v570 = vshrl.u32 %v211, 16
      %v572 = vrot.slane %v570, 4
      %v573 = vor.u32 %v572, %v568
      %v574 = vrot.slane %v573, 4
      %v576 = vshll.u32 %v212, 16
      %v578 = vrot.slane %v576, 5
      %v579 = vsel %vm243, %v574, %v578
      %v581 = vshrl.u32 %v213, 16
      %v583 = vrot.slane %v581, 4
      %v584 = vshll.u32 %v213, 16
      %v586 = vrot.slane %v584, 5
      %v587 = vor.u32 %v583, %v586
      %v588 = vrot.slane %v587, 4
      %v590 = vshll.u32 %v214, 16
      %v592 = vrot.slane %v590, 5
      %v593 = vsel %vm243, %v588, %v592
      %v594 = vshrl.u32 %v214, 16
      %v596 = vrot.slane %v594, 4
      %v597 = vor.u32 %v596, %v592
      %v598 = vrot.slane %v597, 4
      %v600 = vshll.u32 %v215, 16
      %v602 = vrot.slane %v600, 5
      %v603 = vsel %vm243, %v598, %v602
      %v605 = vshrl.u32 %v216, 16
      %v607 = vrot.slane %v605, 4
      %v608 = vshll.u32 %v216, 16
      %v610 = vrot.slane %v608, 5
      %v611 = vor.u32 %v607, %v610
      %v612 = vrot.slane %v611, 4
      %v614 = vshll.u32 %v217, 16
      %v616 = vrot.slane %v614, 5
      %v617 = vsel %vm243, %v612, %v616
      %v618 = vshrl.u32 %v217, 16
      %v620 = vrot.slane %v618, 4
      %v621 = vor.u32 %v620, %v616
      %v622 = vrot.slane %v621, 4
      %v624 = vshll.u32 %v218, 16
      %v626 = vrot.slane %v624, 5
      %v627 = vsel %vm243, %v622, %v626
      %s628 = scalar_lea.vmem %s1, 64
      %v629 = vld [vmem:[%s628] sm:$0xf]
      %v630 = vld [vmem:[%s628 + $0x4] sm:$0xf]
      %v631 = vld [vmem:[%s628 + $0x8] sm:$0xf]
      %v632 = vld [vmem:[%s628 + $0xc] sm:$0xf]
      %v633 = vld [vmem:[%s628 + $0x10] sm:$0xf]
      %v634 = vld [vmem:[%s628 + $0x14] sm:$0xf]
      %v635 = vld [vmem:[%s628 + $0x18] sm:$0xf]
      %v636 = vld [vmem:[%s628 + $0x1c] sm:$0xf]
      %v637 = vld [vmem:[%s628 + $0x20] sm:$0xf]
      %v638 = vld [vmem:[%s628 + $0x24] sm:$0xf]
      %v639 = vld [vmem:[%s628 + $0x28] sm:$0xf]
      %v640 = vld [vmem:[%s628 + $0x2c] sm:$0xf]
      %v641 = vld [vmem:[%s628 + $0x30] sm:$0xf]
      %v642 = vld [vmem:[%s628 + $0x34] sm:$0xf]
      %v643 = vld [vmem:[%s628 + $0x38] sm:$0xf]
      %v644 = vld [vmem:[%s628 + $0x3c] sm:$0xf]
      %v645 = vunpack.c.l.b16 %v257
      %v646 = vunpack.c.l.b16 %v267
      %v647 = vunpack.c.l.b16 %v281
      %v648 = vunpack.c.l.b16 %v291
      %v649 = vunpack.c.l.b16 %v305
      %v650 = vunpack.c.l.b16 %v315
      %v651 = vunpack.c.l.b16 %v329
      %v652 = vunpack.c.l.b16 %v339
      %v653 = vunpack.c.l.b16 %v353
      %v654 = vunpack.c.l.b16 %v363
      %v655 = vunpack.c.l.b16 %v377
      %v656 = vunpack.c.l.b16 %v387
      %v657 = vunpack.c.l.b16 %v401
      %v658 = vunpack.c.l.b16 %v411
      %v659 = vunpack.c.l.b16 %v425
      %v660 = vunpack.c.l.b16 %v435
      %v661 = vunpack.c.l.b16 %v449
      %v662 = vunpack.c.l.b16 %v459
      %v663 = vunpack.c.l.b16 %v473
      %v664 = vunpack.c.l.b16 %v483
      %v665 = vunpack.c.l.b16 %v497
      %v666 = vunpack.c.l.b16 %v507
      %v667 = vunpack.c.l.b16 %v521
      %v668 = vunpack.c.l.b16 %v531
      %v669 = vunpack.c.l.b16 %v545
      %v670 = vunpack.c.l.b16 %v555
      %v671 = vunpack.c.l.b16 %v569
      %v672 = vunpack.c.l.b16 %v579
      %v673 = vunpack.c.l.b16 %v593
      %v674 = vunpack.c.l.b16 %v603
      %v675 = vunpack.c.l.b16 %v617
      %v676 = vunpack.c.l.b16 %v627
      %v677 = vpack.c.b16 %v646, %v645
      %v678 = vpack.c.b16 %v648, %v647
      %v679 = vpack.c.b16 %v650, %v649
      %v680 = vpack.c.b16 %v652, %v651
      %v681 = vpack.c.b16 %v654, %v653
      %v682 = vpack.c.b16 %v656, %v655
      %v683 = vpack.c.b16 %v658, %v657
      %v684 = vpack.c.b16 %v660, %v659
      %v685 = vpack.c.b16 %v662, %v661
      %v686 = vpack.c.b16 %v664, %v663
      %v687 = vpack.c.b16 %v666, %v665
      %v688 = vpack.c.b16 %v668, %v667
      %v689 = vpack.c.b16 %v670, %v669
      %v690 = vpack.c.b16 %v672, %v671
      %v691 = vpack.c.b16 %v674, %v673
      %v692 = vpack.c.b16 %v676, %v675
      %v725 = vunpack.c.l.b16 %v629
      %v726 = vunpack.c.l.b16 %v630
      %v727 = vunpack.c.l.b16 %v631
      %v728 = vunpack.c.l.b16 %v632
      %v729 = vunpack.c.l.b16 %v633
      %v730 = vunpack.c.l.b16 %v634
      %v731 = vunpack.c.l.b16 %v635
      %v732 = vunpack.c.l.b16 %v636
      %v733 = vunpack.c.l.b16 %v637
      %v734 = vunpack.c.l.b16 %v638
      %v735 = vunpack.c.l.b16 %v639
      %v736 = vunpack.c.l.b16 %v640
      %v737 = vunpack.c.l.b16 %v641
      %v738 = vunpack.c.l.b16 %v642
      %v739 = vunpack.c.l.b16 %v643
      %v740 = vunpack.c.l.b16 %v644
      %v741 = vpack.c.b16 %v726, %v725
      %v742 = vpack.c.b16 %v728, %v727
      %v743 = vpack.c.b16 %v730, %v729
      %v744 = vpack.c.b16 %v732, %v731
      %v745 = vpack.c.b16 %v734, %v733
      %v746 = vpack.c.b16 %v736, %v735
      %v747 = vpack.c.b16 %v738, %v737
      %v748 = vpack.c.b16 %v740, %v739
      %757 = vmatpush.bf16.msra.mxu0 %v748
      %758 = vmatpush.bf16.msra.mxu0 %v747
      %759 = vmatpush.bf16.msra.mxu0 %v746
      %760 = vmatpush.bf16.msra.mxu0 %v745
      %761 = vmatpush.bf16.msra.mxu0 %v744
      %762 = vmatpush.bf16.msra.mxu0 %v743
      %763 = vmatpush.bf16.msra.mxu0 %v742
      %764 = vmatpush.bf16.msra.mxu0 %v741
      %765 = vmatmul.bf16.gmra.mxu0 %v677
      %v766 = vpop.f32.mrf.mxu0
      %v767 = vadd.f32 0.0, %v766
      %v768 = vpop.f32.mrf.mxu0
      %v769 = vadd.f32 0.0, %v768
      %770 = vmatmul.bf16.gmra.mxu0 %v678
      %v771 = vpop.f32.mrf.mxu0
      %v772 = vadd.f32 0.0, %v771
      %v773 = vpop.f32.mrf.mxu0
      %v774 = vadd.f32 0.0, %v773
      %775 = vmatmul.bf16.gmra.mxu0 %v679
      %v776 = vpop.f32.mrf.mxu0
      %v777 = vadd.f32 0.0, %v776
      %v778 = vpop.f32.mrf.mxu0
      %v779 = vadd.f32 0.0, %v778
      %780 = vmatmul.bf16.gmra.mxu0 %v680
      %v781 = vpop.f32.mrf.mxu0
      %v782 = vadd.f32 0.0, %v781
      %v783 = vpop.f32.mrf.mxu0
      %v784 = vadd.f32 0.0, %v783
      %785 = vmatmul.bf16.gmra.mxu0 %v681
      %v786 = vpop.f32.mrf.mxu0
      %v787 = vadd.f32 0.0, %v786
      %v788 = vpop.f32.mrf.mxu0
      %v789 = vadd.f32 0.0, %v788
      %790 = vmatmul.bf16.gmra.mxu0 %v682
      %v791 = vpop.f32.mrf.mxu0
      %v792 = vadd.f32 0.0, %v791
      %v793 = vpop.f32.mrf.mxu0
      %v794 = vadd.f32 0.0, %v793
      %795 = vmatmul.bf16.gmra.mxu0 %v683
      %v796 = vpop.f32.mrf.mxu0
      %v797 = vadd.f32 0.0, %v796
      %v798 = vpop.f32.mrf.mxu0
      %v799 = vadd.f32 0.0, %v798
      %800 = vmatmul.bf16.gmra.mxu0 %v684
      %v801 = vpop.f32.mrf.mxu0
      %v802 = vadd.f32 0.0, %v801
      %v803 = vpop.f32.mrf.mxu0
      %v804 = vadd.f32 0.0, %v803
      %805 = vmatmul.bf16.gmra.mxu0 %v685
      %v806 = vpop.f32.mrf.mxu0
      %v807 = vadd.f32 0.0, %v806
      %v808 = vpop.f32.mrf.mxu0
      %v809 = vadd.f32 0.0, %v808
      %810 = vmatmul.bf16.gmra.mxu0 %v686
      %v811 = vpop.f32.mrf.mxu0
      %v812 = vadd.f32 0.0, %v811
      %v813 = vpop.f32.mrf.mxu0
      %v814 = vadd.f32 0.0, %v813
      %815 = vmatmul.bf16.gmra.mxu0 %v687
      %v816 = vpop.f32.mrf.mxu0
      %v817 = vadd.f32 0.0, %v816
      %v818 = vpop.f32.mrf.mxu0
      %v819 = vadd.f32 0.0, %v818
      %820 = vmatmul.bf16.gmra.mxu0 %v688
      %v821 = vpop.f32.mrf.mxu0
      %v822 = vadd.f32 0.0, %v821
      %v823 = vpop.f32.mrf.mxu0
      %v824 = vadd.f32 0.0, %v823
      %825 = vmatmul.bf16.gmra.mxu0 %v689
      %v826 = vpop.f32.mrf.mxu0
      %v827 = vadd.f32 0.0, %v826
      %v828 = vpop.f32.mrf.mxu0
      %v829 = vadd.f32 0.0, %v828
      %830 = vmatmul.bf16.gmra.mxu0 %v690
      %v831 = vpop.f32.mrf.mxu0
      %v832 = vadd.f32 0.0, %v831
      %v833 = vpop.f32.mrf.mxu0
      %v834 = vadd.f32 0.0, %v833
      %835 = vmatmul.bf16.gmra.mxu0 %v691
      %v836 = vpop.f32.mrf.mxu0
      %v837 = vadd.f32 0.0, %v836
      %v838 = vpop.f32.mrf.mxu0
      %v839 = vadd.f32 0.0, %v838
      %840 = vmatmul.bf16.gmra.mxu0 %v692
      %v841 = vpop.f32.mrf.mxu0
      %v842 = vadd.f32 0.0, %v841
      %v843 = vpop.f32.mrf.mxu0
      %v844 = vadd.f32 0.0, %v843
      %845 = vdwg.mxu0
      %v878 = vunpack.c.l.b16 %v171
      %v879 = vunpack.c.l.b16 %v172
      %v880 = vunpack.c.l.b16 %v174
      %v881 = vunpack.c.l.b16 %v175
      %v882 = vunpack.c.l.b16 %v177
      %v883 = vunpack.c.l.b16 %v178
      %v884 = vunpack.c.l.b16 %v180
      %v885 = vunpack.c.l.b16 %v181
      %v886 = vunpack.c.l.b16 %v183
      %v887 = vunpack.c.l.b16 %v184
      %v888 = vunpack.c.l.b16 %v186
      %v889 = vunpack.c.l.b16 %v187
      %v890 = vunpack.c.l.b16 %v189
      %v891 = vunpack.c.l.b16 %v190
      %v892 = vunpack.c.l.b16 %v192
      %v893 = vunpack.c.l.b16 %v193
      %v894 = vunpack.c.l.b16 %v195
      %v895 = vunpack.c.l.b16 %v196
      %v896 = vunpack.c.l.b16 %v198
      %v897 = vunpack.c.l.b16 %v199
      %v898 = vunpack.c.l.b16 %v201
      %v899 = vunpack.c.l.b16 %v202
      %v900 = vunpack.c.l.b16 %v204
      %v901 = vunpack.c.l.b16 %v205
      %v902 = vunpack.c.l.b16 %v207
      %v903 = vunpack.c.l.b16 %v208
      %v904 = vunpack.c.l.b16 %v210
      %v905 = vunpack.c.l.b16 %v211
      %v906 = vunpack.c.l.b16 %v213
      %v907 = vunpack.c.l.b16 %v214
      %v908 = vunpack.c.l.b16 %v216
      %v909 = vunpack.c.l.b16 %v217
      %v910 = vpack.c.b16 %v879, %v878
      %v911 = vpack.c.b16 %v881, %v880
      %v912 = vpack.c.b16 %v883, %v882
      %v913 = vpack.c.b16 %v885, %v884
      %v914 = vpack.c.b16 %v887, %v886
      %v915 = vpack.c.b16 %v889, %v888
      %v916 = vpack.c.b16 %v891, %v890
      %v917 = vpack.c.b16 %v893, %v892
      %v918 = vpack.c.b16 %v895, %v894
      %v919 = vpack.c.b16 %v897, %v896
      %v920 = vpack.c.b16 %v899, %v898
      %v921 = vpack.c.b16 %v901, %v900
      %v922 = vpack.c.b16 %v903, %v902
      %v923 = vpack.c.b16 %v905, %v904
      %v924 = vpack.c.b16 %v907, %v906
      %v925 = vpack.c.b16 %v909, %v908
      %v958 = vunpack.c.l.b16 %v225
      %v959 = vunpack.c.l.b16 %v226
      %v960 = vunpack.c.l.b16 %v227
      %v961 = vunpack.c.l.b16 %v228
      %v962 = vunpack.c.l.b16 %v229
      %v963 = vunpack.c.l.b16 %v230
      %v964 = vunpack.c.l.b16 %v231
      %v965 = vunpack.c.l.b16 %v232
      %v966 = vunpack.c.l.b16 %v233
      %v967 = vunpack.c.l.b16 %v234
      %v968 = vunpack.c.l.b16 %v235
      %v969 = vunpack.c.l.b16 %v236
      %v970 = vunpack.c.l.b16 %v237
      %v971 = vunpack.c.l.b16 %v238
      %v972 = vunpack.c.l.b16 %v239
      %v973 = vunpack.c.l.b16 %v240
      %v974 = vpack.c.b16 %v959, %v958
      %v975 = vpack.c.b16 %v961, %v960
      %v976 = vpack.c.b16 %v963, %v962
      %v977 = vpack.c.b16 %v965, %v964
      %v978 = vpack.c.b16 %v967, %v966
      %v979 = vpack.c.b16 %v969, %v968
      %v980 = vpack.c.b16 %v971, %v970
      %v981 = vpack.c.b16 %v973, %v972
      %990 = vmatpush.bf16.msra.mxu0 %v981
      %991 = vmatpush.bf16.msra.mxu0 %v980
      %992 = vmatpush.bf16.msra.mxu0 %v979
      %993 = vmatpush.bf16.msra.mxu0 %v978
      %994 = vmatpush.bf16.msra.mxu0 %v977
      %995 = vmatpush.bf16.msra.mxu0 %v976
      %996 = vmatpush.bf16.msra.mxu0 %v975
      %997 = vmatpush.bf16.msra.mxu0 %v974
      %998 = vmatmul.bf16.gmra.mxu0 %v910
      %v999 = vpop.f32.mrf.mxu0
      %v1000 = vadd.f32 %v767, %v999
      %v1001 = vpop.f32.mrf.mxu0
      %v1002 = vadd.f32 %v769, %v1001
      %1003 = vmatmul.bf16.gmra.mxu0 %v911
      %v1004 = vpop.f32.mrf.mxu0
      %v1005 = vadd.f32 %v772, %v1004
      %v1006 = vpop.f32.mrf.mxu0
      %v1007 = vadd.f32 %v774, %v1006
      %1008 = vmatmul.bf16.gmra.mxu0 %v912
      %v1009 = vpop.f32.mrf.mxu0
      %v1010 = vadd.f32 %v777, %v1009
      %v1011 = vpop.f32.mrf.mxu0
      %v1012 = vadd.f32 %v779, %v1011
      %1013 = vmatmul.bf16.gmra.mxu0 %v913
      %v1014 = vpop.f32.mrf.mxu0
      %v1015 = vadd.f32 %v782, %v1014
      %v1016 = vpop.f32.mrf.mxu0
      %v1017 = vadd.f32 %v784, %v1016
      %1018 = vmatmul.bf16.gmra.mxu0 %v914
      %v1019 = vpop.f32.mrf.mxu0
      %v1020 = vadd.f32 %v787, %v1019
      %v1021 = vpop.f32.mrf.mxu0
      %v1022 = vadd.f32 %v789, %v1021
      %1023 = vmatmul.bf16.gmra.mxu0 %v915
      %v1024 = vpop.f32.mrf.mxu0
      %v1025 = vadd.f32 %v792, %v1024
      %v1026 = vpop.f32.mrf.mxu0
      %v1027 = vadd.f32 %v794, %v1026
      %1028 = vmatmul.bf16.gmra.mxu0 %v916
      %v1029 = vpop.f32.mrf.mxu0
      %v1030 = vadd.f32 %v797, %v1029
      %v1031 = vpop.f32.mrf.mxu0
      %v1032 = vadd.f32 %v799, %v1031
      %1033 = vmatmul.bf16.gmra.mxu0 %v917
      %v1034 = vpop.f32.mrf.mxu0
      %v1035 = vadd.f32 %v802, %v1034
      %v1036 = vpop.f32.mrf.mxu0
      %v1037 = vadd.f32 %v804, %v1036
      %1038 = vmatmul.bf16.gmra.mxu0 %v918
      %v1039 = vpop.f32.mrf.mxu0
      %v1040 = vadd.f32 %v807, %v1039
      %v1041 = vpop.f32.mrf.mxu0
      %v1042 = vadd.f32 %v809, %v1041
      %1043 = vmatmul.bf16.gmra.mxu0 %v919
      %v1044 = vpop.f32.mrf.mxu0
      %v1045 = vadd.f32 %v812, %v1044
      %v1046 = vpop.f32.mrf.mxu0
      %v1047 = vadd.f32 %v814, %v1046
      %1048 = vmatmul.bf16.gmra.mxu0 %v920
      %v1049 = vpop.f32.mrf.mxu0
      %v1050 = vadd.f32 %v817, %v1049
      %v1051 = vpop.f32.mrf.mxu0
      %v1052 = vadd.f32 %v819, %v1051
      %1053 = vmatmul.bf16.gmra.mxu0 %v921
      %v1054 = vpop.f32.mrf.mxu0
      %v1055 = vadd.f32 %v822, %v1054
      %v1056 = vpop.f32.mrf.mxu0
      %v1057 = vadd.f32 %v824, %v1056
      %1058 = vmatmul.bf16.gmra.mxu0 %v922
      %v1059 = vpop.f32.mrf.mxu0
      %v1060 = vadd.f32 %v827, %v1059
      %v1061 = vpop.f32.mrf.mxu0
      %v1062 = vadd.f32 %v829, %v1061
      %1063 = vmatmul.bf16.gmra.mxu0 %v923
      %v1064 = vpop.f32.mrf.mxu0
      %v1065 = vadd.f32 %v832, %v1064
      %v1066 = vpop.f32.mrf.mxu0
      %v1067 = vadd.f32 %v834, %v1066
      %1068 = vmatmul.bf16.gmra.mxu0 %v924
      %v1069 = vpop.f32.mrf.mxu0
      %v1070 = vadd.f32 %v837, %v1069
      %v1071 = vpop.f32.mrf.mxu0
      %v1072 = vadd.f32 %v839, %v1071
      %1073 = vmatmul.bf16.gmra.mxu0 %v925
      %v1074 = vpop.f32.mrf.mxu0
      %v1075 = vadd.f32 %v842, %v1074
      %v1076 = vpop.f32.mrf.mxu0
      %v1077 = vadd.f32 %v844, %v1076
      %1078 = vdwg.mxu0
      %vm1095 = vcmask 1042432
      %vm1096 = vcmask 1046532
      %vm1097 = vmor %vm1095, %vm1096
      %v1098 = vrot.slane %v171, 5
      %v1099 = vrot.slane %v1098, 4
      %v1100 = vrot.slane %v172, 5
      %v1101 = vsel %vm1097, %v1099, %v1100
      %v1102 = vrot.slane %v1100, 4
      %v1103 = vrot.slane %v173, 5
      %v1104 = vsel %vm1097, %v1102, %v1103
      %v1105 = vrot.slane %v174, 5
      %v1106 = vrot.slane %v1105, 4
      %v1107 = vrot.slane %v175, 5
      %v1108 = vsel %vm1097, %v1106, %v1107
      %v1109 = vrot.slane %v1107, 4
      %v1110 = vrot.slane %v176, 5
      %v1111 = vsel %vm1097, %v1109, %v1110
      %v1112 = vrot.slane %v177, 5
      %v1113 = vrot.slane %v1112, 4
      %v1114 = vrot.slane %v178, 5
      %v1115 = vsel %vm1097, %v1113, %v1114
      %v1116 = vrot.slane %v1114, 4
      %v1117 = vrot.slane %v179, 5
      %v1118 = vsel %vm1097, %v1116, %v1117
      %v1119 = vrot.slane %v180, 5
      %v1120 = vrot.slane %v1119, 4
      %v1121 = vrot.slane %v181, 5
      %v1122 = vsel %vm1097, %v1120, %v1121
      %v1123 = vrot.slane %v1121, 4
      %v1124 = vrot.slane %v182, 5
      %v1125 = vsel %vm1097, %v1123, %v1124
      %v1126 = vrot.slane %v183, 5
      %v1127 = vrot.slane %v1126, 4
      %v1128 = vrot.slane %v184, 5
      %v1129 = vsel %vm1097, %v1127, %v1128
      %v1130 = vrot.slane %v1128, 4
      %v1131 = vrot.slane %v185, 5
      %v1132 = vsel %vm1097, %v1130, %v1131
      %v1133 = vrot.slane %v186, 5
      %v1134 = vrot.slane %v1133, 4
      %v1135 = vrot.slane %v187, 5
      %v1136 = vsel %vm1097, %v1134, %v1135
      %v1137 = vrot.slane %v1135, 4
      %v1138 = vrot.slane %v188, 5
      %v1139 = vsel %vm1097, %v1137, %v1138
      %v1140 = vrot.slane %v189, 5
      %v1141 = vrot.slane %v1140, 4
      %v1142 = vrot.slane %v190, 5
      %v1143 = vsel %vm1097, %v1141, %v1142
      %v1144 = vrot.slane %v1142, 4
      %v1145 = vrot.slane %v191, 5
      %v1146 = vsel %vm1097, %v1144, %v1145
      %v1147 = vrot.slane %v192, 5
      %v1148 = vrot.slane %v1147, 4
      %v1149 = vrot.slane %v193, 5
      %v1150 = vsel %vm1097, %v1148, %v1149
      %v1151 = vrot.slane %v1149, 4
      %v1152 = vrot.slane %v194, 5
      %v1153 = vsel %vm1097, %v1151, %v1152
      %v1154 = vrot.slane %v195, 5
      %v1155 = vrot.slane %v1154, 4
      %v1156 = vrot.slane %v196, 5
      %v1157 = vsel %vm1097, %v1155, %v1156
      %v1158 = vrot.slane %v1156, 4
      %v1159 = vrot.slane %v197, 5
      %v1160 = vsel %vm1097, %v1158, %v1159
      %v1161 = vrot.slane %v198, 5
      %v1162 = vrot.slane %v1161, 4
      %v1163 = vrot.slane %v199, 5
      %v1164 = vsel %vm1097, %v1162, %v1163
      %v1165 = vrot.slane %v1163, 4
      %v1166 = vrot.slane %v200, 5
      %v1167 = vsel %vm1097, %v1165, %v1166
      %v1168 = vrot.slane %v201, 5
      %v1169 = vrot.slane %v1168, 4
      %v1170 = vrot.slane %v202, 5
      %v1171 = vsel %vm1097, %v1169, %v1170
      %v1172 = vrot.slane %v1170, 4
      %v1173 = vrot.slane %v203, 5
      %v1174 = vsel %vm1097, %v1172, %v1173
      %v1175 = vrot.slane %v204, 5
      %v1176 = vrot.slane %v1175, 4
      %v1177 = vrot.slane %v205, 5
      %v1178 = vsel %vm1097, %v1176, %v1177
      %v1179 = vrot.slane %v1177, 4
      %v1180 = vrot.slane %v206, 5
      %v1181 = vsel %vm1097, %v1179, %v1180
      %v1182 = vrot.slane %v207, 5
      %v1183 = vrot.slane %v1182, 4
      %v1184 = vrot.slane %v208, 5
      %v1185 = vsel %vm1097, %v1183, %v1184
      %v1186 = vrot.slane %v1184, 4
      %v1187 = vrot.slane %v209, 5
      %v1188 = vsel %vm1097, %v1186, %v1187
      %v1189 = vrot.slane %v210, 5
      %v1190 = vrot.slane %v1189, 4
      %v1191 = vrot.slane %v211, 5
      %v1192 = vsel %vm1097, %v1190, %v1191
      %v1193 = vrot.slane %v1191, 4
      %v1194 = vrot.slane %v212, 5
      %v1195 = vsel %vm1097, %v1193, %v1194
      %v1196 = vrot.slane %v213, 5
      %v1197 = vrot.slane %v1196, 4
      %v1198 = vrot.slane %v214, 5
      %v1199 = vsel %vm1097, %v1197, %v1198
      %v1200 = vrot.slane %v1198, 4
      %v1201 = vrot.slane %v215, 5
      %v1202 = vsel %vm1097, %v1200, %v1201
      %v1203 = vrot.slane %v216, 5
      %v1204 = vrot.slane %v1203, 4
      %v1205 = vrot.slane %v217, 5
      %v1206 = vsel %vm1097, %v1204, %v1205
      %v1207 = vrot.slane %v1205, 4
      %v1208 = vrot.slane %v218, 5
      %v1209 = vsel %vm1097, %v1207, %v1208
      %s1210 = scalar_lea.vmem %s1, 128
      %v1211 = vld [vmem:[%s1210] sm:$0xf]
      %v1212 = vld [vmem:[%s1210 + $0x4] sm:$0xf]
      %v1213 = vld [vmem:[%s1210 + $0x8] sm:$0xf]
      %v1214 = vld [vmem:[%s1210 + $0xc] sm:$0xf]
      %v1215 = vld [vmem:[%s1210 + $0x10] sm:$0xf]
      %v1216 = vld [vmem:[%s1210 + $0x14] sm:$0xf]
      %v1217 = vld [vmem:[%s1210 + $0x18] sm:$0xf]
      %v1218 = vld [vmem:[%s1210 + $0x1c] sm:$0xf]
      %v1219 = vld [vmem:[%s1210 + $0x20] sm:$0xf]
      %v1220 = vld [vmem:[%s1210 + $0x24] sm:$0xf]
      %v1221 = vld [vmem:[%s1210 + $0x28] sm:$0xf]
      %v1222 = vld [vmem:[%s1210 + $0x2c] sm:$0xf]
      %v1223 = vld [vmem:[%s1210 + $0x30] sm:$0xf]
      %v1224 = vld [vmem:[%s1210 + $0x34] sm:$0xf]
      %v1225 = vld [vmem:[%s1210 + $0x38] sm:$0xf]
      %v1226 = vld [vmem:[%s1210 + $0x3c] sm:$0xf]
      %v1227 = vunpack.c.l.b16 %v1101
      %v1228 = vunpack.c.l.b16 %v1104
      %v1229 = vunpack.c.l.b16 %v1108
      %v1230 = vunpack.c.l.b16 %v1111
      %v1231 = vunpack.c.l.b16 %v1115
      %v1232 = vunpack.c.l.b16 %v1118
      %v1233 = vunpack.c.l.b16 %v1122
      %v1234 = vunpack.c.l.b16 %v1125
      %v1235 = vunpack.c.l.b16 %v1129
      %v1236 = vunpack.c.l.b16 %v1132
      %v1237 = vunpack.c.l.b16 %v1136
      %v1238 = vunpack.c.l.b16 %v1139
      %v1239 = vunpack.c.l.b16 %v1143
      %v1240 = vunpack.c.l.b16 %v1146
      %v1241 = vunpack.c.l.b16 %v1150
      %v1242 = vunpack.c.l.b16 %v1153
      %v1243 = vunpack.c.l.b16 %v1157
      %v1244 = vunpack.c.l.b16 %v1160
      %v1245 = vunpack.c.l.b16 %v1164
      %v1246 = vunpack.c.l.b16 %v1167
      %v1247 = vunpack.c.l.b16 %v1171
      %v1248 = vunpack.c.l.b16 %v1174
      %v1249 = vunpack.c.l.b16 %v1178
      %v1250 = vunpack.c.l.b16 %v1181
      %v1251 = vunpack.c.l.b16 %v1185
      %v1252 = vunpack.c.l.b16 %v1188
      %v1253 = vunpack.c.l.b16 %v1192
      %v1254 = vunpack.c.l.b16 %v1195
      %v1255 = vunpack.c.l.b16 %v1199
      %v1256 = vunpack.c.l.b16 %v1202
      %v1257 = vunpack.c.l.b16 %v1206
      %v1258 = vunpack.c.l.b16 %v1209
      %v1259 = vpack.c.b16 %v1228, %v1227
      %v1260 = vpack.c.b16 %v1230, %v1229
      %v1261 = vpack.c.b16 %v1232, %v1231
      %v1262 = vpack.c.b16 %v1234, %v1233
      %v1263 = vpack.c.b16 %v1236, %v1235
      %v1264 = vpack.c.b16 %v1238, %v1237
      %v1265 = vpack.c.b16 %v1240, %v1239
      %v1266 = vpack.c.b16 %v1242, %v1241
      %v1267 = vpack.c.b16 %v1244, %v1243
      %v1268 = vpack.c.b16 %v1246, %v1245
      %v1269 = vpack.c.b16 %v1248, %v1247
      %v1270 = vpack.c.b16 %v1250, %v1249
      %v1271 = vpack.c.b16 %v1252, %v1251
      %v1272 = vpack.c.b16 %v1254, %v1253
      %v1273 = vpack.c.b16 %v1256, %v1255
      %v1274 = vpack.c.b16 %v1258, %v1257
      %v1307 = vunpack.c.l.b16 %v1211
      %v1308 = vunpack.c.l.b16 %v1212
      %v1309 = vunpack.c.l.b16 %v1213
      %v1310 = vunpack.c.l.b16 %v1214
      %v1311 = vunpack.c.l.b16 %v1215
      %v1312 = vunpack.c.l.b16 %v1216
      %v1313 = vunpack.c.l.b16 %v1217
      %v1314 = vunpack.c.l.b16 %v1218
      %v1315 = vunpack.c.l.b16 %v1219
      %v1316 = vunpack.c.l.b16 %v1220
      %v1317 = vunpack.c.l.b16 %v1221
      %v1318 = vunpack.c.l.b16 %v1222
      %v1319 = vunpack.c.l.b16 %v1223
      %v1320 = vunpack.c.l.b16 %v1224
      %v1321 = vunpack.c.l.b16 %v1225
      %v1322 = vunpack.c.l.b16 %v1226
      %v1323 = vpack.c.b16 %v1308, %v1307
      %v1324 = vpack.c.b16 %v1310, %v1309
      %v1325 = vpack.c.b16 %v1312, %v1311
      %v1326 = vpack.c.b16 %v1314, %v1313
      %v1327 = vpack.c.b16 %v1316, %v1315
      %v1328 = vpack.c.b16 %v1318, %v1317
      %v1329 = vpack.c.b16 %v1320, %v1319
      %v1330 = vpack.c.b16 %v1322, %v1321
      %1339 = vmatpush.bf16.msra.mxu0 %v1330
      %1340 = vmatpush.bf16.msra.mxu0 %v1329
      %1341 = vmatpush.bf16.msra.mxu0 %v1328
      %1342 = vmatpush.bf16.msra.mxu0 %v1327
      %1343 = vmatpush.bf16.msra.mxu0 %v1326
      %1344 = vmatpush.bf16.msra.mxu0 %v1325
      %1345 = vmatpush.bf16.msra.mxu0 %v1324
      %1346 = vmatpush.bf16.msra.mxu0 %v1323
      %1347 = vmatmul.bf16.gmra.mxu0 %v1259
      %v1348 = vpop.f32.mrf.mxu0
      %v1349 = vadd.f32 0.0, %v1348
      %v1350 = vpop.f32.mrf.mxu0
      %v1351 = vadd.f32 0.0, %v1350
      %1352 = vmatmul.bf16.gmra.mxu0 %v1260
      %v1353 = vpop.f32.mrf.mxu0
      %v1354 = vadd.f32 0.0, %v1353
      %v1355 = vpop.f32.mrf.mxu0
      %v1356 = vadd.f32 0.0, %v1355
      %1357 = vmatmul.bf16.gmra.mxu0 %v1261
      %v1358 = vpop.f32.mrf.mxu0
      %v1359 = vadd.f32 0.0, %v1358
      %v1360 = vpop.f32.mrf.mxu0
      %v1361 = vadd.f32 0.0, %v1360
      %1362 = vmatmul.bf16.gmra.mxu0 %v1262
      %v1363 = vpop.f32.mrf.mxu0
      %v1364 = vadd.f32 0.0, %v1363
      %v1365 = vpop.f32.mrf.mxu0
      %v1366 = vadd.f32 0.0, %v1365
      %1367 = vmatmul.bf16.gmra.mxu0 %v1263
      %v1368 = vpop.f32.mrf.mxu0
      %v1369 = vadd.f32 0.0, %v1368
      %v1370 = vpop.f32.mrf.mxu0
      %v1371 = vadd.f32 0.0, %v1370
      %1372 = vmatmul.bf16.gmra.mxu0 %v1264
      %v1373 = vpop.f32.mrf.mxu0
      %v1374 = vadd.f32 0.0, %v1373
      %v1375 = vpop.f32.mrf.mxu0
      %v1376 = vadd.f32 0.0, %v1375
      %1377 = vmatmul.bf16.gmra.mxu0 %v1265
      %v1378 = vpop.f32.mrf.mxu0
      %v1379 = vadd.f32 0.0, %v1378
      %v1380 = vpop.f32.mrf.mxu0
      %v1381 = vadd.f32 0.0, %v1380
      %1382 = vmatmul.bf16.gmra.mxu0 %v1266
      %v1383 = vpop.f32.mrf.mxu0
      %v1384 = vadd.f32 0.0, %v1383
      %v1385 = vpop.f32.mrf.mxu0
      %v1386 = vadd.f32 0.0, %v1385
      %1387 = vmatmul.bf16.gmra.mxu0 %v1267
      %v1388 = vpop.f32.mrf.mxu0
      %v1389 = vadd.f32 0.0, %v1388
      %v1390 = vpop.f32.mrf.mxu0
      %v1391 = vadd.f32 0.0, %v1390
      %1392 = vmatmul.bf16.gmra.mxu0 %v1268
      %v1393 = vpop.f32.mrf.mxu0
      %v1394 = vadd.f32 0.0, %v1393
      %v1395 = vpop.f32.mrf.mxu0
      %v1396 = vadd.f32 0.0, %v1395
      %1397 = vmatmul.bf16.gmra.mxu0 %v1269
      %v1398 = vpop.f32.mrf.mxu0
      %v1399 = vadd.f32 0.0, %v1398
      %v1400 = vpop.f32.mrf.mxu0
      %v1401 = vadd.f32 0.0, %v1400
      %1402 = vmatmul.bf16.gmra.mxu0 %v1270
      %v1403 = vpop.f32.mrf.mxu0
      %v1404 = vadd.f32 0.0, %v1403
      %v1405 = vpop.f32.mrf.mxu0
      %v1406 = vadd.f32 0.0, %v1405
      %1407 = vmatmul.bf16.gmra.mxu0 %v1271
      %v1408 = vpop.f32.mrf.mxu0
      %v1409 = vadd.f32 0.0, %v1408
      %v1410 = vpop.f32.mrf.mxu0
      %v1411 = vadd.f32 0.0, %v1410
      %1412 = vmatmul.bf16.gmra.mxu0 %v1272
      %v1413 = vpop.f32.mrf.mxu0
      %v1414 = vadd.f32 0.0, %v1413
      %v1415 = vpop.f32.mrf.mxu0
      %v1416 = vadd.f32 0.0, %v1415
      %1417 = vmatmul.bf16.gmra.mxu0 %v1273
      %v1418 = vpop.f32.mrf.mxu0
      %v1419 = vadd.f32 0.0, %v1418
      %v1420 = vpop.f32.mrf.mxu0
      %v1421 = vadd.f32 0.0, %v1420
      %1422 = vmatmul.bf16.gmra.mxu0 %v1274
      %v1423 = vpop.f32.mrf.mxu0
      %v1424 = vadd.f32 0.0, %v1423
      %v1425 = vpop.f32.mrf.mxu0
      %v1426 = vadd.f32 0.0, %v1425
      %1427 = vdwg.mxu0
      %v1428 = vadd.f32 %v1000, %v1349
      %v1429 = vadd.f32 %v1002, %v1351
      %v1430 = vadd.f32 %v1005, %v1354
      %v1431 = vadd.f32 %v1007, %v1356
      %v1432 = vadd.f32 %v1010, %v1359
      %v1433 = vadd.f32 %v1012, %v1361
      %v1434 = vadd.f32 %v1015, %v1364
      %v1435 = vadd.f32 %v1017, %v1366
      %v1436 = vadd.f32 %v1020, %v1369
      %v1437 = vadd.f32 %v1022, %v1371
      %v1438 = vadd.f32 %v1025, %v1374
      %v1439 = vadd.f32 %v1027, %v1376
      %v1440 = vadd.f32 %v1030, %v1379
      %v1441 = vadd.f32 %v1032, %v1381
      %v1442 = vadd.f32 %v1035, %v1384
      %v1443 = vadd.f32 %v1037, %v1386
      %v1444 = vadd.f32 %v1040, %v1389
      %v1445 = vadd.f32 %v1042, %v1391
      %v1446 = vadd.f32 %v1045, %v1394
      %v1447 = vadd.f32 %v1047, %v1396
      %v1448 = vadd.f32 %v1050, %v1399
      %v1449 = vadd.f32 %v1052, %v1401
      %v1450 = vadd.f32 %v1055, %v1404
      %v1451 = vadd.f32 %v1057, %v1406
      %v1452 = vadd.f32 %v1060, %v1409
      %v1453 = vadd.f32 %v1062, %v1411
      %v1454 = vadd.f32 %v1065, %v1414
      %v1455 = vadd.f32 %v1067, %v1416
      %v1456 = vadd.f32 %v1070, %v1419
      %v1457 = vadd.f32 %v1072, %v1421
      %v1458 = vadd.f32 %v1075, %v1424
      %v1459 = vadd.f32 %v1077, %v1426
      %s1460 = scalar_lea.vmem %s1, 192
      %v1461 = vld [vmem:[%s1460] sm:$0xf]
      %v1462 = vld [vmem:[%s1460 + $0x4] sm:$0xf]
      %v1463 = vld [vmem:[%s1460 + $0x8] sm:$0xf]
      %v1464 = vld [vmem:[%s1460 + $0xc] sm:$0xf]
      %v1465 = vld [vmem:[%s1460 + $0x10] sm:$0xf]
      %v1466 = vld [vmem:[%s1460 + $0x14] sm:$0xf]
      %v1467 = vld [vmem:[%s1460 + $0x18] sm:$0xf]
      %v1468 = vld [vmem:[%s1460 + $0x1c] sm:$0xf]
      %v1469 = vld [vmem:[%s1460 + $0x20] sm:$0xf]
      %v1470 = vld [vmem:[%s1460 + $0x24] sm:$0xf]
      %v1471 = vld [vmem:[%s1460 + $0x28] sm:$0xf]
      %v1472 = vld [vmem:[%s1460 + $0x2c] sm:$0xf]
      %v1473 = vld [vmem:[%s1460 + $0x30] sm:$0xf]
      %v1474 = vld [vmem:[%s1460 + $0x34] sm:$0xf]
      %v1475 = vld [vmem:[%s1460 + $0x38] sm:$0xf]
      %v1476 = vld [vmem:[%s1460 + $0x3c] sm:$0xf]
      %v1479 = vunpack.c.l.b16 %v219
      %v1480 = vunpack.c.l.b16 %v220
      %v1481 = vpack.c.b16 %v1480, %v1479
      %v1499 = vunpack.c.l.b16 %v1461
      %v1500 = vunpack.c.l.b16 %v1462
      %v1501 = vunpack.c.l.b16 %v1463
      %v1502 = vunpack.c.l.b16 %v1464
      %v1503 = vunpack.c.l.b16 %v1465
      %v1504 = vunpack.c.l.b16 %v1466
      %v1505 = vunpack.c.l.b16 %v1467
      %v1506 = vunpack.c.l.b16 %v1468
      %v1507 = vunpack.c.l.b16 %v1469
      %v1508 = vunpack.c.l.b16 %v1470
      %v1509 = vunpack.c.l.b16 %v1471
      %v1510 = vunpack.c.l.b16 %v1472
      %v1511 = vunpack.c.l.b16 %v1473
      %v1512 = vunpack.c.l.b16 %v1474
      %v1513 = vunpack.c.l.b16 %v1475
      %v1514 = vunpack.c.l.b16 %v1476
      %v1515 = vpack.c.b16 %v1500, %v1499
      %v1516 = vpack.c.b16 %v1502, %v1501
      %v1517 = vpack.c.b16 %v1504, %v1503
      %v1518 = vpack.c.b16 %v1506, %v1505
      %v1519 = vpack.c.b16 %v1508, %v1507
      %v1520 = vpack.c.b16 %v1510, %v1509
      %v1521 = vpack.c.b16 %v1512, %v1511
      %v1522 = vpack.c.b16 %v1514, %v1513
      %1531 = vmatpush.bf16.msra.mxu0 %v1522
      %1532 = vmatpush.bf16.msra.mxu0 %v1521
      %1533 = vmatpush.bf16.msra.mxu0 %v1520
      %1534 = vmatpush.bf16.msra.mxu0 %v1519
      %1535 = vmatpush.bf16.msra.mxu0 %v1518
      %1536 = vmatpush.bf16.msra.mxu0 %v1517
      %1537 = vmatpush.bf16.msra.mxu0 %v1516
      %1538 = vmatpush.bf16.msra.mxu0 %v1515
      %1539 = vmatmul.bf16.gmra.mxu0 %v911
      %v1540 = vpop.f32.mrf.mxu0
      %v1541 = vadd.f32 0.0, %v1540
      %v1542 = vpop.f32.mrf.mxu0
      %v1543 = vadd.f32 0.0, %v1542
      %1544 = vmatmul.bf16.gmra.mxu0 %v912
      %v1545 = vpop.f32.mrf.mxu0
      %v1546 = vadd.f32 0.0, %v1545
      %v1547 = vpop.f32.mrf.mxu0
      %v1548 = vadd.f32 0.0, %v1547
      %1549 = vmatmul.bf16.gmra.mxu0 %v913
      %v1550 = vpop.f32.mrf.mxu0
      %v1551 = vadd.f32 0.0, %v1550
      %v1552 = vpop.f32.mrf.mxu0
      %v1553 = vadd.f32 0.0, %v1552
      %1554 = vmatmul.bf16.gmra.mxu0 %v914
      %v1555 = vpop.f32.mrf.mxu0
      %v1556 = vadd.f32 0.0, %v1555
      %v1557 = vpop.f32.mrf.mxu0
      %v1558 = vadd.f32 0.0, %v1557
      %1559 = vmatmul.bf16.gmra.mxu0 %v915
      %v1560 = vpop.f32.mrf.mxu0
      %v1561 = vadd.f32 0.0, %v1560
      %v1562 = vpop.f32.mrf.mxu0
      %v1563 = vadd.f32 0.0, %v1562
      %1564 = vmatmul.bf16.gmra.mxu0 %v916
      %v1565 = vpop.f32.mrf.mxu0
      %v1566 = vadd.f32 0.0, %v1565
      %v1567 = vpop.f32.mrf.mxu0
      %v1568 = vadd.f32 0.0, %v1567
      %1569 = vmatmul.bf16.gmra.mxu0 %v917
      %v1570 = vpop.f32.mrf.mxu0
      %v1571 = vadd.f32 0.0, %v1570
      %v1572 = vpop.f32.mrf.mxu0
      %v1573 = vadd.f32 0.0, %v1572
      %1574 = vmatmul.bf16.gmra.mxu0 %v918
      %v1575 = vpop.f32.mrf.mxu0
      %v1576 = vadd.f32 0.0, %v1575
      %v1577 = vpop.f32.mrf.mxu0
      %v1578 = vadd.f32 0.0, %v1577
      %1579 = vmatmul.bf16.gmra.mxu0 %v919
      %v1580 = vpop.f32.mrf.mxu0
      %v1581 = vadd.f32 0.0, %v1580
      %v1582 = vpop.f32.mrf.mxu0
      %v1583 = vadd.f32 0.0, %v1582
      %1584 = vmatmul.bf16.gmra.mxu0 %v920
      %v1585 = vpop.f32.mrf.mxu0
      %v1586 = vadd.f32 0.0, %v1585
      %v1587 = vpop.f32.mrf.mxu0
      %v1588 = vadd.f32 0.0, %v1587
      %1589 = vmatmul.bf16.gmra.mxu0 %v921
      %v1590 = vpop.f32.mrf.mxu0
      %v1591 = vadd.f32 0.0, %v1590
      %v1592 = vpop.f32.mrf.mxu0
      %v1593 = vadd.f32 0.0, %v1592
      %1594 = vmatmul.bf16.gmra.mxu0 %v922
      %v1595 = vpop.f32.mrf.mxu0
      %v1596 = vadd.f32 0.0, %v1595
      %v1597 = vpop.f32.mrf.mxu0
      %v1598 = vadd.f32 0.0, %v1597
      %1599 = vmatmul.bf16.gmra.mxu0 %v923
      %v1600 = vpop.f32.mrf.mxu0
      %v1601 = vadd.f32 0.0, %v1600
      %v1602 = vpop.f32.mrf.mxu0
      %v1603 = vadd.f32 0.0, %v1602
      %1604 = vmatmul.bf16.gmra.mxu0 %v924
      %v1605 = vpop.f32.mrf.mxu0
      %v1606 = vadd.f32 0.0, %v1605
      %v1607 = vpop.f32.mrf.mxu0
      %v1608 = vadd.f32 0.0, %v1607
      %1609 = vmatmul.bf16.gmra.mxu0 %v925
      %v1610 = vpop.f32.mrf.mxu0
      %v1611 = vadd.f32 0.0, %v1610
      %v1612 = vpop.f32.mrf.mxu0
      %v1613 = vadd.f32 0.0, %v1612
      %1614 = vmatmul.bf16.gmra.mxu0 %v1481
      %v1615 = vpop.f32.mrf.mxu0
      %v1616 = vadd.f32 0.0, %v1615
      %v1617 = vpop.f32.mrf.mxu0
      %v1618 = vadd.f32 0.0, %v1617
      %1619 = vdwg.mxu0
      %v1620 = vadd.f32 %v1428, %v1541
      %v1621 = vadd.f32 %v1429, %v1543
      %v1622 = vadd.f32 %v1430, %v1546
      %v1623 = vadd.f32 %v1431, %v1548
      %v1624 = vadd.f32 %v1432, %v1551
      %v1625 = vadd.f32 %v1433, %v1553
      %v1626 = vadd.f32 %v1434, %v1556
      %v1627 = vadd.f32 %v1435, %v1558
      %v1628 = vadd.f32 %v1436, %v1561
      %v1629 = vadd.f32 %v1437, %v1563
      %v1630 = vadd.f32 %v1438, %v1566
      %v1631 = vadd.f32 %v1439, %v1568
      %v1632 = vadd.f32 %v1440, %v1571
      %v1633 = vadd.f32 %v1441, %v1573
      %v1634 = vadd.f32 %v1442, %v1576
      %v1635 = vadd.f32 %v1443, %v1578
      %v1636 = vadd.f32 %v1444, %v1581
      %v1637 = vadd.f32 %v1445, %v1583
      %v1638 = vadd.f32 %v1446, %v1586
      %v1639 = vadd.f32 %v1447, %v1588
      %v1640 = vadd.f32 %v1448, %v1591
      %v1641 = vadd.f32 %v1449, %v1593
      %v1642 = vadd.f32 %v1450, %v1596
      %v1643 = vadd.f32 %v1451, %v1598
      %v1644 = vadd.f32 %v1452, %v1601
      %v1645 = vadd.f32 %v1453, %v1603
      %v1646 = vadd.f32 %v1454, %v1606
      %v1647 = vadd.f32 %v1455, %v1608
      %v1648 = vadd.f32 %v1456, %v1611
      %v1649 = vadd.f32 %v1457, %v1613
      %v1650 = vadd.f32 %v1458, %v1616
      %v1651 = vadd.f32 %v1459, %v1618
      %v1653 = vshrl.u32 %v219, 16
      %v1655 = vrot.slane %v1653, 4
      %v1656 = vshll.u32 %v219, 16
      %v1658 = vrot.slane %v1656, 5
      %v1659 = vor.u32 %v1655, %v1658
      %v1660 = vrot.slane %v1659, 4
      %v1662 = vshll.u32 %v220, 16
      %v1664 = vrot.slane %v1662, 5
      %v1665 = vsel %vm243, %v1660, %v1664
      %v1666 = vshrl.u32 %v220, 16
      %v1668 = vrot.slane %v1666, 4
      %v1669 = vor.u32 %v1668, %v1664
      %v1670 = vrot.slane %v1669, 4
      %v1672 = vshll.u32 %v221, 16
      %v1674 = vrot.slane %v1672, 5
      %v1675 = vsel %vm243, %v1670, %v1674
      %s1676 = scalar_lea.vmem %s1, 256
      %v1677 = vld [vmem:[%s1676] sm:$0xf]
      %v1678 = vld [vmem:[%s1676 + $0x4] sm:$0xf]
      %v1679 = vld [vmem:[%s1676 + $0x8] sm:$0xf]
      %v1680 = vld [vmem:[%s1676 + $0xc] sm:$0xf]
      %v1681 = vld [vmem:[%s1676 + $0x10] sm:$0xf]
      %v1682 = vld [vmem:[%s1676 + $0x14] sm:$0xf]
      %v1683 = vld [vmem:[%s1676 + $0x18] sm:$0xf]
      %v1684 = vld [vmem:[%s1676 + $0x1c] sm:$0xf]
      %v1685 = vld [vmem:[%s1676 + $0x20] sm:$0xf]
      %v1686 = vld [vmem:[%s1676 + $0x24] sm:$0xf]
      %v1687 = vld [vmem:[%s1676 + $0x28] sm:$0xf]
      %v1688 = vld [vmem:[%s1676 + $0x2c] sm:$0xf]
      %v1689 = vld [vmem:[%s1676 + $0x30] sm:$0xf]
      %v1690 = vld [vmem:[%s1676 + $0x34] sm:$0xf]
      %v1691 = vld [vmem:[%s1676 + $0x38] sm:$0xf]
      %v1692 = vld [vmem:[%s1676 + $0x3c] sm:$0xf]
      %v1693 = vunpack.c.l.b16 %v1665
      %v1694 = vunpack.c.l.b16 %v1675
      %v1695 = vpack.c.b16 %v1694, %v1693
      %v1713 = vunpack.c.l.b16 %v1677
      %v1714 = vunpack.c.l.b16 %v1678
      %v1715 = vunpack.c.l.b16 %v1679
      %v1716 = vunpack.c.l.b16 %v1680
      %v1717 = vunpack.c.l.b16 %v1681
      %v1718 = vunpack.c.l.b16 %v1682
      %v1719 = vunpack.c.l.b16 %v1683
      %v1720 = vunpack.c.l.b16 %v1684
      %v1721 = vunpack.c.l.b16 %v1685
      %v1722 = vunpack.c.l.b16 %v1686
      %v1723 = vunpack.c.l.b16 %v1687
      %v1724 = vunpack.c.l.b16 %v1688
      %v1725 = vunpack.c.l.b16 %v1689
      %v1726 = vunpack.c.l.b16 %v1690
      %v1727 = vunpack.c.l.b16 %v1691
      %v1728 = vunpack.c.l.b16 %v1692
      %v1729 = vpack.c.b16 %v1714, %v1713
      %v1730 = vpack.c.b16 %v1716, %v1715
      %v1731 = vpack.c.b16 %v1718, %v1717
      %v1732 = vpack.c.b16 %v1720, %v1719
      %v1733 = vpack.c.b16 %v1722, %v1721
      %v1734 = vpack.c.b16 %v1724, %v1723
      %v1735 = vpack.c.b16 %v1726, %v1725
      %v1736 = vpack.c.b16 %v1728, %v1727
      %1745 = vmatpush.bf16.msra.mxu0 %v1736
      %1746 = vmatpush.bf16.msra.mxu0 %v1735
      %1747 = vmatpush.bf16.msra.mxu0 %v1734
      %1748 = vmatpush.bf16.msra.mxu0 %v1733
      %1749 = vmatpush.bf16.msra.mxu0 %v1732
      %1750 = vmatpush.bf16.msra.mxu0 %v1731
      %1751 = vmatpush.bf16.msra.mxu0 %v1730
      %1752 = vmatpush.bf16.msra.mxu0 %v1729
      %1753 = vmatmul.bf16.gmra.mxu0 %v678
      %v1754 = vpop.f32.mrf.mxu0
      %v1755 = vadd.f32 0.0, %v1754
      %v1756 = vpop.f32.mrf.mxu0
      %v1757 = vadd.f32 0.0, %v1756
      %1758 = vmatmul.bf16.gmra.mxu0 %v679
      %v1759 = vpop.f32.mrf.mxu0
      %v1760 = vadd.f32 0.0, %v1759
      %v1761 = vpop.f32.mrf.mxu0
      %v1762 = vadd.f32 0.0, %v1761
      %1763 = vmatmul.bf16.gmra.mxu0 %v680
      %v1764 = vpop.f32.mrf.mxu0
      %v1765 = vadd.f32 0.0, %v1764
      %v1766 = vpop.f32.mrf.mxu0
      %v1767 = vadd.f32 0.0, %v1766
      %1768 = vmatmul.bf16.gmra.mxu0 %v681
      %v1769 = vpop.f32.mrf.mxu0
      %v1770 = vadd.f32 0.0, %v1769
      %v1771 = vpop.f32.mrf.mxu0
      %v1772 = vadd.f32 0.0, %v1771
      %1773 = vmatmul.bf16.gmra.mxu0 %v682
      %v1774 = vpop.f32.mrf.mxu0
      %v1775 = vadd.f32 0.0, %v1774
      %v1776 = vpop.f32.mrf.mxu0
      %v1777 = vadd.f32 0.0, %v1776
      %1778 = vmatmul.bf16.gmra.mxu0 %v683
      %v1779 = vpop.f32.mrf.mxu0
      %v1780 = vadd.f32 0.0, %v1779
      %v1781 = vpop.f32.mrf.mxu0
      %v1782 = vadd.f32 0.0, %v1781
      %1783 = vmatmul.bf16.gmra.mxu0 %v684
      %v1784 = vpop.f32.mrf.mxu0
      %v1785 = vadd.f32 0.0, %v1784
      %v1786 = vpop.f32.mrf.mxu0
      %v1787 = vadd.f32 0.0, %v1786
      %1788 = vmatmul.bf16.gmra.mxu0 %v685
      %v1789 = vpop.f32.mrf.mxu0
      %v1790 = vadd.f32 0.0, %v1789
      %v1791 = vpop.f32.mrf.mxu0
      %v1792 = vadd.f32 0.0, %v1791
      %1793 = vmatmul.bf16.gmra.mxu0 %v686
      %v1794 = vpop.f32.mrf.mxu0
      %v1795 = vadd.f32 0.0, %v1794
      %v1796 = vpop.f32.mrf.mxu0
      %v1797 = vadd.f32 0.0, %v1796
      %1798 = vmatmul.bf16.gmra.mxu0 %v687
      %v1799 = vpop.f32.mrf.mxu0
      %v1800 = vadd.f32 0.0, %v1799
      %v1801 = vpop.f32.mrf.mxu0
      %v1802 = vadd.f32 0.0, %v1801
      %1803 = vmatmul.bf16.gmra.mxu0 %v688
      %v1804 = vpop.f32.mrf.mxu0
      %v1805 = vadd.f32 0.0, %v1804
      %v1806 = vpop.f32.mrf.mxu0
      %v1807 = vadd.f32 0.0, %v1806
      %1808 = vmatmul.bf16.gmra.mxu0 %v689
      %v1809 = vpop.f32.mrf.mxu0
      %v1810 = vadd.f32 0.0, %v1809
      %v1811 = vpop.f32.mrf.mxu0
      %v1812 = vadd.f32 0.0, %v1811
      %1813 = vmatmul.bf16.gmra.mxu0 %v690
      %v1814 = vpop.f32.mrf.mxu0
      %v1815 = vadd.f32 0.0, %v1814
      %v1816 = vpop.f32.mrf.mxu0
      %v1817 = vadd.f32 0.0, %v1816
      %1818 = vmatmul.bf16.gmra.mxu0 %v691
      %v1819 = vpop.f32.mrf.mxu0
      %v1820 = vadd.f32 0.0, %v1819
      %v1821 = vpop.f32.mrf.mxu0
      %v1822 = vadd.f32 0.0, %v1821
      %1823 = vmatmul.bf16.gmra.mxu0 %v692
      %v1824 = vpop.f32.mrf.mxu0
      %v1825 = vadd.f32 0.0, %v1824
      %v1826 = vpop.f32.mrf.mxu0
      %v1827 = vadd.f32 0.0, %v1826
      %1828 = vmatmul.bf16.gmra.mxu0 %v1695
      %v1829 = vpop.f32.mrf.mxu0
      %v1830 = vadd.f32 0.0, %v1829
      %v1831 = vpop.f32.mrf.mxu0
      %v1832 = vadd.f32 0.0, %v1831
      %1833 = vdwg.mxu0
      %v1834 = vadd.f32 %v1620, %v1755
      %v1835 = vadd.f32 %v1621, %v1757
      %v1836 = vadd.f32 %v1622, %v1760
      %v1837 = vadd.f32 %v1623, %v1762
      %v1838 = vadd.f32 %v1624, %v1765
      %v1839 = vadd.f32 %v1625, %v1767
      %v1840 = vadd.f32 %v1626, %v1770
      %v1841 = vadd.f32 %v1627, %v1772
      %v1842 = vadd.f32 %v1628, %v1775
      %v1843 = vadd.f32 %v1629, %v1777
      %v1844 = vadd.f32 %v1630, %v1780
      %v1845 = vadd.f32 %v1631, %v1782
      %v1846 = vadd.f32 %v1632, %v1785
      %v1847 = vadd.f32 %v1633, %v1787
      %v1848 = vadd.f32 %v1634, %v1790
      %v1849 = vadd.f32 %v1635, %v1792
      %v1850 = vadd.f32 %v1636, %v1795
      %v1851 = vadd.f32 %v1637, %v1797
      %v1852 = vadd.f32 %v1638, %v1800
      %v1853 = vadd.f32 %v1639, %v1802
      %v1854 = vadd.f32 %v1640, %v1805
      %v1855 = vadd.f32 %v1641, %v1807
      %v1856 = vadd.f32 %v1642, %v1810
      %v1857 = vadd.f32 %v1643, %v1812
      %v1858 = vadd.f32 %v1644, %v1815
      %v1859 = vadd.f32 %v1645, %v1817
      %v1860 = vadd.f32 %v1646, %v1820
      %v1861 = vadd.f32 %v1647, %v1822
      %v1862 = vadd.f32 %v1648, %v1825
      %v1863 = vadd.f32 %v1649, %v1827
      %v1864 = vadd.f32 %v1650, %v1830
      %v1865 = vadd.f32 %v1651, %v1832
      %v1867 = vrot.slane %v219, 5
      %v1868 = vrot.slane %v1867, 4
      %v1869 = vrot.slane %v220, 5
      %v1870 = vsel %vm1097, %v1868, %v1869
      %v1871 = vrot.slane %v1869, 4
      %v1872 = vrot.slane %v221, 5
      %v1873 = vsel %vm1097, %v1871, %v1872
      %s1874 = scalar_lea.vmem %s1, 320
      %v1875 = vld [vmem:[%s1874] sm:$0xf]
      %v1876 = vld [vmem:[%s1874 + $0x4] sm:$0xf]
      %v1877 = vld [vmem:[%s1874 + $0x8] sm:$0xf]
      %v1878 = vld [vmem:[%s1874 + $0xc] sm:$0xf]
      %v1879 = vld [vmem:[%s1874 + $0x10] sm:$0xf]
      %v1880 = vld [vmem:[%s1874 + $0x14] sm:$0xf]
      %v1881 = vld [vmem:[%s1874 + $0x18] sm:$0xf]
      %v1882 = vld [vmem:[%s1874 + $0x1c] sm:$0xf]
      %v1883 = vld [vmem:[%s1874 + $0x20] sm:$0xf]
      %v1884 = vld [vmem:[%s1874 + $0x24] sm:$0xf]
      %v1885 = vld [vmem:[%s1874 + $0x28] sm:$0xf]
      %v1886 = vld [vmem:[%s1874 + $0x2c] sm:$0xf]
      %v1887 = vld [vmem:[%s1874 + $0x30] sm:$0xf]
      %v1888 = vld [vmem:[%s1874 + $0x34] sm:$0xf]
      %v1889 = vld [vmem:[%s1874 + $0x38] sm:$0xf]
      %v1890 = vld [vmem:[%s1874 + $0x3c] sm:$0xf]
      %v1891 = vunpack.c.l.b16 %v1870
      %v1892 = vunpack.c.l.b16 %v1873
      %v1893 = vpack.c.b16 %v1892, %v1891
      %v1911 = vunpack.c.l.b16 %v1875
      %v1912 = vunpack.c.l.b16 %v1876
      %v1913 = vunpack.c.l.b16 %v1877
      %v1914 = vunpack.c.l.b16 %v1878
      %v1915 = vunpack.c.l.b16 %v1879
      %v1916 = vunpack.c.l.b16 %v1880
      %v1917 = vunpack.c.l.b16 %v1881
      %v1918 = vunpack.c.l.b16 %v1882
      %v1919 = vunpack.c.l.b16 %v1883
      %v1920 = vunpack.c.l.b16 %v1884
      %v1921 = vunpack.c.l.b16 %v1885
      %v1922 = vunpack.c.l.b16 %v1886
      %v1923 = vunpack.c.l.b16 %v1887
      %v1924 = vunpack.c.l.b16 %v1888
      %v1925 = vunpack.c.l.b16 %v1889
      %v1926 = vunpack.c.l.b16 %v1890
      %v1927 = vpack.c.b16 %v1912, %v1911
      %v1928 = vpack.c.b16 %v1914, %v1913
      %v1929 = vpack.c.b16 %v1916, %v1915
      %v1930 = vpack.c.b16 %v1918, %v1917
      %v1931 = vpack.c.b16 %v1920, %v1919
      %v1932 = vpack.c.b16 %v1922, %v1921
      %v1933 = vpack.c.b16 %v1924, %v1923
      %v1934 = vpack.c.b16 %v1926, %v1925
      %1943 = vmatpush.bf16.msra.mxu0 %v1934
      %1944 = vmatpush.bf16.msra.mxu0 %v1933
      %1945 = vmatpush.bf16.msra.mxu0 %v1932
      %1946 = vmatpush.bf16.msra.mxu0 %v1931
      %1947 = vmatpush.bf16.msra.mxu0 %v1930
      %1948 = vmatpush.bf16.msra.mxu0 %v1929
      %1949 = vmatpush.bf16.msra.mxu0 %v1928
      %1950 = vmatpush.bf16.msra.mxu0 %v1927
      %1951 = vmatmul.bf16.gmra.mxu0 %v1260
      %v1952 = vpop.f32.mrf.mxu0
      %v1953 = vadd.f32 0.0, %v1952
      %v1954 = vpop.f32.mrf.mxu0
      %v1955 = vadd.f32 0.0, %v1954
      %1956 = vmatmul.bf16.gmra.mxu0 %v1261
      %v1957 = vpop.f32.mrf.mxu0
      %v1958 = vadd.f32 0.0, %v1957
      %v1959 = vpop.f32.mrf.mxu0
      %v1960 = vadd.f32 0.0, %v1959
      %1961 = vmatmul.bf16.gmra.mxu0 %v1262
      %v1962 = vpop.f32.mrf.mxu0
      %v1963 = vadd.f32 0.0, %v1962
      %v1964 = vpop.f32.mrf.mxu0
      %v1965 = vadd.f32 0.0, %v1964
      %1966 = vmatmul.bf16.gmra.mxu0 %v1263
      %v1967 = vpop.f32.mrf.mxu0
      %v1968 = vadd.f32 0.0, %v1967
      %v1969 = vpop.f32.mrf.mxu0
      %v1970 = vadd.f32 0.0, %v1969
      %1971 = vmatmul.bf16.gmra.mxu0 %v1264
      %v1972 = vpop.f32.mrf.mxu0
      %v1973 = vadd.f32 0.0, %v1972
      %v1974 = vpop.f32.mrf.mxu0
      %v1975 = vadd.f32 0.0, %v1974
      %1976 = vmatmul.bf16.gmra.mxu0 %v1265
      %v1977 = vpop.f32.mrf.mxu0
      %v1978 = vadd.f32 0.0, %v1977
      %v1979 = vpop.f32.mrf.mxu0
      %v1980 = vadd.f32 0.0, %v1979
      %1981 = vmatmul.bf16.gmra.mxu0 %v1266
      %v1982 = vpop.f32.mrf.mxu0
      %v1983 = vadd.f32 0.0, %v1982
      %v1984 = vpop.f32.mrf.mxu0
      %v1985 = vadd.f32 0.0, %v1984
      %1986 = vmatmul.bf16.gmra.mxu0 %v1267
      %v1987 = vpop.f32.mrf.mxu0
      %v1988 = vadd.f32 0.0, %v1987
      %v1989 = vpop.f32.mrf.mxu0
      %v1990 = vadd.f32 0.0, %v1989
      %1991 = vmatmul.bf16.gmra.mxu0 %v1268
      %v1992 = vpop.f32.mrf.mxu0
      %v1993 = vadd.f32 0.0, %v1992
      %v1994 = vpop.f32.mrf.mxu0
      %v1995 = vadd.f32 0.0, %v1994
      %1996 = vmatmul.bf16.gmra.mxu0 %v1269
      %v1997 = vpop.f32.mrf.mxu0
      %v1998 = vadd.f32 0.0, %v1997
      %v1999 = vpop.f32.mrf.mxu0
      %v2000 = vadd.f32 0.0, %v1999
      %2001 = vmatmul.bf16.gmra.mxu0 %v1270
      %v2002 = vpop.f32.mrf.mxu0
      %v2003 = vadd.f32 0.0, %v2002
      %v2004 = vpop.f32.mrf.mxu0
      %v2005 = vadd.f32 0.0, %v2004
      %2006 = vmatmul.bf16.gmra.mxu0 %v1271
      %v2007 = vpop.f32.mrf.mxu0
      %v2008 = vadd.f32 0.0, %v2007
      %v2009 = vpop.f32.mrf.mxu0
      %v2010 = vadd.f32 0.0, %v2009
      %2011 = vmatmul.bf16.gmra.mxu0 %v1272
      %v2012 = vpop.f32.mrf.mxu0
      %v2013 = vadd.f32 0.0, %v2012
      %v2014 = vpop.f32.mrf.mxu0
      %v2015 = vadd.f32 0.0, %v2014
      %2016 = vmatmul.bf16.gmra.mxu0 %v1273
      %v2017 = vpop.f32.mrf.mxu0
      %v2018 = vadd.f32 0.0, %v2017
      %v2019 = vpop.f32.mrf.mxu0
      %v2020 = vadd.f32 0.0, %v2019
      %2021 = vmatmul.bf16.gmra.mxu0 %v1274
      %v2022 = vpop.f32.mrf.mxu0
      %v2023 = vadd.f32 0.0, %v2022
      %v2024 = vpop.f32.mrf.mxu0
      %v2025 = vadd.f32 0.0, %v2024
      %2026 = vmatmul.bf16.gmra.mxu0 %v1893
      %v2027 = vpop.f32.mrf.mxu0
      %v2028 = vadd.f32 0.0, %v2027
      %v2029 = vpop.f32.mrf.mxu0
      %v2030 = vadd.f32 0.0, %v2029
      %2031 = vdwg.mxu0
      %v2032 = vadd.f32 %v1834, %v1953
      %v2033 = vadd.f32 %v1835, %v1955
      %v2034 = vadd.f32 %v1836, %v1958
      %v2035 = vadd.f32 %v1837, %v1960
      %v2036 = vadd.f32 %v1838, %v1963
      %v2037 = vadd.f32 %v1839, %v1965
      %v2038 = vadd.f32 %v1840, %v1968
      %v2039 = vadd.f32 %v1841, %v1970
      %v2040 = vadd.f32 %v1842, %v1973
      %v2041 = vadd.f32 %v1843, %v1975
      %v2042 = vadd.f32 %v1844, %v1978
      %v2043 = vadd.f32 %v1845, %v1980
      %v2044 = vadd.f32 %v1846, %v1983
      %v2045 = vadd.f32 %v1847, %v1985
      %v2046 = vadd.f32 %v1848, %v1988
      %v2047 = vadd.f32 %v1849, %v1990
      %v2048 = vadd.f32 %v1850, %v1993
      %v2049 = vadd.f32 %v1851, %v1995
      %v2050 = vadd.f32 %v1852, %v1998
      %v2051 = vadd.f32 %v1853, %v2000
      %v2052 = vadd.f32 %v1854, %v2003
      %v2053 = vadd.f32 %v1855, %v2005
      %v2054 = vadd.f32 %v1856, %v2008
      %v2055 = vadd.f32 %v1857, %v2010
      %v2056 = vadd.f32 %v1858, %v2013
      %v2057 = vadd.f32 %v1859, %v2015
      %v2058 = vadd.f32 %v1860, %v2018
      %v2059 = vadd.f32 %v1861, %v2020
      %v2060 = vadd.f32 %v1862, %v2023
      %v2061 = vadd.f32 %v1863, %v2025
      %v2062 = vadd.f32 %v1864, %v2028
      %v2063 = vadd.f32 %v1865, %v2030
      %s2064 = scalar_lea.vmem %s1, 384
      %v2065 = vld [vmem:[%s2064] sm:$0xf]
      %v2066 = vld [vmem:[%s2064 + $0x4] sm:$0xf]
      %v2067 = vld [vmem:[%s2064 + $0x8] sm:$0xf]
      %v2068 = vld [vmem:[%s2064 + $0xc] sm:$0xf]
      %v2069 = vld [vmem:[%s2064 + $0x10] sm:$0xf]
      %v2070 = vld [vmem:[%s2064 + $0x14] sm:$0xf]
      %v2071 = vld [vmem:[%s2064 + $0x18] sm:$0xf]
      %v2072 = vld [vmem:[%s2064 + $0x1c] sm:$0xf]
      %v2073 = vld [vmem:[%s2064 + $0x20] sm:$0xf]
      %v2074 = vld [vmem:[%s2064 + $0x24] sm:$0xf]
      %v2075 = vld [vmem:[%s2064 + $0x28] sm:$0xf]
      %v2076 = vld [vmem:[%s2064 + $0x2c] sm:$0xf]
      %v2077 = vld [vmem:[%s2064 + $0x30] sm:$0xf]
      %v2078 = vld [vmem:[%s2064 + $0x34] sm:$0xf]
      %v2079 = vld [vmem:[%s2064 + $0x38] sm:$0xf]
      %v2080 = vld [vmem:[%s2064 + $0x3c] sm:$0xf]
      %v2083 = vunpack.c.l.b16 %v222
      %v2084 = vunpack.c.l.b16 %v223
      %v2085 = vpack.c.b16 %v2084, %v2083
      %v2103 = vunpack.c.l.b16 %v2065
      %v2104 = vunpack.c.l.b16 %v2066
      %v2105 = vunpack.c.l.b16 %v2067
      %v2106 = vunpack.c.l.b16 %v2068
      %v2107 = vunpack.c.l.b16 %v2069
      %v2108 = vunpack.c.l.b16 %v2070
      %v2109 = vunpack.c.l.b16 %v2071
      %v2110 = vunpack.c.l.b16 %v2072
      %v2111 = vunpack.c.l.b16 %v2073
      %v2112 = vunpack.c.l.b16 %v2074
      %v2113 = vunpack.c.l.b16 %v2075
      %v2114 = vunpack.c.l.b16 %v2076
      %v2115 = vunpack.c.l.b16 %v2077
      %v2116 = vunpack.c.l.b16 %v2078
      %v2117 = vunpack.c.l.b16 %v2079
      %v2118 = vunpack.c.l.b16 %v2080
      %v2119 = vpack.c.b16 %v2104, %v2103
      %v2120 = vpack.c.b16 %v2106, %v2105
      %v2121 = vpack.c.b16 %v2108, %v2107
      %v2122 = vpack.c.b16 %v2110, %v2109
      %v2123 = vpack.c.b16 %v2112, %v2111
      %v2124 = vpack.c.b16 %v2114, %v2113
      %v2125 = vpack.c.b16 %v2116, %v2115
      %v2126 = vpack.c.b16 %v2118, %v2117
      %2135 = vmatpush.bf16.msra.mxu0 %v2126
      %2136 = vmatpush.bf16.msra.mxu0 %v2125
      %2137 = vmatpush.bf16.msra.mxu0 %v2124
      %2138 = vmatpush.bf16.msra.mxu0 %v2123
      %2139 = vmatpush.bf16.msra.mxu0 %v2122
      %2140 = vmatpush.bf16.msra.mxu0 %v2121
      %2141 = vmatpush.bf16.msra.mxu0 %v2120
      %2142 = vmatpush.bf16.msra.mxu0 %v2119
      %2143 = vmatmul.bf16.gmra.mxu0 %v912
      %v2144 = vpop.f32.mrf.mxu0
      %v2145 = vadd.f32 0.0, %v2144
      %v2146 = vpop.f32.mrf.mxu0
      %v2147 = vadd.f32 0.0, %v2146
      %2148 = vmatmul.bf16.gmra.mxu0 %v913
      %v2149 = vpop.f32.mrf.mxu0
      %v2150 = vadd.f32 0.0, %v2149
      %v2151 = vpop.f32.mrf.mxu0
      %v2152 = vadd.f32 0.0, %v2151
      %2153 = vmatmul.bf16.gmra.mxu0 %v914
      %v2154 = vpop.f32.mrf.mxu0
      %v2155 = vadd.f32 0.0, %v2154
      %v2156 = vpop.f32.mrf.mxu0
      %v2157 = vadd.f32 0.0, %v2156
      %2158 = vmatmul.bf16.gmra.mxu0 %v915
      %v2159 = vpop.f32.mrf.mxu0
      %v2160 = vadd.f32 0.0, %v2159
      %v2161 = vpop.f32.mrf.mxu0
      %v2162 = vadd.f32 0.0, %v2161
      %2163 = vmatmul.bf16.gmra.mxu0 %v916
      %v2164 = vpop.f32.mrf.mxu0
      %v2165 = vadd.f32 0.0, %v2164
      %v2166 = vpop.f32.mrf.mxu0
      %v2167 = vadd.f32 0.0, %v2166
      %2168 = vmatmul.bf16.gmra.mxu0 %v917
      %v2169 = vpop.f32.mrf.mxu0
      %v2170 = vadd.f32 0.0, %v2169
      %v2171 = vpop.f32.mrf.mxu0
      %v2172 = vadd.f32 0.0, %v2171
      %2173 = vmatmul.bf16.gmra.mxu0 %v918
      %v2174 = vpop.f32.mrf.mxu0
      %v2175 = vadd.f32 0.0, %v2174
      %v2176 = vpop.f32.mrf.mxu0
      %v2177 = vadd.f32 0.0, %v2176
      %2178 = vmatmul.bf16.gmra.mxu0 %v919
      %v2179 = vpop.f32.mrf.mxu0
      %v2180 = vadd.f32 0.0, %v2179
      %v2181 = vpop.f32.mrf.mxu0
      %v2182 = vadd.f32 0.0, %v2181
      %2183 = vmatmul.bf16.gmra.mxu0 %v920
      %v2184 = vpop.f32.mrf.mxu0
      %v2185 = vadd.f32 0.0, %v2184
      %v2186 = vpop.f32.mrf.mxu0
      %v2187 = vadd.f32 0.0, %v2186
      %2188 = vmatmul.bf16.gmra.mxu0 %v921
      %v2189 = vpop.f32.mrf.mxu0
      %v2190 = vadd.f32 0.0, %v2189
      %v2191 = vpop.f32.mrf.mxu0
      %v2192 = vadd.f32 0.0, %v2191
      %2193 = vmatmul.bf16.gmra.mxu0 %v922
      %v2194 = vpop.f32.mrf.mxu0
      %v2195 = vadd.f32 0.0, %v2194
      %v2196 = vpop.f32.mrf.mxu0
      %v2197 = vadd.f32 0.0, %v2196
      %2198 = vmatmul.bf16.gmra.mxu0 %v923
      %v2199 = vpop.f32.mrf.mxu0
      %v2200 = vadd.f32 0.0, %v2199
      %v2201 = vpop.f32.mrf.mxu0
      %v2202 = vadd.f32 0.0, %v2201
      %2203 = vmatmul.bf16.gmra.mxu0 %v924
      %v2204 = vpop.f32.mrf.mxu0
      %v2205 = vadd.f32 0.0, %v2204
      %v2206 = vpop.f32.mrf.mxu0
      %v2207 = vadd.f32 0.0, %v2206
      %2208 = vmatmul.bf16.gmra.mxu0 %v925
      %v2209 = vpop.f32.mrf.mxu0
      %v2210 = vadd.f32 0.0, %v2209
      %v2211 = vpop.f32.mrf.mxu0
      %v2212 = vadd.f32 0.0, %v2211
      %2213 = vmatmul.bf16.gmra.mxu0 %v1481
      %v2214 = vpop.f32.mrf.mxu0
      %v2215 = vadd.f32 0.0, %v2214
      %v2216 = vpop.f32.mrf.mxu0
      %v2217 = vadd.f32 0.0, %v2216
      %2218 = vmatmul.bf16.gmra.mxu0 %v2085
      %v2219 = vpop.f32.mrf.mxu0
      %v2220 = vadd.f32 0.0, %v2219
      %v2221 = vpop.f32.mrf.mxu0
      %v2222 = vadd.f32 0.0, %v2221
      %2223 = vdwg.mxu0
      %v2224 = vadd.f32 %v2032, %v2145
      %v2225 = vadd.f32 %v2033, %v2147
      %v2226 = vadd.f32 %v2034, %v2150
      %v2227 = vadd.f32 %v2035, %v2152
      %v2228 = vadd.f32 %v2036, %v2155
      %v2229 = vadd.f32 %v2037, %v2157
      %v2230 = vadd.f32 %v2038, %v2160
      %v2231 = vadd.f32 %v2039, %v2162
      %v2232 = vadd.f32 %v2040, %v2165
      %v2233 = vadd.f32 %v2041, %v2167
      %v2234 = vadd.f32 %v2042, %v2170
      %v2235 = vadd.f32 %v2043, %v2172
      %v2236 = vadd.f32 %v2044, %v2175
      %v2237 = vadd.f32 %v2045, %v2177
      %v2238 = vadd.f32 %v2046, %v2180
      %v2239 = vadd.f32 %v2047, %v2182
      %v2240 = vadd.f32 %v2048, %v2185
      %v2241 = vadd.f32 %v2049, %v2187
      %v2242 = vadd.f32 %v2050, %v2190
      %v2243 = vadd.f32 %v2051, %v2192
      %v2244 = vadd.f32 %v2052, %v2195
      %v2245 = vadd.f32 %v2053, %v2197
      %v2246 = vadd.f32 %v2054, %v2200
      %v2247 = vadd.f32 %v2055, %v2202
      %v2248 = vadd.f32 %v2056, %v2205
      %v2249 = vadd.f32 %v2057, %v2207
      %v2250 = vadd.f32 %v2058, %v2210
      %v2251 = vadd.f32 %v2059, %v2212
      %v2252 = vadd.f32 %v2060, %v2215
      %v2253 = vadd.f32 %v2061, %v2217
      %v2254 = vadd.f32 %v2062, %v2220
      %v2255 = vadd.f32 %v2063, %v2222
      %v2257 = vshrl.u32 %v222, 16
      %v2259 = vrot.slane %v2257, 4
      %v2260 = vshll.u32 %v222, 16
      %v2262 = vrot.slane %v2260, 5
      %v2263 = vor.u32 %v2259, %v2262
      %v2264 = vrot.slane %v2263, 4
      %v2266 = vshll.u32 %v223, 16
      %v2268 = vrot.slane %v2266, 5
      %v2269 = vsel %vm243, %v2264, %v2268
      %v2270 = vshrl.u32 %v223, 16
      %v2272 = vrot.slane %v2270, 4
      %v2273 = vor.u32 %v2272, %v2268
      %v2274 = vrot.slane %v2273, 4
      %v2276 = vshll.u32 %v224, 16
      %v2278 = vrot.slane %v2276, 5
      %v2279 = vsel %vm243, %v2274, %v2278
      %s2280 = scalar_lea.vmem %s1, 448
      %v2281 = vld [vmem:[%s2280] sm:$0xf]
      %v2282 = vld [vmem:[%s2280 + $0x4] sm:$0xf]
      %v2283 = vld [vmem:[%s2280 + $0x8] sm:$0xf]
      %v2284 = vld [vmem:[%s2280 + $0xc] sm:$0xf]
      %v2285 = vld [vmem:[%s2280 + $0x10] sm:$0xf]
      %v2286 = vld [vmem:[%s2280 + $0x14] sm:$0xf]
      %v2287 = vld [vmem:[%s2280 + $0x18] sm:$0xf]
      %v2288 = vld [vmem:[%s2280 + $0x1c] sm:$0xf]
      %v2289 = vld [vmem:[%s2280 + $0x20] sm:$0xf]
      %v2290 = vld [vmem:[%s2280 + $0x24] sm:$0xf]
      %v2291 = vld [vmem:[%s2280 + $0x28] sm:$0xf]
      %v2292 = vld [vmem:[%s2280 + $0x2c] sm:$0xf]
      %v2293 = vld [vmem:[%s2280 + $0x30] sm:$0xf]
      %v2294 = vld [vmem:[%s2280 + $0x34] sm:$0xf]
      %v2295 = vld [vmem:[%s2280 + $0x38] sm:$0xf]
      %v2296 = vld [vmem:[%s2280 + $0x3c] sm:$0xf]
      %v2297 = vunpack.c.l.b16 %v2269
      %v2298 = vunpack.c.l.b16 %v2279
      %v2299 = vpack.c.b16 %v2298, %v2297
      %v2317 = vunpack.c.l.b16 %v2281
      %v2318 = vunpack.c.l.b16 %v2282
      %v2319 = vunpack.c.l.b16 %v2283
      %v2320 = vunpack.c.l.b16 %v2284
      %v2321 = vunpack.c.l.b16 %v2285
      %v2322 = vunpack.c.l.b16 %v2286
      %v2323 = vunpack.c.l.b16 %v2287
      %v2324 = vunpack.c.l.b16 %v2288
      %v2325 = vunpack.c.l.b16 %v2289
      %v2326 = vunpack.c.l.b16 %v2290
      %v2327 = vunpack.c.l.b16 %v2291
      %v2328 = vunpack.c.l.b16 %v2292
      %v2329 = vunpack.c.l.b16 %v2293
      %v2330 = vunpack.c.l.b16 %v2294
      %v2331 = vunpack.c.l.b16 %v2295
      %v2332 = vunpack.c.l.b16 %v2296
      %v2333 = vpack.c.b16 %v2318, %v2317
      %v2334 = vpack.c.b16 %v2320, %v2319
      %v2335 = vpack.c.b16 %v2322, %v2321
      %v2336 = vpack.c.b16 %v2324, %v2323
      %v2337 = vpack.c.b16 %v2326, %v2325
      %v2338 = vpack.c.b16 %v2328, %v2327
      %v2339 = vpack.c.b16 %v2330, %v2329
      %v2340 = vpack.c.b16 %v2332, %v2331
      %2349 = vmatpush.bf16.msra.mxu0 %v2340
      %2350 = vmatpush.bf16.msra.mxu0 %v2339
      %2351 = vmatpush.bf16.msra.mxu0 %v2338
      %2352 = vmatpush.bf16.msra.mxu0 %v2337
      %2353 = vmatpush.bf16.msra.mxu0 %v2336
      %2354 = vmatpush.bf16.msra.mxu0 %v2335
      %2355 = vmatpush.bf16.msra.mxu0 %v2334
      %2356 = vmatpush.bf16.msra.mxu0 %v2333
      %2357 = vmatmul.bf16.gmra.mxu0 %v679
      %v2358 = vpop.f32.mrf.mxu0
      %v2359 = vadd.f32 0.0, %v2358
      %v2360 = vpop.f32.mrf.mxu0
      %v2361 = vadd.f32 0.0, %v2360
      %2362 = vmatmul.bf16.gmra.mxu0 %v680
      %v2363 = vpop.f32.mrf.mxu0
      %v2364 = vadd.f32 0.0, %v2363
      %v2365 = vpop.f32.mrf.mxu0
      %v2366 = vadd.f32 0.0, %v2365
      %2367 = vmatmul.bf16.gmra.mxu0 %v681
      %v2368 = vpop.f32.mrf.mxu0
      %v2369 = vadd.f32 0.0, %v2368
      %v2370 = vpop.f32.mrf.mxu0
      %v2371 = vadd.f32 0.0, %v2370
      %2372 = vmatmul.bf16.gmra.mxu0 %v682
      %v2373 = vpop.f32.mrf.mxu0
      %v2374 = vadd.f32 0.0, %v2373
      %v2375 = vpop.f32.mrf.mxu0
      %v2376 = vadd.f32 0.0, %v2375
      %2377 = vmatmul.bf16.gmra.mxu0 %v683
      %v2378 = vpop.f32.mrf.mxu0
      %v2379 = vadd.f32 0.0, %v2378
      %v2380 = vpop.f32.mrf.mxu0
      %v2381 = vadd.f32 0.0, %v2380
      %2382 = vmatmul.bf16.gmra.mxu0 %v684
      %v2383 = vpop.f32.mrf.mxu0
      %v2384 = vadd.f32 0.0, %v2383
      %v2385 = vpop.f32.mrf.mxu0
      %v2386 = vadd.f32 0.0, %v2385
      %2387 = vmatmul.bf16.gmra.mxu0 %v685
      %v2388 = vpop.f32.mrf.mxu0
      %v2389 = vadd.f32 0.0, %v2388
      %v2390 = vpop.f32.mrf.mxu0
      %v2391 = vadd.f32 0.0, %v2390
      %2392 = vmatmul.bf16.gmra.mxu0 %v686
      %v2393 = vpop.f32.mrf.mxu0
      %v2394 = vadd.f32 0.0, %v2393
      %v2395 = vpop.f32.mrf.mxu0
      %v2396 = vadd.f32 0.0, %v2395
      %2397 = vmatmul.bf16.gmra.mxu0 %v687
      %v2398 = vpop.f32.mrf.mxu0
      %v2399 = vadd.f32 0.0, %v2398
      %v2400 = vpop.f32.mrf.mxu0
      %v2401 = vadd.f32 0.0, %v2400
      %2402 = vmatmul.bf16.gmra.mxu0 %v688
      %v2403 = vpop.f32.mrf.mxu0
      %v2404 = vadd.f32 0.0, %v2403
      %v2405 = vpop.f32.mrf.mxu0
      %v2406 = vadd.f32 0.0, %v2405
      %2407 = vmatmul.bf16.gmra.mxu0 %v689
      %v2408 = vpop.f32.mrf.mxu0
      %v2409 = vadd.f32 0.0, %v2408
      %v2410 = vpop.f32.mrf.mxu0
      %v2411 = vadd.f32 0.0, %v2410
      %2412 = vmatmul.bf16.gmra.mxu0 %v690
      %v2413 = vpop.f32.mrf.mxu0
      %v2414 = vadd.f32 0.0, %v2413
      %v2415 = vpop.f32.mrf.mxu0
      %v2416 = vadd.f32 0.0, %v2415
      %2417 = vmatmul.bf16.gmra.mxu0 %v691
      %v2418 = vpop.f32.mrf.mxu0
      %v2419 = vadd.f32 0.0, %v2418
      %v2420 = vpop.f32.mrf.mxu0
      %v2421 = vadd.f32 0.0, %v2420
      %2422 = vmatmul.bf16.gmra.mxu0 %v692
      %v2423 = vpop.f32.mrf.mxu0
      %v2424 = vadd.f32 0.0, %v2423
      %v2425 = vpop.f32.mrf.mxu0
      %v2426 = vadd.f32 0.0, %v2425
      %2427 = vmatmul.bf16.gmra.mxu0 %v1695
      %v2428 = vpop.f32.mrf.mxu0
      %v2429 = vadd.f32 0.0, %v2428
      %v2430 = vpop.f32.mrf.mxu0
      %v2431 = vadd.f32 0.0, %v2430
      %2432 = vmatmul.bf16.gmra.mxu0 %v2299
      %v2433 = vpop.f32.mrf.mxu0
      %v2434 = vadd.f32 0.0, %v2433
      %v2435 = vpop.f32.mrf.mxu0
      %v2436 = vadd.f32 0.0, %v2435
      %2437 = vdwg.mxu0
      %v2438 = vadd.f32 %v2224, %v2359
      %v2439 = vadd.f32 %v2225, %v2361
      %v2440 = vadd.f32 %v2226, %v2364
      %v2441 = vadd.f32 %v2227, %v2366
      %v2442 = vadd.f32 %v2228, %v2369
      %v2443 = vadd.f32 %v2229, %v2371
      %v2444 = vadd.f32 %v2230, %v2374
      %v2445 = vadd.f32 %v2231, %v2376
      %v2446 = vadd.f32 %v2232, %v2379
      %v2447 = vadd.f32 %v2233, %v2381
      %v2448 = vadd.f32 %v2234, %v2384
      %v2449 = vadd.f32 %v2235, %v2386
      %v2450 = vadd.f32 %v2236, %v2389
      %v2451 = vadd.f32 %v2237, %v2391
      %v2452 = vadd.f32 %v2238, %v2394
      %v2453 = vadd.f32 %v2239, %v2396
      %v2454 = vadd.f32 %v2240, %v2399
      %v2455 = vadd.f32 %v2241, %v2401
      %v2456 = vadd.f32 %v2242, %v2404
      %v2457 = vadd.f32 %v2243, %v2406
      %v2458 = vadd.f32 %v2244, %v2409
      %v2459 = vadd.f32 %v2245, %v2411
      %v2460 = vadd.f32 %v2246, %v2414
      %v2461 = vadd.f32 %v2247, %v2416
      %v2462 = vadd.f32 %v2248, %v2419
      %v2463 = vadd.f32 %v2249, %v2421
      %v2464 = vadd.f32 %v2250, %v2424
      %v2465 = vadd.f32 %v2251, %v2426
      %v2466 = vadd.f32 %v2252, %v2429
      %v2467 = vadd.f32 %v2253, %v2431
      %v2468 = vadd.f32 %v2254, %v2434
      %v2469 = vadd.f32 %v2255, %v2436
      %v2471 = vrot.slane %v222, 5
      %v2472 = vrot.slane %v2471, 4
      %v2473 = vrot.slane %v223, 5
      %v2474 = vsel %vm1097, %v2472, %v2473
      %v2475 = vrot.slane %v2473, 4
      %v2476 = vrot.slane %v224, 5
      %v2477 = vsel %vm1097, %v2475, %v2476
      %s2478 = scalar_lea.vmem %s1, 512
      %v2479 = vld [vmem:[%s2478] sm:$0xf]
      %v2480 = vld [vmem:[%s2478 + $0x4] sm:$0xf]
      %v2481 = vld [vmem:[%s2478 + $0x8] sm:$0xf]
      %v2482 = vld [vmem:[%s2478 + $0xc] sm:$0xf]
      %v2483 = vld [vmem:[%s2478 + $0x10] sm:$0xf]
      %v2484 = vld [vmem:[%s2478 + $0x14] sm:$0xf]
      %v2485 = vld [vmem:[%s2478 + $0x18] sm:$0xf]
      %v2486 = vld [vmem:[%s2478 + $0x1c] sm:$0xf]
      %v2487 = vld [vmem:[%s2478 + $0x20] sm:$0xf]
      %v2488 = vld [vmem:[%s2478 + $0x24] sm:$0xf]
      %v2489 = vld [vmem:[%s2478 + $0x28] sm:$0xf]
      %v2490 = vld [vmem:[%s2478 + $0x2c] sm:$0xf]
      %v2491 = vld [vmem:[%s2478 + $0x30] sm:$0xf]
      %v2492 = vld [vmem:[%s2478 + $0x34] sm:$0xf]
      %v2493 = vld [vmem:[%s2478 + $0x38] sm:$0xf]
      %v2494 = vld [vmem:[%s2478 + $0x3c] sm:$0xf]
      %v2495 = vunpack.c.l.b16 %v2474
      %v2496 = vunpack.c.l.b16 %v2477
      %v2497 = vpack.c.b16 %v2496, %v2495
      %v2515 = vunpack.c.l.b16 %v2479
      %v2516 = vunpack.c.l.b16 %v2480
      %v2517 = vunpack.c.l.b16 %v2481
      %v2518 = vunpack.c.l.b16 %v2482
      %v2519 = vunpack.c.l.b16 %v2483
      %v2520 = vunpack.c.l.b16 %v2484
      %v2521 = vunpack.c.l.b16 %v2485
      %v2522 = vunpack.c.l.b16 %v2486
      %v2523 = vunpack.c.l.b16 %v2487
      %v2524 = vunpack.c.l.b16 %v2488
      %v2525 = vunpack.c.l.b16 %v2489
      %v2526 = vunpack.c.l.b16 %v2490
      %v2527 = vunpack.c.l.b16 %v2491
      %v2528 = vunpack.c.l.b16 %v2492
      %v2529 = vunpack.c.l.b16 %v2493
      %v2530 = vunpack.c.l.b16 %v2494
      %v2531 = vpack.c.b16 %v2516, %v2515
      %v2532 = vpack.c.b16 %v2518, %v2517
      %v2533 = vpack.c.b16 %v2520, %v2519
      %v2534 = vpack.c.b16 %v2522, %v2521
      %v2535 = vpack.c.b16 %v2524, %v2523
      %v2536 = vpack.c.b16 %v2526, %v2525
      %v2537 = vpack.c.b16 %v2528, %v2527
      %v2538 = vpack.c.b16 %v2530, %v2529
      %2547 = vmatpush.bf16.msra.mxu0 %v2538
      %2548 = vmatpush.bf16.msra.mxu0 %v2537
      %2549 = vmatpush.bf16.msra.mxu0 %v2536
      %2550 = vmatpush.bf16.msra.mxu0 %v2535
      %2551 = vmatpush.bf16.msra.mxu0 %v2534
      %2552 = vmatpush.bf16.msra.mxu0 %v2533
      %2553 = vmatpush.bf16.msra.mxu0 %v2532
      %2554 = vmatpush.bf16.msra.mxu0 %v2531
      %2555 = vmatmul.bf16.gmra.mxu0 %v1261
      %v2556 = vpop.f32.mrf.mxu0
      %v2557 = vadd.f32 0.0, %v2556
      %v2558 = vpop.f32.mrf.mxu0
      %v2559 = vadd.f32 0.0, %v2558
      %2560 = vmatmul.bf16.gmra.mxu0 %v1262
      %v2561 = vpop.f32.mrf.mxu0
      %v2562 = vadd.f32 0.0, %v2561
      %v2563 = vpop.f32.mrf.mxu0
      %v2564 = vadd.f32 0.0, %v2563
      %2565 = vmatmul.bf16.gmra.mxu0 %v1263
      %v2566 = vpop.f32.mrf.mxu0
      %v2567 = vadd.f32 0.0, %v2566
      %v2568 = vpop.f32.mrf.mxu0
      %v2569 = vadd.f32 0.0, %v2568
      %2570 = vmatmul.bf16.gmra.mxu0 %v1264
      %v2571 = vpop.f32.mrf.mxu0
      %v2572 = vadd.f32 0.0, %v2571
      %v2573 = vpop.f32.mrf.mxu0
      %v2574 = vadd.f32 0.0, %v2573
      %2575 = vmatmul.bf16.gmra.mxu0 %v1265
      %v2576 = vpop.f32.mrf.mxu0
      %v2577 = vadd.f32 0.0, %v2576
      %v2578 = vpop.f32.mrf.mxu0
      %v2579 = vadd.f32 0.0, %v2578
      %2580 = vmatmul.bf16.gmra.mxu0 %v1266
      %v2581 = vpop.f32.mrf.mxu0
      %v2582 = vadd.f32 0.0, %v2581
      %v2583 = vpop.f32.mrf.mxu0
      %v2584 = vadd.f32 0.0, %v2583
      %2585 = vmatmul.bf16.gmra.mxu0 %v1267
      %v2586 = vpop.f32.mrf.mxu0
      %v2587 = vadd.f32 0.0, %v2586
      %v2588 = vpop.f32.mrf.mxu0
      %v2589 = vadd.f32 0.0, %v2588
      %2590 = vmatmul.bf16.gmra.mxu0 %v1268
      %v2591 = vpop.f32.mrf.mxu0
      %v2592 = vadd.f32 0.0, %v2591
      %v2593 = vpop.f32.mrf.mxu0
      %v2594 = vadd.f32 0.0, %v2593
      %2595 = vmatmul.bf16.gmra.mxu0 %v1269
      %v2596 = vpop.f32.mrf.mxu0
      %v2597 = vadd.f32 0.0, %v2596
      %v2598 = vpop.f32.mrf.mxu0
      %v2599 = vadd.f32 0.0, %v2598
      %2600 = vmatmul.bf16.gmra.mxu0 %v1270
      %v2601 = vpop.f32.mrf.mxu0
      %v2602 = vadd.f32 0.0, %v2601
      %v2603 = vpop.f32.mrf.mxu0
      %v2604 = vadd.f32 0.0, %v2603
      %2605 = vmatmul.bf16.gmra.mxu0 %v1271
      %v2606 = vpop.f32.mrf.mxu0
      %v2607 = vadd.f32 0.0, %v2606
      %v2608 = vpop.f32.mrf.mxu0
      %v2609 = vadd.f32 0.0, %v2608
      %2610 = vmatmul.bf16.gmra.mxu0 %v1272
      %v2611 = vpop.f32.mrf.mxu0
      %v2612 = vadd.f32 0.0, %v2611
      %v2613 = vpop.f32.mrf.mxu0
      %v2614 = vadd.f32 0.0, %v2613
      %2615 = vmatmul.bf16.gmra.mxu0 %v1273
      %v2616 = vpop.f32.mrf.mxu0
      %v2617 = vadd.f32 0.0, %v2616
      %v2618 = vpop.f32.mrf.mxu0
      %v2619 = vadd.f32 0.0, %v2618
      %2620 = vmatmul.bf16.gmra.mxu0 %v1274
      %v2621 = vpop.f32.mrf.mxu0
      %v2622 = vadd.f32 0.0, %v2621
      %v2623 = vpop.f32.mrf.mxu0
      %v2624 = vadd.f32 0.0, %v2623
      %2625 = vmatmul.bf16.gmra.mxu0 %v1893
      %v2626 = vpop.f32.mrf.mxu0
      %v2627 = vadd.f32 0.0, %v2626
      %v2628 = vpop.f32.mrf.mxu0
      %v2629 = vadd.f32 0.0, %v2628
      %2630 = vmatmul.bf16.gmra.mxu0 %v2497
      %v2631 = vpop.f32.mrf.mxu0
      %v2632 = vadd.f32 0.0, %v2631
      %v2633 = vpop.f32.mrf.mxu0
      %v2634 = vadd.f32 0.0, %v2633
      %2635 = vdwg.mxu0
      %v2636 = vadd.f32 %v2438, %v2557
      %v2637 = vadd.f32 %v2439, %v2559
      %v2638 = vadd.f32 %v2440, %v2562
      %v2639 = vadd.f32 %v2441, %v2564
      %v2640 = vadd.f32 %v2442, %v2567
      %v2641 = vadd.f32 %v2443, %v2569
      %v2642 = vadd.f32 %v2444, %v2572
      %v2643 = vadd.f32 %v2445, %v2574
      %v2644 = vadd.f32 %v2446, %v2577
      %v2645 = vadd.f32 %v2447, %v2579
      %v2646 = vadd.f32 %v2448, %v2582
      %v2647 = vadd.f32 %v2449, %v2584
      %v2648 = vadd.f32 %v2450, %v2587
      %v2649 = vadd.f32 %v2451, %v2589
      %v2650 = vadd.f32 %v2452, %v2592
      %v2651 = vadd.f32 %v2453, %v2594
      %v2652 = vadd.f32 %v2454, %v2597
      %v2653 = vadd.f32 %v2455, %v2599
      %v2654 = vadd.f32 %v2456, %v2602
      %v2655 = vadd.f32 %v2457, %v2604
      %v2656 = vadd.f32 %v2458, %v2607
      %v2657 = vadd.f32 %v2459, %v2609
      %v2658 = vadd.f32 %v2460, %v2612
      %v2659 = vadd.f32 %v2461, %v2614
      %v2660 = vadd.f32 %v2462, %v2617
      %v2661 = vadd.f32 %v2463, %v2619
      %v2662 = vadd.f32 %v2464, %v2622
      %v2663 = vadd.f32 %v2465, %v2624
      %v2664 = vadd.f32 %v2466, %v2627
      %v2665 = vadd.f32 %v2467, %v2629
      %v2666 = vadd.f32 %v2468, %v2632
      %v2667 = vadd.f32 %v2469, %v2634
      %v2668 = vld [vmem:[%s2] sm:$0x1]
      %v2670 = vperm.slane %v2668, 0
      %v2672 = vadd.f32 %v2636, %v2670
      %v2673 = vadd.f32 %v2637, %v2670
      %v2674 = vadd.f32 %v2638, %v2670
      %v2675 = vadd.f32 %v2639, %v2670
      %v2676 = vadd.f32 %v2640, %v2670
      %v2677 = vadd.f32 %v2641, %v2670
      %v2678 = vadd.f32 %v2642, %v2670
      %v2679 = vadd.f32 %v2643, %v2670
      %v2680 = vadd.f32 %v2644, %v2670
      %v2681 = vadd.f32 %v2645, %v2670
      %v2682 = vadd.f32 %v2646, %v2670
      %v2683 = vadd.f32 %v2647, %v2670
      %v2684 = vadd.f32 %v2648, %v2670
      %v2685 = vadd.f32 %v2649, %v2670
      %v2686 = vadd.f32 %v2650, %v2670
      %v2687 = vadd.f32 %v2651, %v2670
      %v2688 = vadd.f32 %v2652, %v2670
      %v2689 = vadd.f32 %v2653, %v2670
      %v2690 = vadd.f32 %v2654, %v2670
      %v2691 = vadd.f32 %v2655, %v2670
      %v2692 = vadd.f32 %v2656, %v2670
      %v2693 = vadd.f32 %v2657, %v2670
      %v2694 = vadd.f32 %v2658, %v2670
      %v2695 = vadd.f32 %v2659, %v2670
      %v2696 = vadd.f32 %v2660, %v2670
      %v2697 = vadd.f32 %v2661, %v2670
      %v2698 = vadd.f32 %v2662, %v2670
      %v2699 = vadd.f32 %v2663, %v2670
      %v2700 = vadd.f32 %v2664, %v2670
      %v2701 = vadd.f32 %v2665, %v2670
      %v2702 = vadd.f32 %v2666, %v2670
      %v2703 = vadd.f32 %v2667, %v2670
      %v2704 = vmax.f32 %v2672, 0.0
      %v2705 = vmax.f32 %v2673, 0.0
      %v2706 = vmax.f32 %v2674, 0.0
      %v2707 = vmax.f32 %v2675, 0.0
      %v2708 = vmax.f32 %v2676, 0.0
      %v2709 = vmax.f32 %v2677, 0.0
      %v2710 = vmax.f32 %v2678, 0.0
      %v2711 = vmax.f32 %v2679, 0.0
      %v2712 = vmax.f32 %v2680, 0.0
      %v2713 = vmax.f32 %v2681, 0.0
      %v2714 = vmax.f32 %v2682, 0.0
      %v2715 = vmax.f32 %v2683, 0.0
      %v2716 = vmax.f32 %v2684, 0.0
      %v2717 = vmax.f32 %v2685, 0.0
      %v2718 = vmax.f32 %v2686, 0.0
      %v2719 = vmax.f32 %v2687, 0.0
      %v2720 = vmax.f32 %v2688, 0.0
      %v2721 = vmax.f32 %v2689, 0.0
      %v2722 = vmax.f32 %v2690, 0.0
      %v2723 = vmax.f32 %v2691, 0.0
      %v2724 = vmax.f32 %v2692, 0.0
      %v2725 = vmax.f32 %v2693, 0.0
      %v2726 = vmax.f32 %v2694, 0.0
      %v2727 = vmax.f32 %v2695, 0.0
      %v2728 = vmax.f32 %v2696, 0.0
      %v2729 = vmax.f32 %v2697, 0.0
      %v2730 = vmax.f32 %v2698, 0.0
      %v2731 = vmax.f32 %v2699, 0.0
      %v2732 = vmax.f32 %v2700, 0.0
      %v2733 = vmax.f32 %v2701, 0.0
      %v2734 = vmax.f32 %v2702, 0.0
      %v2735 = vmax.f32 %v2703, 0.0
      %v2736 = vpack.c.bf16 %v2704, %v2704
      %v2737 = vpack.c.bf16 %v2705, %v2705
      %v2738 = vpack.c.bf16 %v2706, %v2706
      %v2739 = vpack.c.bf16 %v2707, %v2707
      %v2740 = vpack.c.bf16 %v2708, %v2708
      %v2741 = vpack.c.bf16 %v2709, %v2709
      %v2742 = vpack.c.bf16 %v2710, %v2710
      %v2743 = vpack.c.bf16 %v2711, %v2711
      %v2744 = vpack.c.bf16 %v2712, %v2712
      %v2745 = vpack.c.bf16 %v2713, %v2713
      %v2746 = vpack.c.bf16 %v2714, %v2714
      %v2747 = vpack.c.bf16 %v2715, %v2715
      %v2748 = vpack.c.bf16 %v2716, %v2716
      %v2749 = vpack.c.bf16 %v2717, %v2717
      %v2750 = vpack.c.bf16 %v2718, %v2718
      %v2751 = vpack.c.bf16 %v2719, %v2719
      %v2752 = vpack.c.bf16 %v2720, %v2720
      %v2753 = vpack.c.bf16 %v2721, %v2721
      %v2754 = vpack.c.bf16 %v2722, %v2722
      %v2755 = vpack.c.bf16 %v2723, %v2723
      %v2756 = vpack.c.bf16 %v2724, %v2724
      %v2757 = vpack.c.bf16 %v2725, %v2725
      %v2758 = vpack.c.bf16 %v2726, %v2726
      %v2759 = vpack.c.bf16 %v2727, %v2727
      %v2760 = vpack.c.bf16 %v2728, %v2728
      %v2761 = vpack.c.bf16 %v2729, %v2729
      %v2762 = vpack.c.bf16 %v2730, %v2730
      %v2763 = vpack.c.bf16 %v2731, %v2731
      %v2764 = vpack.c.bf16 %v2732, %v2732
      %v2765 = vpack.c.bf16 %v2733, %v2733
      %v2766 = vpack.c.bf16 %v2734, %v2734
      %v2767 = vpack.c.bf16 %v2735, %v2735
      %2768 = vst [vmem:[%s170] sm:$0xf] %v2736
      %2769 = vst [vmem:[%s170 + $0x4] sm:$0xf] %v2737
      %2770 = vst [vmem:[%s170 + $0x8] sm:$0xf] %v2738
      %2771 = vst [vmem:[%s170 + $0xc] sm:$0xf] %v2739
      %2772 = vst [vmem:[%s170 + $0x10] sm:$0xf] %v2740
      %2773 = vst [vmem:[%s170 + $0x14] sm:$0xf] %v2741
      %2774 = vst [vmem:[%s170 + $0x18] sm:$0xf] %v2742
      %2775 = vst [vmem:[%s170 + $0x1c] sm:$0xf] %v2743
      %2776 = vst [vmem:[%s170 + $0x20] sm:$0xf] %v2744
      %2777 = vst [vmem:[%s170 + $0x24] sm:$0xf] %v2745
      %2778 = vst [vmem:[%s170 + $0x28] sm:$0xf] %v2746
      %2779 = vst [vmem:[%s170 + $0x2c] sm:$0xf] %v2747
      %2780 = vst [vmem:[%s170 + $0x30] sm:$0xf] %v2748
      %2781 = vst [vmem:[%s170 + $0x34] sm:$0xf] %v2749
      %2782 = vst [vmem:[%s170 + $0x38] sm:$0xf] %v2750
      %2783 = vst [vmem:[%s170 + $0x3c] sm:$0xf] %v2751
      %2784 = vst [vmem:[%s170 + $0x40] sm:$0xf] %v2752
      %2785 = vst [vmem:[%s170 + $0x44] sm:$0xf] %v2753
      %2786 = vst [vmem:[%s170 + $0x48] sm:$0xf] %v2754
      %2787 = vst [vmem:[%s170 + $0x4c] sm:$0xf] %v2755
      %2788 = vst [vmem:[%s170 + $0x50] sm:$0xf] %v2756
      %2789 = vst [vmem:[%s170 + $0x54] sm:$0xf] %v2757
      %2790 = vst [vmem:[%s170 + $0x58] sm:$0xf] %v2758
      %2791 = vst [vmem:[%s170 + $0x5c] sm:$0xf] %v2759
      %2792 = vst [vmem:[%s170 + $0x60] sm:$0xf] %v2760
      %2793 = vst [vmem:[%s170 + $0x64] sm:$0xf] %v2761
      %2794 = vst [vmem:[%s170 + $0x68] sm:$0xf] %v2762
      %2795 = vst [vmem:[%s170 + $0x6c] sm:$0xf] %v2763
      %2796 = vst [vmem:[%s170 + $0x70] sm:$0xf] %v2764
      %2797 = vst [vmem:[%s170 + $0x74] sm:$0xf] %v2765
      %2798 = vst [vmem:[%s170 + $0x78] sm:$0xf] %v2766
      %2799 = vst [vmem:[%s170 + $0x7c] sm:$0xf] %v2767
      %p2800 = scmp.lt.s32.totalorder %s14, 1
      %s2801 = scalar_select %p2800, %s14, 1
      %s2802 = smul.addr %s2801, 32
      %s2803 = smul.addr %s2802, 4
      %s2804 = scalar_lea.vmem %s3, %s2803
      // Predicated region
      $region33: #{dr_classifier_forward.2} parent=31 // pred_check
        %p2805 = pneg %p100
      $region34: #{dr_classifier_forward.2} parent=31 // pred_check_branch
        %2807 = sbr.rel (%p2805) target = $region36
      $region35: #{dr_classifier_forward.2} parent=31 // pred_region
        _
      $region36: #{dr_classifier_forward.2} parent=31 // pred_fallthru
        _
    $region32: #{dr_classifier_forward.2} parent=5 // pred_fallthru
      _
    %p2808 = scmp.le.s32.totalorder 2, %s9
    // Predicated region
    $region37: #{dr_classifier_forward.2} parent=5 // pred_check
      %p2809 = pneg %p2808
    $region38: #{dr_classifier_forward.2} parent=5 // pred_check_branch
      %2811 = sbr.rel (%p2809) target = $region40
    $region39: #{dr_classifier_forward.2} parent=5 // pred_region
      %s2812 = ssub.s32 %s9, 2
      // Predicated region
      $region41: #{dr_classifier_forward.2} parent=39 // pred_check
        %p2813 = pneg %p106
      $region42: #{dr_classifier_forward.2} parent=39 // pred_check_branch
        %2815 = sbr.rel (%p2813) target = $region44
      $region43: #{dr_classifier_forward.2} parent=39 // pred_region
        %p2816 = scmp.lt.s32.totalorder %s15, 1
        %s2817 = scalar_select %p2816, %s15, 1
        %s2818 = smul.addr %s2817, 32
        %s2819 = smul.addr %s2818, 4
        %s2820 = scalar_lea.vmem %s3, %s2819
      $region44: #{dr_classifier_forward.2} parent=39 // pred_fallthru
        _
    $region40: #{dr_classifier_forward.2} parent=5 // pred_fallthru
      _
  $region6: #{dr_classifier_forward.2} parent=0 // loop_footer
    %s13 = sadd.s32 1, %s9
  $region7: #{dr_classifier_forward.2} parent=0 // loop_footer_branch
    %8 = sbr.rel target = $region3
  $region8: #{dr_classifier_forward.2} parent=0 // loop_exit
    _

// kernel: dr_classifier_forward.3
$region0: #{dr_classifier_forward.3}
  #allocation0 [shape = 'u32[]', space=smem, size = 0x4, offset = 0x4, fixed_abs, tag = 'smem constant byte address 0x4 - core index']
  #allocation1 [shape = 'u32[72,128]{1,0:T(1,128)}', space=vmem, size = 0x9000, scoped, tag = 'internal scratch']
  %s0 = inlined_call_operand.vmem [shape: bf16[2,18,18,128], index: 0, kind: input, shape index: {}]
  %s1 = inlined_call_operand.vmem [shape: bf16[9,128,128], index: 1, kind: input, shape index: {}]
  %s2 = inlined_call_operand.vmem [shape: f32[1,128], index: 2, kind: input, shape index: {}]
  %s3 = inlined_call_operand.vmem [shape: f32[128,128], index: 3, kind: input, shape index: {}]
  %s4 = inlined_call_operand.vmem [shape: f32[1,128], index: 4, kind: input, shape index: {}]
  %s5 = inlined_call_operand.vmem [shape: f32[2,8,128], index: 5, kind: output, shape index: {}]
  %s6 = sld [smem:[#allocation0]]
  $region53: #{dr_classifier_forward.3} parent=0
    _
  %s8 = ssub.s32 1, %s6
  %s9 = scalar_select 0, %s8, %s6
  loop: start=0, step=1, limit=4
  $region2: #{dr_classifier_forward.3} parent=0 // loop_pre_header
    _
  $region3: #{dr_classifier_forward.3} parent=0 // loop_header
    %s11 = sphi 0, %s15
    %p12 = scmp.ge.s32.totalorder %s11, 4
    %s21 = sphi 0, %s23
    %s24 = sphi 0, %s21
    %s25 = sphi 0, %s24
    %s41 = sphi 0, %s25
    %s45 = sphi 0, %s45
    %s47 = sphi 0, %s45
    %s48 = sphi 0, %s47
    %s62 = sphi 0, %s48
    %s66 = sphi 0, %s66
    %s68 = sphi 0, %s66
    %s69 = sphi 0, %s68
    %s83 = sphi 0, %s69
    %s87 = sphi 0, %s87
    %s89 = sphi 0, %s87
    %s90 = sphi 0, %s89
    %s104 = sphi 0, %s90
    %s108 = sphi 0, %s108
    %s110 = sphi 0, %s108
    %s111 = sphi 0, %s110
    %s125 = sphi 0, %s111
    %s131 = sphi 0, %s133
    %s134 = sphi 0, %s131
    %s135 = sphi 0, %s134
    %s151 = sphi 0, %s135
  $region4: #{dr_classifier_forward.3} parent=0 // loop_header_branch
    %14 = sbr.rel (%p12) target = $region8
  $region5: #{dr_classifier_forward.3} parent=0 // loop_body
    %s16 = ssub.s32 %s11, 1
    %s17 = ssub.s32 %s11, 2
    %s18 = sadd.s32 %s11, 1
    %s19 = ssub.s32 %s11, %s18
    %p20 = scmp.eq.s32.totalorder %s19, 0
    %s22 = sadd.s32 %s21, 1
    %s23 = scalar_select %p20, %s21, %s22
    %p26 = pneg %p20
    %p27 = scmp.eq.s32.totalorder %s11, 1
    %p28 = por %p26, %p27
    %p29 = scmp.ne.s32.totalorder %s21, %s24
    %p30 = scmp.eq.s32.totalorder %s11, 0
    %p31 = por %p29, %p30
    %p32 = scmp.ne.s32.totalorder %s21, %s24
    %p33 = scmp.eq.s32.totalorder %s16, 1
    %p34 = por %p32, %p33
    %p35 = scmp.ne.s32.totalorder %s24, %s25
    %p36 = scmp.eq.s32.totalorder %s16, 0
    %p37 = por %p35, %p36
    %p38 = scmp.ne.s32.totalorder %s24, %s25
    %p39 = scmp.eq.s32.totalorder %s17, 1
    %p40 = por %p38, %p39
    %p42 = scmp.ne.s32.totalorder %s25, %s41
    %p43 = scmp.eq.s32.totalorder %s17, 0
    %p44 = por %p42, %p43
    %s46 = sadd.s32 %s45, 1
    %p49 = scmp.eq.s32.totalorder %s11, 1
    %p50 = scmp.ne.s32.totalorder %s45, %s47
    %p51 = scmp.eq.s32.totalorder %s11, 0
    %p52 = por %p50, %p51
    %p53 = scmp.ne.s32.totalorder %s45, %s47
    %p54 = scmp.eq.s32.totalorder %s16, 1
    %p55 = por %p53, %p54
    %p56 = scmp.ne.s32.totalorder %s47, %s48
    %p57 = scmp.eq.s32.totalorder %s16, 0
    %p58 = por %p56, %p57
    %p59 = scmp.ne.s32.totalorder %s47, %s48
    %p60 = scmp.eq.s32.totalorder %s17, 1
    %p61 = por %p59, %p60
    %p63 = scmp.ne.s32.totalorder %s48, %s62
    %p64 = scmp.eq.s32.totalorder %s17, 0
    %p65 = por %p63, %p64
    %s67 = sadd.s32 %s66, 1
    %p70 = scmp.eq.s32.totalorder %s11, 1
    %p71 = scmp.ne.s32.totalorder %s66, %s68
    %p72 = scmp.eq.s32.totalorder %s11, 0
    %p73 = por %p71, %p72
    %p74 = scmp.ne.s32.totalorder %s66, %s68
    %p75 = scmp.eq.s32.totalorder %s16, 1
    %p76 = por %p74, %p75
    %p77 = scmp.ne.s32.totalorder %s68, %s69
    %p78 = scmp.eq.s32.totalorder %s16, 0
    %p79 = por %p77, %p78
    %p80 = scmp.ne.s32.totalorder %s68, %s69
    %p81 = scmp.eq.s32.totalorder %s17, 1
    %p82 = por %p80, %p81
    %p84 = scmp.ne.s32.totalorder %s69, %s83
    %p85 = scmp.eq.s32.totalorder %s17, 0
    %p86 = por %p84, %p85
    %s88 = sadd.s32 %s87, 1
    %p91 = scmp.eq.s32.totalorder %s11, 1
    %p92 = scmp.ne.s32.totalorder %s87, %s89
    %p93 = scmp.eq.s32.totalorder %s11, 0
    %p94 = por %p92, %p93
    %p95 = scmp.ne.s32.totalorder %s87, %s89
    %p96 = scmp.eq.s32.totalorder %s16, 1
    %p97 = por %p95, %p96
    %p98 = scmp.ne.s32.totalorder %s89, %s90
    %p99 = scmp.eq.s32.totalorder %s16, 0
    %p100 = por %p98, %p99
    %p101 = scmp.ne.s32.totalorder %s89, %s90
    %p102 = scmp.eq.s32.totalorder %s17, 1
    %p103 = por %p101, %p102
    %p105 = scmp.ne.s32.totalorder %s90, %s104
    %p106 = scmp.eq.s32.totalorder %s17, 0
    %p107 = por %p105, %p106
    %s109 = sadd.s32 %s108, 1
    %p112 = scmp.eq.s32.totalorder %s11, 1
    %p113 = scmp.ne.s32.totalorder %s108, %s110
    %p114 = scmp.eq.s32.totalorder %s11, 0
    %p115 = por %p113, %p114
    %p116 = scmp.ne.s32.totalorder %s108, %s110
    %p117 = scmp.eq.s32.totalorder %s16, 1
    %p118 = por %p116, %p117
    %p119 = scmp.ne.s32.totalorder %s110, %s111
    %p120 = scmp.eq.s32.totalorder %s16, 0
    %p121 = por %p119, %p120
    %p122 = scmp.ne.s32.totalorder %s110, %s111
    %p123 = scmp.eq.s32.totalorder %s17, 1
    %p124 = por %p122, %p123
    %p126 = scmp.ne.s32.totalorder %s111, %s125
    %p127 = scmp.eq.s32.totalorder %s17, 0
    %p128 = por %p126, %p127
    %s129 = ssub.s32 %s11, %s18
    %p130 = scmp.eq.s32.totalorder %s129, 0
    %s132 = sadd.s32 %s131, 1
    %s133 = scalar_select %p130, %s131, %s132
    %p136 = pneg %p130
    %p137 = scmp.eq.s32.totalorder %s11, 1
    %p138 = por %p136, %p137
    %p139 = scmp.ne.s32.totalorder %s131, %s134
    %p140 = scmp.eq.s32.totalorder %s11, 0
    %p141 = por %p139, %p140
    %p142 = scmp.ne.s32.totalorder %s131, %s134
    %p143 = scmp.eq.s32.totalorder %s16, 1
    %p144 = por %p142, %p143
    %p145 = scmp.ne.s32.totalorder %s134, %s135
    %p146 = scmp.eq.s32.totalorder %s16, 0
    %p147 = por %p145, %p146
    %p148 = scmp.ne.s32.totalorder %s134, %s135
    %p149 = scmp.eq.s32.totalorder %s17, 1
    %p150 = por %p148, %p149
    %p152 = scmp.ne.s32.totalorder %s135, %s151
    %p153 = scmp.eq.s32.totalorder %s17, 0
    %p154 = por %p152, %p153
    %p155 = scmp.le.s32.totalorder 1, %s11
    %p156 = scmp.lt.s32.totalorder %s11, 3
    %p157 = pnand %p155, %p156
    %p158 = pneg %p157
    // Predicated region
    $region9: #{dr_classifier_forward.3} parent=5 // pred_check
      _
    $region10: #{dr_classifier_forward.3} parent=5 // pred_check_branch
      %160 = sbr.rel (%p157) target = $region12
    $region11: #{dr_classifier_forward.3} parent=5 // pred_region
      %s161 = ssub.s32 %s11, 1
      // Predicated region
      $region13: #{dr_classifier_forward.3} parent=11 // pred_check
        %p162 = pneg %p58
      $region14: #{dr_classifier_forward.3} parent=11 // pred_check_branch
        %164 = sbr.rel (%p162) target = $region16
      $region15: #{dr_classifier_forward.3} parent=11 // pred_region
        _
      $region16: #{dr_classifier_forward.3} parent=11 // pred_fallthru
        _
      // Predicated region
      $region17: #{dr_classifier_forward.3} parent=11 // pred_check
        %p165 = pneg %p79
      $region18: #{dr_classifier_forward.3} parent=11 // pred_check_branch
        %167 = sbr.rel (%p165) target = $region20
      $region19: #{dr_classifier_forward.3} parent=11 // pred_region
        _
      $region20: #{dr_classifier_forward.3} parent=11 // pred_fallthru
        _
      // Predicated region
      $region21: #{dr_classifier_forward.3} parent=11 // pred_check
        %p168 = pneg %p100
      $region22: #{dr_classifier_forward.3} parent=11 // pred_check_branch
        %170 = sbr.rel (%p168) target = $region24
      $region23: #{dr_classifier_forward.3} parent=11 // pred_region
        _
      $region24: #{dr_classifier_forward.3} parent=11 // pred_fallthru
        _
      // Predicated region
      $region25: #{dr_classifier_forward.3} parent=11 // pred_check
        %p171 = pneg %p121
      $region26: #{dr_classifier_forward.3} parent=11 // pred_check_branch
        %173 = sbr.rel (%p171) target = $region28
      $region27: #{dr_classifier_forward.3} parent=11 // pred_region
        _
      $region28: #{dr_classifier_forward.3} parent=11 // pred_fallthru
        _
    $region12: #{dr_classifier_forward.3} parent=5 // pred_fallthru
      _
    %p174 = scmp.lt.s32.totalorder %s11, 2
    // Predicated region
    $region29: #{dr_classifier_forward.3} parent=5 // pred_check
      %p175 = pneg %p174
    $region30: #{dr_classifier_forward.3} parent=5 // pred_check_branch
      %177 = sbr.rel (%p175) target = $region32
    $region31: #{dr_classifier_forward.3} parent=5 // pred_region
      // Predicated region
      $region33: #{dr_classifier_forward.3} parent=31 // pred_check
        %p178 = pneg %p31
      $region34: #{dr_classifier_forward.3} parent=31 // pred_check_branch
        %180 = sbr.rel (%p178) target = $region36
      $region35: #{dr_classifier_forward.3} parent=31 // pred_region
        %p181 = scmp.lt.s32.totalorder %s11, 1
        %s182 = scalar_select %p181, %s11, 1
        %s183 = smul.addr %s182, 54
        %s184 = smul.addr %s183, 4
        %s185 = scalar_lea.vmem %s0, %s184
      $region36: #{dr_classifier_forward.3} parent=31 // pred_fallthru
        _
    $region32: #{dr_classifier_forward.3} parent=5 // pred_fallthru
      _
    %p186 = scmp.le.s32.totalorder 1, %s11
    %p187 = scmp.lt.s32.totalorder %s11, 3
    %p188 = pnand %p186, %p187
    %p189 = pneg %p188
    // Predicated region
    $region37: #{dr_classifier_forward.3} parent=5 // pred_check
      _
    $region38: #{dr_classifier_forward.3} parent=5 // pred_check_branch
      %191 = sbr.rel (%p188) target = $region40
    $region39: #{dr_classifier_forward.3} parent=5 // pred_region
      %s192 = ssub.s32 %s11, 1
      %p193 = scmp.lt.s32.totalorder %s16, 1
      %s194 = scalar_select %p193, %s16, 1
      %s195 = smul.addr %s194, 54
      %s196 = smul.addr %s195, 4
      %s197 = scalar_lea.vmem %s0, %s196
      %p198 = pneg %p37
      %p199 = pneg %p34
      %p200 = pneg %p58
      %p201 = pneg %p55
      %p202 = pneg %p79
      %p203 = pneg %p76
      %p204 = pneg %p100
      %p205 = pneg %p97
      %p206 = pneg %p121
      %p207 = pneg %p118
      %p208 = pneg %p147
      %p209 = pneg %p144
      %p210 = scmp.lt.s32.totalorder %s16, 1
      %s211 = scalar_select %p210, %s16, 1
      %s212 = smul.addr %s211, 8
      %s213 = scalar_lea.vmem %s5, %s212
      %p214 = scmp.lt.s32.totalorder %s16, 1
      %s215 = scalar_select %p214, %s16, 1
      %s216 = smul.addr %s215, 54
      %s217 = smul.addr %s216, 4
      %s218 = scalar_lea.vmem %s0, %s217
      %p219 = scmp.lt.s32.totalorder %s16, 1
      %s220 = scalar_select %p219, %s16, 1
      %s221 = smul.addr %s220, 8
      %s222 = scalar_lea.vmem %s5, %s221
      %v223 = vld [vmem:[%s218] sm:$0xf]
      %v224 = vld [vmem:[%s218 + $0x4] sm:$0xf]
      %v225 = vld [vmem:[%s218 + $0x8] sm:$0x1]
      %v226 = vld [vmem:[%s218 + $0xc] sm:$0xf]
      %v227 = vld [vmem:[%s218 + $0x10] sm:$0xf]
      %v228 = vld [vmem:[%s218 + $0x14] sm:$0x1]
      %v229 = vld [vmem:[%s218 + $0x18] sm:$0xf]
      %v230 = vld [vmem:[%s218 + $0x1c] sm:$0xf]
      %v231 = vld [vmem:[%s218 + $0x20] sm:$0x1]
      %v232 = vld [vmem:[%s218 + $0x24] sm:$0xf]
      %v233 = vld [vmem:[%s218 + $0x28] sm:$0xf]
      %v234 = vld [vmem:[%s218 + $0x2c] sm:$0x1]
      %v235 = vld [vmem:[%s218 + $0x30] sm:$0xf]
      %v236 = vld [vmem:[%s218 + $0x34] sm:$0xf]
      %v237 = vld [vmem:[%s218 + $0x38] sm:$0x1]
      %v238 = vld [vmem:[%s218 + $0x3c] sm:$0xf]
      %v239 = vld [vmem:[%s218 + $0x40] sm:$0xf]
      %v240 = vld [vmem:[%s218 + $0x44] sm:$0x1]
      %v241 = vld [vmem:[%s218 + $0x48] sm:$0xf]
      %v242 = vld [vmem:[%s218 + $0x4c] sm:$0xf]
      %v243 = vld [vmem:[%s218 + $0x50] sm:$0x1]
      %v244 = vld [vmem:[%s218 + $0x54] sm:$0xf]
      %v245 = vld [vmem:[%s218 + $0x58] sm:$0xf]
      %v246 = vld [vmem:[%s218 + $0x5c] sm:$0x1]
      %v247 = vld [vmem:[%s218 + $0x60] sm:$0xf]
      %v248 = vld [vmem:[%s218 + $0x64] sm:$0xf]
      %v249 = vld [vmem:[%s218 + $0x68] sm:$0x1]
      %v250 = vld [vmem:[%s218 + $0x6c] sm:$0xf]
      %v251 = vld [vmem:[%s218 + $0x70] sm:$0xf]
      %v252 = vld [vmem:[%s218 + $0x74] sm:$0x1]
      %v253 = vld [vmem:[%s218 + $0x78] sm:$0xf]
      %v254 = vld [vmem:[%s218 + $0x7c] sm:$0xf]
      %v255 = vld [vmem:[%s218 + $0x80] sm:$0x1]
      %v256 = vld [vmem:[%s218 + $0x84] sm:$0xf]
      %v257 = vld [vmem:[%s218 + $0x88] sm:$0xf]
      %v258 = vld [vmem:[%s218 + $0x8c] sm:$0x1]
      %v259 = vld [vmem:[%s218 + $0x90] sm:$0xf]
      %v260 = vld [vmem:[%s218 + $0x94] sm:$0xf]
      %v261 = vld [vmem:[%s218 + $0x98] sm:$0x1]
      %v262 = vld [vmem:[%s218 + $0x9c] sm:$0xf]
      %v263 = vld [vmem:[%s218 + $0xa0] sm:$0xf]
      %v264 = vld [vmem:[%s218 + $0xa4] sm:$0x1]
      %v265 = vld [vmem:[%s218 + $0xa8] sm:$0xf]
      %v266 = vld [vmem:[%s218 + $0xac] sm:$0xf]
      %v267 = vld [vmem:[%s218 + $0xb0] sm:$0x1]
      %v268 = vld [vmem:[%s218 + $0xb4] sm:$0xf]
      %v269 = vld [vmem:[%s218 + $0xb8] sm:$0xf]
      %v270 = vld [vmem:[%s218 + $0xbc] sm:$0x1]
      %v271 = vld [vmem:[%s218 + $0xc0] sm:$0xf]
      %v272 = vld [vmem:[%s218 + $0xc4] sm:$0xf]
      %v273 = vld [vmem:[%s218 + $0xc8] sm:$0x1]
      %v274 = vld [vmem:[%s218 + $0xcc] sm:$0xf]
      %v275 = vld [vmem:[%s218 + $0xd0] sm:$0xf]
      %v276 = vld [vmem:[%s218 + $0xd4] sm:$0x1]
      %v277 = vld [vmem:[%s1] sm:$0xf]
      %v278 = vld [vmem:[%s1 + $0x4] sm:$0xf]
      %v279 = vld [vmem:[%s1 + $0x8] sm:$0xf]
      %v280 = vld [vmem:[%s1 + $0xc] sm:$0xf]
      %v281 = vld [vmem:[%s1 + $0x10] sm:$0xf]
      %v282 = vld [vmem:[%s1 + $0x14] sm:$0xf]
      %v283 = vld [vmem:[%s1 + $0x18] sm:$0xf]
      %v284 = vld [vmem:[%s1 + $0x1c] sm:$0xf]
      %v285 = vld [vmem:[%s1 + $0x20] sm:$0xf]
      %v286 = vld [vmem:[%s1 + $0x24] sm:$0xf]
      %v287 = vld [vmem:[%s1 + $0x28] sm:$0xf]
      %v288 = vld [vmem:[%s1 + $0x2c] sm:$0xf]
      %v289 = vld [vmem:[%s1 + $0x30] sm:$0xf]
      %v290 = vld [vmem:[%s1 + $0x34] sm:$0xf]
      %v291 = vld [vmem:[%s1 + $0x38] sm:$0xf]
      %v292 = vld [vmem:[%s1 + $0x3c] sm:$0xf]
      %vm293 = vsmask.f32 3328
      %vm294 = vsmask.f32 7440
      %vm295 = vmor %vm293, %vm294
      %v297 = vshrl.u32 %v223, 16
      %v299 = vrot.slane %v297, 4
      %v300 = vshll.u32 %v223, 16
      %v302 = vrot.slane %v300, 5
      %v303 = vor.u32 %v299, %v302
      %v304 = vrot.slane %v303, 4
      %v306 = vshll.u32 %v224, 16
      %v308 = vrot.slane %v306, 5
      %v309 = vsel %vm295, %v304, %v308
      %v310 = vshrl.u32 %v224, 16
      %v312 = vrot.slane %v310, 4
      %v313 = vor.u32 %v312, %v308
      %v314 = vrot.slane %v313, 4
      %v316 = vshll.u32 %v225, 16
      %v318 = vrot.slane %v316, 5
      %v319 = vsel %vm295, %v314, %v318
      %v321 = vshrl.u32 %v226, 16
      %v323 = vrot.slane %v321, 4
      %v324 = vshll.u32 %v226, 16
      %v326 = vrot.slane %v324, 5
      %v327 = vor.u32 %v323, %v326
      %v328 = vrot.slane %v327, 4
      %v330 = vshll.u32 %v227, 16
      %v332 = vrot.slane %v330, 5
      %v333 = vsel %vm295, %v328, %v332
      %v334 = vshrl.u32 %v227, 16
      %v336 = vrot.slane %v334, 4
      %v337 = vor.u32 %v336, %v332
      %v338 = vrot.slane %v337, 4
      %v340 = vshll.u32 %v228, 16
      %v342 = vrot.slane %v340, 5
      %v343 = vsel %vm295, %v338, %v342
      %v345 = vshrl.u32 %v229, 16
      %v347 = vrot.slane %v345, 4
      %v348 = vshll.u32 %v229, 16
      %v350 = vrot.slane %v348, 5
      %v351 = vor.u32 %v347, %v350
      %v352 = vrot.slane %v351, 4
      %v354 = vshll.u32 %v230, 16
      %v356 = vrot.slane %v354, 5
      %v357 = vsel %vm295, %v352, %v356
      %v358 = vshrl.u32 %v230, 16
      %v360 = vrot.slane %v358, 4
      %v361 = vor.u32 %v360, %v356
      %v362 = vrot.slane %v361, 4
      %v364 = vshll.u32 %v231, 16
      %v366 = vrot.slane %v364, 5
      %v367 = vsel %vm295, %v362, %v366
      %v369 = vshrl.u32 %v232, 16
      %v371 = vrot.slane %v369, 4
      %v372 = vshll.u32 %v232, 16
      %v374 = vrot.slane %v372, 5
      %v375 = vor.u32 %v371, %v374
      %v376 = vrot.slane %v375, 4
      %v378 = vshll.u32 %v233, 16
      %v380 = vrot.slane %v378, 5
      %v381 = vsel %vm295, %v376, %v380
      %v382 = vshrl.u32 %v233, 16
      %v384 = vrot.slane %v382, 4
      %v385 = vor.u32 %v384, %v380
      %v386 = vrot.slane %v385, 4
      %v388 = vshll.u32 %v234, 16
      %v390 = vrot.slane %v388, 5
      %v391 = vsel %vm295, %v386, %v390
      %v393 = vshrl.u32 %v235, 16
      %v395 = vrot.slane %v393, 4
      %v396 = vshll.u32 %v235, 16
      %v398 = vrot.slane %v396, 5
      %v399 = vor.u32 %v395, %v398
      %v400 = vrot.slane %v399, 4
      %v402 = vshll.u32 %v236, 16
      %v404 = vrot.slane %v402, 5
      %v405 = vsel %vm295, %v400, %v404
      %v406 = vshrl.u32 %v236, 16
      %v408 = vrot.slane %v406, 4
      %v409 = vor.u32 %v408, %v404
      %v410 = vrot.slane %v409, 4
      %v412 = vshll.u32 %v237, 16
      %v414 = vrot.slane %v412, 5
      %v415 = vsel %vm295, %v410, %v414
      %v417 = vshrl.u32 %v238, 16
      %v419 = vrot.slane %v417, 4
      %v420 = vshll.u32 %v238, 16
      %v422 = vrot.slane %v420, 5
      %v423 = vor.u32 %v419, %v422
      %v424 = vrot.slane %v423, 4
      %v426 = vshll.u32 %v239, 16
      %v428 = vrot.slane %v426, 5
      %v429 = vsel %vm295, %v424, %v428
      %v430 = vshrl.u32 %v239, 16
      %v432 = vrot.slane %v430, 4
      %v433 = vor.u32 %v432, %v428
      %v434 = vrot.slane %v433, 4
      %v436 = vshll.u32 %v240, 16
      %v438 = vrot.slane %v436, 5
      %v439 = vsel %vm295, %v434, %v438
      %v441 = vshrl.u32 %v241, 16
      %v443 = vrot.slane %v441, 4
      %v444 = vshll.u32 %v241, 16
      %v446 = vrot.slane %v444, 5
      %v447 = vor.u32 %v443, %v446
      %v448 = vrot.slane %v447, 4
      %v450 = vshll.u32 %v242, 16
      %v452 = vrot.slane %v450, 5
      %v453 = vsel %vm295, %v448, %v452
      %v454 = vshrl.u32 %v242, 16
      %v456 = vrot.slane %v454, 4
      %v457 = vor.u32 %v456, %v452
      %v458 = vrot.slane %v457, 4
      %v460 = vshll.u32 %v243, 16
      %v462 = vrot.slane %v460, 5
      %v463 = vsel %vm295, %v458, %v462
      %v465 = vshrl.u32 %v244, 16
      %v467 = vrot.slane %v465, 4
      %v468 = vshll.u32 %v244, 16
      %v470 = vrot.slane %v468, 5
      %v471 = vor.u32 %v467, %v470
      %v472 = vrot.slane %v471, 4
      %v474 = vshll.u32 %v245, 16
      %v476 = vrot.slane %v474, 5
      %v477 = vsel %vm295, %v472, %v476
      %v478 = vshrl.u32 %v245, 16
      %v480 = vrot.slane %v478, 4
      %v481 = vor.u32 %v480, %v476
      %v482 = vrot.slane %v481, 4
      %v484 = vshll.u32 %v246, 16
      %v486 = vrot.slane %v484, 5
      %v487 = vsel %vm295, %v482, %v486
      %v489 = vshrl.u32 %v247, 16
      %v491 = vrot.slane %v489, 4
      %v492 = vshll.u32 %v247, 16
      %v494 = vrot.slane %v492, 5
      %v495 = vor.u32 %v491, %v494
      %v496 = vrot.slane %v495, 4
      %v498 = vshll.u32 %v248, 16
      %v500 = vrot.slane %v498, 5
      %v501 = vsel %vm295, %v496, %v500
      %v502 = vshrl.u32 %v248, 16
      %v504 = vrot.slane %v502, 4
      %v505 = vor.u32 %v504, %v500
      %v506 = vrot.slane %v505, 4
      %v508 = vshll.u32 %v249, 16
      %v510 = vrot.slane %v508, 5
      %v511 = vsel %vm295, %v506, %v510
      %v513 = vshrl.u32 %v250, 16
      %v515 = vrot.slane %v513, 4
      %v516 = vshll.u32 %v250, 16
      %v518 = vrot.slane %v516, 5
      %v519 = vor.u32 %v515, %v518
      %v520 = vrot.slane %v519, 4
      %v522 = vshll.u32 %v251, 16
      %v524 = vrot.slane %v522, 5
      %v525 = vsel %vm295, %v520, %v524
      %v526 = vshrl.u32 %v251, 16
      %v528 = vrot.slane %v526, 4
      %v529 = vor.u32 %v528, %v524
      %v530 = vrot.slane %v529, 4
      %v532 = vshll.u32 %v252, 16
      %v534 = vrot.slane %v532, 5
      %v535 = vsel %vm295, %v530, %v534
      %v537 = vshrl.u32 %v253, 16
      %v539 = vrot.slane %v537, 4
      %v540 = vshll.u32 %v253, 16
      %v542 = vrot.slane %v540, 5
      %v543 = vor.u32 %v539, %v542
      %v544 = vrot.slane %v543, 4
      %v546 = vshll.u32 %v254, 16
      %v548 = vrot.slane %v546, 5
      %v549 = vsel %vm295, %v544, %v548
      %v550 = vshrl.u32 %v254, 16
      %v552 = vrot.slane %v550, 4
      %v553 = vor.u32 %v552, %v548
      %v554 = vrot.slane %v553, 4
      %v556 = vshll.u32 %v255, 16
      %v558 = vrot.slane %v556, 5
      %v559 = vsel %vm295, %v554, %v558
      %v561 = vshrl.u32 %v256, 16
      %v563 = vrot.slane %v561, 4
      %v564 = vshll.u32 %v256, 16
      %v566 = vrot.slane %v564, 5
      %v567 = vor.u32 %v563, %v566
      %v568 = vrot.slane %v567, 4
      %v570 = vshll.u32 %v257, 16
      %v572 = vrot.slane %v570, 5
      %v573 = vsel %vm295, %v568, %v572
      %v574 = vshrl.u32 %v257, 16
      %v576 = vrot.slane %v574, 4
      %v577 = vor.u32 %v576, %v572
      %v578 = vrot.slane %v577, 4
      %v580 = vshll.u32 %v258, 16
      %v582 = vrot.slane %v580, 5
      %v583 = vsel %vm295, %v578, %v582
      %v585 = vshrl.u32 %v259, 16
      %v587 = vrot.slane %v585, 4
      %v588 = vshll.u32 %v259, 16
      %v590 = vrot.slane %v588, 5
      %v591 = vor.u32 %v587, %v590
      %v592 = vrot.slane %v591, 4
      %v594 = vshll.u32 %v260, 16
      %v596 = vrot.slane %v594, 5
      %v597 = vsel %vm295, %v592, %v596
      %v598 = vshrl.u32 %v260, 16
      %v600 = vrot.slane %v598, 4
      %v601 = vor.u32 %v600, %v596
      %v602 = vrot.slane %v601, 4
      %v604 = vshll.u32 %v261, 16
      %v606 = vrot.slane %v604, 5
      %v607 = vsel %vm295, %v602, %v606
      %v609 = vshrl.u32 %v262, 16
      %v611 = vrot.slane %v609, 4
      %v612 = vshll.u32 %v262, 16
      %v614 = vrot.slane %v612, 5
      %v615 = vor.u32 %v611, %v614
      %v616 = vrot.slane %v615, 4
      %v618 = vshll.u32 %v263, 16
      %v620 = vrot.slane %v618, 5
      %v621 = vsel %vm295, %v616, %v620
      %v622 = vshrl.u32 %v263, 16
      %v624 = vrot.slane %v622, 4
      %v625 = vor.u32 %v624, %v620
      %v626 = vrot.slane %v625, 4
      %v628 = vshll.u32 %v264, 16
      %v630 = vrot.slane %v628, 5
      %v631 = vsel %vm295, %v626, %v630
      %v633 = vshrl.u32 %v265, 16
      %v635 = vrot.slane %v633, 4
      %v636 = vshll.u32 %v265, 16
      %v638 = vrot.slane %v636, 5
      %v639 = vor.u32 %v635, %v638
      %v640 = vrot.slane %v639, 4
      %v642 = vshll.u32 %v266, 16
      %v644 = vrot.slane %v642, 5
      %v645 = vsel %vm295, %v640, %v644
      %v646 = vshrl.u32 %v266, 16
      %v648 = vrot.slane %v646, 4
      %v649 = vor.u32 %v648, %v644
      %v650 = vrot.slane %v649, 4
      %v652 = vshll.u32 %v267, 16
      %v654 = vrot.slane %v652, 5
      %v655 = vsel %vm295, %v650, %v654
      %v657 = vshrl.u32 %v268, 16
      %v659 = vrot.slane %v657, 4
      %v660 = vshll.u32 %v268, 16
      %v662 = vrot.slane %v660, 5
      %v663 = vor.u32 %v659, %v662
      %v664 = vrot.slane %v663, 4
      %v666 = vshll.u32 %v269, 16
      %v668 = vrot.slane %v666, 5
      %v669 = vsel %vm295, %v664, %v668
      %v670 = vshrl.u32 %v269, 16
      %v672 = vrot.slane %v670, 4
      %v673 = vor.u32 %v672, %v668
      %v674 = vrot.slane %v673, 4
      %v676 = vshll.u32 %v270, 16
      %v678 = vrot.slane %v676, 5
      %v679 = vsel %vm295, %v674, %v678
      %s680 = scalar_lea.vmem %s1, 64
      %v681 = vld [vmem:[%s680] sm:$0xf]
      %v682 = vld [vmem:[%s680 + $0x4] sm:$0xf]
      %v683 = vld [vmem:[%s680 + $0x8] sm:$0xf]
      %v684 = vld [vmem:[%s680 + $0xc] sm:$0xf]
      %v685 = vld [vmem:[%s680 + $0x10] sm:$0xf]
      %v686 = vld [vmem:[%s680 + $0x14] sm:$0xf]
      %v687 = vld [vmem:[%s680 + $0x18] sm:$0xf]
      %v688 = vld [vmem:[%s680 + $0x1c] sm:$0xf]
      %v689 = vld [vmem:[%s680 + $0x20] sm:$0xf]
      %v690 = vld [vmem:[%s680 + $0x24] sm:$0xf]
      %v691 = vld [vmem:[%s680 + $0x28] sm:$0xf]
      %v692 = vld [vmem:[%s680 + $0x2c] sm:$0xf]
      %v693 = vld [vmem:[%s680 + $0x30] sm:$0xf]
      %v694 = vld [vmem:[%s680 + $0x34] sm:$0xf]
      %v695 = vld [vmem:[%s680 + $0x38] sm:$0xf]
      %v696 = vld [vmem:[%s680 + $0x3c] sm:$0xf]
      %v697 = vunpack.c.l.b16 %v309
      %v698 = vunpack.c.l.b16 %v319
      %v699 = vunpack.c.l.b16 %v333
      %v700 = vunpack.c.l.b16 %v343
      %v701 = vunpack.c.l.b16 %v357
      %v702 = vunpack.c.l.b16 %v367
      %v703 = vunpack.c.l.b16 %v381
      %v704 = vunpack.c.l.b16 %v391
      %v705 = vunpack.c.l.b16 %v405
      %v706 = vunpack.c.l.b16 %v415
      %v707 = vunpack.c.l.b16 %v429
      %v708 = vunpack.c.l.b16 %v439
      %v709 = vunpack.c.l.b16 %v453
      %v710 = vunpack.c.l.b16 %v463
      %v711 = vunpack.c.l.b16 %v477
      %v712 = vunpack.c.l.b16 %v487
      %v713 = vunpack.c.l.b16 %v501
      %v714 = vunpack.c.l.b16 %v511
      %v715 = vunpack.c.l.b16 %v525
      %v716 = vunpack.c.l.b16 %v535
      %v717 = vunpack.c.l.b16 %v549
      %v718 = vunpack.c.l.b16 %v559
      %v719 = vunpack.c.l.b16 %v573
      %v720 = vunpack.c.l.b16 %v583
      %v721 = vunpack.c.l.b16 %v597
      %v722 = vunpack.c.l.b16 %v607
      %v723 = vunpack.c.l.b16 %v621
      %v724 = vunpack.c.l.b16 %v631
      %v725 = vunpack.c.l.b16 %v645
      %v726 = vunpack.c.l.b16 %v655
      %v727 = vunpack.c.l.b16 %v669
      %v728 = vunpack.c.l.b16 %v679
      %v729 = vpack.c.b16 %v698, %v697
      %v730 = vpack.c.b16 %v700, %v699
      %v731 = vpack.c.b16 %v702, %v701
      %v732 = vpack.c.b16 %v704, %v703
      %v733 = vpack.c.b16 %v706, %v705
      %v734 = vpack.c.b16 %v708, %v707
      %v735 = vpack.c.b16 %v710, %v709
      %v736 = vpack.c.b16 %v712, %v711
      %v737 = vpack.c.b16 %v714, %v713
      %v738 = vpack.c.b16 %v716, %v715
      %v739 = vpack.c.b16 %v718, %v717
      %v740 = vpack.c.b16 %v720, %v719
      %v741 = vpack.c.b16 %v722, %v721
      %v742 = vpack.c.b16 %v724, %v723
      %v743 = vpack.c.b16 %v726, %v725
      %v744 = vpack.c.b16 %v728, %v727
      %v777 = vunpack.c.l.b16 %v681
      %v778 = vunpack.c.l.b16 %v682
      %v779 = vunpack.c.l.b16 %v683
      %v780 = vunpack.c.l.b16 %v684
      %v781 = vunpack.c.l.b16 %v685
      %v782 = vunpack.c.l.b16 %v686
      %v783 = vunpack.c.l.b16 %v687
      %v784 = vunpack.c.l.b16 %v688
      %v785 = vunpack.c.l.b16 %v689
      %v786 = vunpack.c.l.b16 %v690
      %v787 = vunpack.c.l.b16 %v691
      %v788 = vunpack.c.l.b16 %v692
      %v789 = vunpack.c.l.b16 %v693
      %v790 = vunpack.c.l.b16 %v694
      %v791 = vunpack.c.l.b16 %v695
      %v792 = vunpack.c.l.b16 %v696
      %v793 = vpack.c.b16 %v778, %v777
      %v794 = vpack.c.b16 %v780, %v779
      %v795 = vpack.c.b16 %v782, %v781
      %v796 = vpack.c.b16 %v784, %v783
      %v797 = vpack.c.b16 %v786, %v785
      %v798 = vpack.c.b16 %v788, %v787
      %v799 = vpack.c.b16 %v790, %v789
      %v800 = vpack.c.b16 %v792, %v791
      %809 = vmatpush.bf16.msra.mxu0 %v800
      %810 = vmatpush.bf16.msra.mxu0 %v799
      %811 = vmatpush.bf16.msra.mxu0 %v798
      %812 = vmatpush.bf16.msra.mxu0 %v797
      %813 = vmatpush.bf16.msra.mxu0 %v796
      %814 = vmatpush.bf16.msra.mxu0 %v795
      %815 = vmatpush.bf16.msra.mxu0 %v794
      %816 = vmatpush.bf16.msra.mxu0 %v793
      %817 = vmatmul.bf16.gmra.mxu0 %v729
      %v818 = vpop.f32.mrf.mxu0
      %v819 = vadd.f32 0.0, %v818
      %v820 = vpop.f32.mrf.mxu0
      %v821 = vadd.f32 0.0, %v820
      %822 = vmatmul.bf16.gmra.mxu0 %v730
      %v823 = vpop.f32.mrf.mxu0
      %v824 = vadd.f32 0.0, %v823
      %v825 = vpop.f32.mrf.mxu0
      %v826 = vadd.f32 0.0, %v825
      %827 = vmatmul.bf16.gmra.mxu0 %v731
      %v828 = vpop.f32.mrf.mxu0
      %v829 = vadd.f32 0.0, %v828
      %v830 = vpop.f32.mrf.mxu0
      %v831 = vadd.f32 0.0, %v830
      %832 = vmatmul.bf16.gmra.mxu0 %v732
      %v833 = vpop.f32.mrf.mxu0
      %v834 = vadd.f32 0.0, %v833
      %v835 = vpop.f32.mrf.mxu0
      %v836 = vadd.f32 0.0, %v835
      %837 = vmatmul.bf16.gmra.mxu0 %v733
      %v838 = vpop.f32.mrf.mxu0
      %v839 = vadd.f32 0.0, %v838
      %v840 = vpop.f32.mrf.mxu0
      %v841 = vadd.f32 0.0, %v840
      %842 = vmatmul.bf16.gmra.mxu0 %v734
      %v843 = vpop.f32.mrf.mxu0
      %v844 = vadd.f32 0.0, %v843
      %v845 = vpop.f32.mrf.mxu0
      %v846 = vadd.f32 0.0, %v845
      %847 = vmatmul.bf16.gmra.mxu0 %v735
      %v848 = vpop.f32.mrf.mxu0
      %v849 = vadd.f32 0.0, %v848
      %v850 = vpop.f32.mrf.mxu0
      %v851 = vadd.f32 0.0, %v850
      %852 = vmatmul.bf16.gmra.mxu0 %v736
      %v853 = vpop.f32.mrf.mxu0
      %v854 = vadd.f32 0.0, %v853
      %v855 = vpop.f32.mrf.mxu0
      %v856 = vadd.f32 0.0, %v855
      %857 = vmatmul.bf16.gmra.mxu0 %v737
      %v858 = vpop.f32.mrf.mxu0
      %v859 = vadd.f32 0.0, %v858
      %v860 = vpop.f32.mrf.mxu0
      %v861 = vadd.f32 0.0, %v860
      %862 = vmatmul.bf16.gmra.mxu0 %v738
      %v863 = vpop.f32.mrf.mxu0
      %v864 = vadd.f32 0.0, %v863
      %v865 = vpop.f32.mrf.mxu0
      %v866 = vadd.f32 0.0, %v865
      %867 = vmatmul.bf16.gmra.mxu0 %v739
      %v868 = vpop.f32.mrf.mxu0
      %v869 = vadd.f32 0.0, %v868
      %v870 = vpop.f32.mrf.mxu0
      %v871 = vadd.f32 0.0, %v870
      %872 = vmatmul.bf16.gmra.mxu0 %v740
      %v873 = vpop.f32.mrf.mxu0
      %v874 = vadd.f32 0.0, %v873
      %v875 = vpop.f32.mrf.mxu0
      %v876 = vadd.f32 0.0, %v875
      %877 = vmatmul.bf16.gmra.mxu0 %v741
      %v878 = vpop.f32.mrf.mxu0
      %v879 = vadd.f32 0.0, %v878
      %v880 = vpop.f32.mrf.mxu0
      %v881 = vadd.f32 0.0, %v880
      %882 = vmatmul.bf16.gmra.mxu0 %v742
      %v883 = vpop.f32.mrf.mxu0
      %v884 = vadd.f32 0.0, %v883
      %v885 = vpop.f32.mrf.mxu0
      %v886 = vadd.f32 0.0, %v885
      %887 = vmatmul.bf16.gmra.mxu0 %v743
      %v888 = vpop.f32.mrf.mxu0
      %v889 = vadd.f32 0.0, %v888
      %v890 = vpop.f32.mrf.mxu0
      %v891 = vadd.f32 0.0, %v890
      %892 = vmatmul.bf16.gmra.mxu0 %v744
      %v893 = vpop.f32.mrf.mxu0
      %v894 = vadd.f32 0.0, %v893
      %v895 = vpop.f32.mrf.mxu0
      %v896 = vadd.f32 0.0, %v895
      %897 = vdwg.mxu0
      %v930 = vunpack.c.l.b16 %v223
      %v931 = vunpack.c.l.b16 %v224
      %v932 = vunpack.c.l.b16 %v226
      %v933 = vunpack.c.l.b16 %v227
      %v934 = vunpack.c.l.b16 %v229
      %v935 = vunpack.c.l.b16 %v230
      %v936 = vunpack.c.l.b16 %v232
      %v937 = vunpack.c.l.b16 %v233
      %v938 = vunpack.c.l.b16 %v235
      %v939 = vunpack.c.l.b16 %v236
      %v940 = vunpack.c.l.b16 %v238
      %v941 = vunpack.c.l.b16 %v239
      %v942 = vunpack.c.l.b16 %v241
      %v943 = vunpack.c.l.b16 %v242
      %v944 = vunpack.c.l.b16 %v244
      %v945 = vunpack.c.l.b16 %v245
      %v946 = vunpack.c.l.b16 %v247
      %v947 = vunpack.c.l.b16 %v248
      %v948 = vunpack.c.l.b16 %v250
      %v949 = vunpack.c.l.b16 %v251
      %v950 = vunpack.c.l.b16 %v253
      %v951 = vunpack.c.l.b16 %v254
      %v952 = vunpack.c.l.b16 %v256
      %v953 = vunpack.c.l.b16 %v257
      %v954 = vunpack.c.l.b16 %v259
      %v955 = vunpack.c.l.b16 %v260
      %v956 = vunpack.c.l.b16 %v262
      %v957 = vunpack.c.l.b16 %v263
      %v958 = vunpack.c.l.b16 %v265
      %v959 = vunpack.c.l.b16 %v266
      %v960 = vunpack.c.l.b16 %v268
      %v961 = vunpack.c.l.b16 %v269
      %v962 = vpack.c.b16 %v931, %v930
      %v963 = vpack.c.b16 %v933, %v932
      %v964 = vpack.c.b16 %v935, %v934
      %v965 = vpack.c.b16 %v937, %v936
      %v966 = vpack.c.b16 %v939, %v938
      %v967 = vpack.c.b16 %v941, %v940
      %v968 = vpack.c.b16 %v943, %v942
      %v969 = vpack.c.b16 %v945, %v944
      %v970 = vpack.c.b16 %v947, %v946
      %v971 = vpack.c.b16 %v949, %v948
      %v972 = vpack.c.b16 %v951, %v950
      %v973 = vpack.c.b16 %v953, %v952
      %v974 = vpack.c.b16 %v955, %v954
      %v975 = vpack.c.b16 %v957, %v956
      %v976 = vpack.c.b16 %v959, %v958
      %v977 = vpack.c.b16 %v961, %v960
      %v1010 = vunpack.c.l.b16 %v277
      %v1011 = vunpack.c.l.b16 %v278
      %v1012 = vunpack.c.l.b16 %v279
      %v1013 = vunpack.c.l.b16 %v280
      %v1014 = vunpack.c.l.b16 %v281
      %v1015 = vunpack.c.l.b16 %v282
      %v1016 = vunpack.c.l.b16 %v283
      %v1017 = vunpack.c.l.b16 %v284
      %v1018 = vunpack.c.l.b16 %v285
      %v1019 = vunpack.c.l.b16 %v286
      %v1020 = vunpack.c.l.b16 %v287
      %v1021 = vunpack.c.l.b16 %v288
      %v1022 = vunpack.c.l.b16 %v289
      %v1023 = vunpack.c.l.b16 %v290
      %v1024 = vunpack.c.l.b16 %v291
      %v1025 = vunpack.c.l.b16 %v292
      %v1026 = vpack.c.b16 %v1011, %v1010
      %v1027 = vpack.c.b16 %v1013, %v1012
      %v1028 = vpack.c.b16 %v1015, %v1014
      %v1029 = vpack.c.b16 %v1017, %v1016
      %v1030 = vpack.c.b16 %v1019, %v1018
      %v1031 = vpack.c.b16 %v1021, %v1020
      %v1032 = vpack.c.b16 %v1023, %v1022
      %v1033 = vpack.c.b16 %v1025, %v1024
      %1042 = vmatpush.bf16.msra.mxu0 %v1033
      %1043 = vmatpush.bf16.msra.mxu0 %v1032
      %1044 = vmatpush.bf16.msra.mxu0 %v1031
      %1045 = vmatpush.bf16.msra.mxu0 %v1030
      %1046 = vmatpush.bf16.msra.mxu0 %v1029
      %1047 = vmatpush.bf16.msra.mxu0 %v1028
      %1048 = vmatpush.bf16.msra.mxu0 %v1027
      %1049 = vmatpush.bf16.msra.mxu0 %v1026
      %1050 = vmatmul.bf16.gmra.mxu0 %v962
      %v1051 = vpop.f32.mrf.mxu0
      %v1052 = vadd.f32 %v819, %v1051
      %v1053 = vpop.f32.mrf.mxu0
      %v1054 = vadd.f32 %v821, %v1053
      %1055 = vmatmul.bf16.gmra.mxu0 %v963
      %v1056 = vpop.f32.mrf.mxu0
      %v1057 = vadd.f32 %v824, %v1056
      %v1058 = vpop.f32.mrf.mxu0
      %v1059 = vadd.f32 %v826, %v1058
      %1060 = vmatmul.bf16.gmra.mxu0 %v964
      %v1061 = vpop.f32.mrf.mxu0
      %v1062 = vadd.f32 %v829, %v1061
      %v1063 = vpop.f32.mrf.mxu0
      %v1064 = vadd.f32 %v831, %v1063
      %1065 = vmatmul.bf16.gmra.mxu0 %v965
      %v1066 = vpop.f32.mrf.mxu0
      %v1067 = vadd.f32 %v834, %v1066
      %v1068 = vpop.f32.mrf.mxu0
      %v1069 = vadd.f32 %v836, %v1068
      %1070 = vmatmul.bf16.gmra.mxu0 %v966
      %v1071 = vpop.f32.mrf.mxu0
      %v1072 = vadd.f32 %v839, %v1071
      %v1073 = vpop.f32.mrf.mxu0
      %v1074 = vadd.f32 %v841, %v1073
      %1075 = vmatmul.bf16.gmra.mxu0 %v967
      %v1076 = vpop.f32.mrf.mxu0
      %v1077 = vadd.f32 %v844, %v1076
      %v1078 = vpop.f32.mrf.mxu0
      %v1079 = vadd.f32 %v846, %v1078
      %1080 = vmatmul.bf16.gmra.mxu0 %v968
      %v1081 = vpop.f32.mrf.mxu0
      %v1082 = vadd.f32 %v849, %v1081
      %v1083 = vpop.f32.mrf.mxu0
      %v1084 = vadd.f32 %v851, %v1083
      %1085 = vmatmul.bf16.gmra.mxu0 %v969
      %v1086 = vpop.f32.mrf.mxu0
      %v1087 = vadd.f32 %v854, %v1086
      %v1088 = vpop.f32.mrf.mxu0
      %v1089 = vadd.f32 %v856, %v1088
      %1090 = vmatmul.bf16.gmra.mxu0 %v970
      %v1091 = vpop.f32.mrf.mxu0
      %v1092 = vadd.f32 %v859, %v1091
      %v1093 = vpop.f32.mrf.mxu0
      %v1094 = vadd.f32 %v861, %v1093
      %1095 = vmatmul.bf16.gmra.mxu0 %v971
      %v1096 = vpop.f32.mrf.mxu0
      %v1097 = vadd.f32 %v864, %v1096
      %v1098 = vpop.f32.mrf.mxu0
      %v1099 = vadd.f32 %v866, %v1098
      %1100 = vmatmul.bf16.gmra.mxu0 %v972
      %v1101 = vpop.f32.mrf.mxu0
      %v1102 = vadd.f32 %v869, %v1101
      %v1103 = vpop.f32.mrf.mxu0
      %v1104 = vadd.f32 %v871, %v1103
      %1105 = vmatmul.bf16.gmra.mxu0 %v973
      %v1106 = vpop.f32.mrf.mxu0
      %v1107 = vadd.f32 %v874, %v1106
      %v1108 = vpop.f32.mrf.mxu0
      %v1109 = vadd.f32 %v876, %v1108
      %1110 = vmatmul.bf16.gmra.mxu0 %v974
      %v1111 = vpop.f32.mrf.mxu0
      %v1112 = vadd.f32 %v879, %v1111
      %v1113 = vpop.f32.mrf.mxu0
      %v1114 = vadd.f32 %v881, %v1113
      %1115 = vmatmul.bf16.gmra.mxu0 %v975
      %v1116 = vpop.f32.mrf.mxu0
      %v1117 = vadd.f32 %v884, %v1116
      %v1118 = vpop.f32.mrf.mxu0
      %v1119 = vadd.f32 %v886, %v1118
      %1120 = vmatmul.bf16.gmra.mxu0 %v976
      %v1121 = vpop.f32.mrf.mxu0
      %v1122 = vadd.f32 %v889, %v1121
      %v1123 = vpop.f32.mrf.mxu0
      %v1124 = vadd.f32 %v891, %v1123
      %1125 = vmatmul.bf16.gmra.mxu0 %v977
      %v1126 = vpop.f32.mrf.mxu0
      %v1127 = vadd.f32 %v894, %v1126
      %v1128 = vpop.f32.mrf.mxu0
      %v1129 = vadd.f32 %v896, %v1128
      %1130 = vdwg.mxu0
      %vm1147 = vcmask 1042432
      %vm1148 = vcmask 1046532
      %vm1149 = vmor %vm1147, %vm1148
      %v1150 = vrot.slane %v223, 5
      %v1151 = vrot.slane %v1150, 4
      %v1152 = vrot.slane %v224, 5
      %v1153 = vsel %vm1149, %v1151, %v1152
      %v1154 = vrot.slane %v1152, 4
      %v1155 = vrot.slane %v225, 5
      %v1156 = vsel %vm1149, %v1154, %v1155
      %v1157 = vrot.slane %v226, 5
      %v1158 = vrot.slane %v1157, 4
      %v1159 = vrot.slane %v227, 5
      %v1160 = vsel %vm1149, %v1158, %v1159
      %v1161 = vrot.slane %v1159, 4
      %v1162 = vrot.slane %v228, 5
      %v1163 = vsel %vm1149, %v1161, %v1162
      %v1164 = vrot.slane %v229, 5
      %v1165 = vrot.slane %v1164, 4
      %v1166 = vrot.slane %v230, 5
      %v1167 = vsel %vm1149, %v1165, %v1166
      %v1168 = vrot.slane %v1166, 4
      %v1169 = vrot.slane %v231, 5
      %v1170 = vsel %vm1149, %v1168, %v1169
      %v1171 = vrot.slane %v232, 5
      %v1172 = vrot.slane %v1171, 4
      %v1173 = vrot.slane %v233, 5
      %v1174 = vsel %vm1149, %v1172, %v1173
      %v1175 = vrot.slane %v1173, 4
      %v1176 = vrot.slane %v234, 5
      %v1177 = vsel %vm1149, %v1175, %v1176
      %v1178 = vrot.slane %v235, 5
      %v1179 = vrot.slane %v1178, 4
      %v1180 = vrot.slane %v236, 5
      %v1181 = vsel %vm1149, %v1179, %v1180
      %v1182 = vrot.slane %v1180, 4
      %v1183 = vrot.slane %v237, 5
      %v1184 = vsel %vm1149, %v1182, %v1183
      %v1185 = vrot.slane %v238, 5
      %v1186 = vrot.slane %v1185, 4
      %v1187 = vrot.slane %v239, 5
      %v1188 = vsel %vm1149, %v1186, %v1187
      %v1189 = vrot.slane %v1187, 4
      %v1190 = vrot.slane %v240, 5
      %v1191 = vsel %vm1149, %v1189, %v1190
      %v1192 = vrot.slane %v241, 5
      %v1193 = vrot.slane %v1192, 4
      %v1194 = vrot.slane %v242, 5
      %v1195 = vsel %vm1149, %v1193, %v1194
      %v1196 = vrot.slane %v1194, 4
      %v1197 = vrot.slane %v243, 5
      %v1198 = vsel %vm1149, %v1196, %v1197
      %v1199 = vrot.slane %v244, 5
      %v1200 = vrot.slane %v1199, 4
      %v1201 = vrot.slane %v245, 5
      %v1202 = vsel %vm1149, %v1200, %v1201
      %v1203 = vrot.slane %v1201, 4
      %v1204 = vrot.slane %v246, 5
      %v1205 = vsel %vm1149, %v1203, %v1204
      %v1206 = vrot.slane %v247, 5
      %v1207 = vrot.slane %v1206, 4
      %v1208 = vrot.slane %v248, 5
      %v1209 = vsel %vm1149, %v1207, %v1208
      %v1210 = vrot.slane %v1208, 4
      %v1211 = vrot.slane %v249, 5
      %v1212 = vsel %vm1149, %v1210, %v1211
      %v1213 = vrot.slane %v250, 5
      %v1214 = vrot.slane %v1213, 4
      %v1215 = vrot.slane %v251, 5
      %v1216 = vsel %vm1149, %v1214, %v1215
      %v1217 = vrot.slane %v1215, 4
      %v1218 = vrot.slane %v252, 5
      %v1219 = vsel %vm1149, %v1217, %v1218
      %v1220 = vrot.slane %v253, 5
      %v1221 = vrot.slane %v1220, 4
      %v1222 = vrot.slane %v254, 5
      %v1223 = vsel %vm1149, %v1221, %v1222
      %v1224 = vrot.slane %v1222, 4
      %v1225 = vrot.slane %v255, 5
      %v1226 = vsel %vm1149, %v1224, %v1225
      %v1227 = vrot.slane %v256, 5
      %v1228 = vrot.slane %v1227, 4
      %v1229 = vrot.slane %v257, 5
      %v1230 = vsel %vm1149, %v1228, %v1229
      %v1231 = vrot.slane %v1229, 4
      %v1232 = vrot.slane %v258, 5
      %v1233 = vsel %vm1149, %v1231, %v1232
      %v1234 = vrot.slane %v259, 5
      %v1235 = vrot.slane %v1234, 4
      %v1236 = vrot.slane %v260, 5
      %v1237 = vsel %vm1149, %v1235, %v1236
      %v1238 = vrot.slane %v1236, 4
      %v1239 = vrot.slane %v261, 5
      %v1240 = vsel %vm1149, %v1238, %v1239
      %v1241 = vrot.slane %v262, 5
      %v1242 = vrot.slane %v1241, 4
      %v1243 = vrot.slane %v263, 5
      %v1244 = vsel %vm1149, %v1242, %v1243
      %v1245 = vrot.slane %v1243, 4
      %v1246 = vrot.slane %v264, 5
      %v1247 = vsel %vm1149, %v1245, %v1246
      %v1248 = vrot.slane %v265, 5
      %v1249 = vrot.slane %v1248, 4
      %v1250 = vrot.slane %v266, 5
      %v1251 = vsel %vm1149, %v1249, %v1250
      %v1252 = vrot.slane %v1250, 4
      %v1253 = vrot.slane %v267, 5
      %v1254 = vsel %vm1149, %v1252, %v1253
      %v1255 = vrot.slane %v268, 5
      %v1256 = vrot.slane %v1255, 4
      %v1257 = vrot.slane %v269, 5
      %v1258 = vsel %vm1149, %v1256, %v1257
      %v1259 = vrot.slane %v1257, 4
      %v1260 = vrot.slane %v270, 5
      %v1261 = vsel %vm1149, %v1259, %v1260
      %s1262 = scalar_lea.vmem %s1, 128
      %v1263 = vld [vmem:[%s1262] sm:$0xf]
      %v1264 = vld [vmem:[%s1262 + $0x4] sm:$0xf]
      %v1265 = vld [vmem:[%s1262 + $0x8] sm:$0xf]
      %v1266 = vld [vmem:[%s1262 + $0xc] sm:$0xf]
      %v1267 = vld [vmem:[%s1262 + $0x10] sm:$0xf]
      %v1268 = vld [vmem:[%s1262 + $0x14] sm:$0xf]
      %v1269 = vld [vmem:[%s1262 + $0x18] sm:$0xf]
      %v1270 = vld [vmem:[%s1262 + $0x1c] sm:$0xf]
      %v1271 = vld [vmem:[%s1262 + $0x20] sm:$0xf]
      %v1272 = vld [vmem:[%s1262 + $0x24] sm:$0xf]
      %v1273 = vld [vmem:[%s1262 + $0x28] sm:$0xf]
      %v1274 = vld [vmem:[%s1262 + $0x2c] sm:$0xf]
      %v1275 = vld [vmem:[%s1262 + $0x30] sm:$0xf]
      %v1276 = vld [vmem:[%s1262 + $0x34] sm:$0xf]
      %v1277 = vld [vmem:[%s1262 + $0x38] sm:$0xf]
      %v1278 = vld [vmem:[%s1262 + $0x3c] sm:$0xf]
      %v1279 = vunpack.c.l.b16 %v1153
      %v1280 = vunpack.c.l.b16 %v1156
      %v1281 = vunpack.c.l.b16 %v1160
      %v1282 = vunpack.c.l.b16 %v1163
      %v1283 = vunpack.c.l.b16 %v1167
      %v1284 = vunpack.c.l.b16 %v1170
      %v1285 = vunpack.c.l.b16 %v1174
      %v1286 = vunpack.c.l.b16 %v1177
      %v1287 = vunpack.c.l.b16 %v1181
      %v1288 = vunpack.c.l.b16 %v1184
      %v1289 = vunpack.c.l.b16 %v1188
      %v1290 = vunpack.c.l.b16 %v1191
      %v1291 = vunpack.c.l.b16 %v1195
      %v1292 = vunpack.c.l.b16 %v1198
      %v1293 = vunpack.c.l.b16 %v1202
      %v1294 = vunpack.c.l.b16 %v1205
      %v1295 = vunpack.c.l.b16 %v1209
      %v1296 = vunpack.c.l.b16 %v1212
      %v1297 = vunpack.c.l.b16 %v1216
      %v1298 = vunpack.c.l.b16 %v1219
      %v1299 = vunpack.c.l.b16 %v1223
      %v1300 = vunpack.c.l.b16 %v1226
      %v1301 = vunpack.c.l.b16 %v1230
      %v1302 = vunpack.c.l.b16 %v1233
      %v1303 = vunpack.c.l.b16 %v1237
      %v1304 = vunpack.c.l.b16 %v1240
      %v1305 = vunpack.c.l.b16 %v1244
      %v1306 = vunpack.c.l.b16 %v1247
      %v1307 = vunpack.c.l.b16 %v1251
      %v1308 = vunpack.c.l.b16 %v1254
      %v1309 = vunpack.c.l.b16 %v1258
      %v1310 = vunpack.c.l.b16 %v1261
      %v1311 = vpack.c.b16 %v1280, %v1279
      %v1312 = vpack.c.b16 %v1282, %v1281
      %v1313 = vpack.c.b16 %v1284, %v1283
      %v1314 = vpack.c.b16 %v1286, %v1285
      %v1315 = vpack.c.b16 %v1288, %v1287
      %v1316 = vpack.c.b16 %v1290, %v1289
      %v1317 = vpack.c.b16 %v1292, %v1291
      %v1318 = vpack.c.b16 %v1294, %v1293
      %v1319 = vpack.c.b16 %v1296, %v1295
      %v1320 = vpack.c.b16 %v1298, %v1297
      %v1321 = vpack.c.b16 %v1300, %v1299
      %v1322 = vpack.c.b16 %v1302, %v1301
      %v1323 = vpack.c.b16 %v1304, %v1303
      %v1324 = vpack.c.b16 %v1306, %v1305
      %v1325 = vpack.c.b16 %v1308, %v1307
      %v1326 = vpack.c.b16 %v1310, %v1309
      %v1359 = vunpack.c.l.b16 %v1263
      %v1360 = vunpack.c.l.b16 %v1264
      %v1361 = vunpack.c.l.b16 %v1265
      %v1362 = vunpack.c.l.b16 %v1266
      %v1363 = vunpack.c.l.b16 %v1267
      %v1364 = vunpack.c.l.b16 %v1268
      %v1365 = vunpack.c.l.b16 %v1269
      %v1366 = vunpack.c.l.b16 %v1270
      %v1367 = vunpack.c.l.b16 %v1271
      %v1368 = vunpack.c.l.b16 %v1272
      %v1369 = vunpack.c.l.b16 %v1273
      %v1370 = vunpack.c.l.b16 %v1274
      %v1371 = vunpack.c.l.b16 %v1275
      %v1372 = vunpack.c.l.b16 %v1276
      %v1373 = vunpack.c.l.b16 %v1277
      %v1374 = vunpack.c.l.b16 %v1278
      %v1375 = vpack.c.b16 %v1360, %v1359
      %v1376 = vpack.c.b16 %v1362, %v1361
      %v1377 = vpack.c.b16 %v1364, %v1363
      %v1378 = vpack.c.b16 %v1366, %v1365
      %v1379 = vpack.c.b16 %v1368, %v1367
      %v1380 = vpack.c.b16 %v1370, %v1369
      %v1381 = vpack.c.b16 %v1372, %v1371
      %v1382 = vpack.c.b16 %v1374, %v1373
      %1391 = vmatpush.bf16.msra.mxu0 %v1382
      %1392 = vmatpush.bf16.msra.mxu0 %v1381
      %1393 = vmatpush.bf16.msra.mxu0 %v1380
      %1394 = vmatpush.bf16.msra.mxu0 %v1379
      %1395 = vmatpush.bf16.msra.mxu0 %v1378
      %1396 = vmatpush.bf16.msra.mxu0 %v1377
      %1397 = vmatpush.bf16.msra.mxu0 %v1376
      %1398 = vmatpush.bf16.msra.mxu0 %v1375
      %1399 = vmatmul.bf16.gmra.mxu0 %v1311
      %v1400 = vpop.f32.mrf.mxu0
      %v1401 = vadd.f32 0.0, %v1400
      %v1402 = vpop.f32.mrf.mxu0
      %v1403 = vadd.f32 0.0, %v1402
      %1404 = vmatmul.bf16.gmra.mxu0 %v1312
      %v1405 = vpop.f32.mrf.mxu0
      %v1406 = vadd.f32 0.0, %v1405
      %v1407 = vpop.f32.mrf.mxu0
      %v1408 = vadd.f32 0.0, %v1407
      %1409 = vmatmul.bf16.gmra.mxu0 %v1313
      %v1410 = vpop.f32.mrf.mxu0
      %v1411 = vadd.f32 0.0, %v1410
      %v1412 = vpop.f32.mrf.mxu0
      %v1413 = vadd.f32 0.0, %v1412
      %1414 = vmatmul.bf16.gmra.mxu0 %v1314
      %v1415 = vpop.f32.mrf.mxu0
      %v1416 = vadd.f32 0.0, %v1415
      %v1417 = vpop.f32.mrf.mxu0
      %v1418 = vadd.f32 0.0, %v1417
      %1419 = vmatmul.bf16.gmra.mxu0 %v1315
      %v1420 = vpop.f32.mrf.mxu0
      %v1421 = vadd.f32 0.0, %v1420
      %v1422 = vpop.f32.mrf.mxu0
      %v1423 = vadd.f32 0.0, %v1422
      %1424 = vmatmul.bf16.gmra.mxu0 %v1316
      %v1425 = vpop.f32.mrf.mxu0
      %v1426 = vadd.f32 0.0, %v1425
      %v1427 = vpop.f32.mrf.mxu0
      %v1428 = vadd.f32 0.0, %v1427
      %1429 = vmatmul.bf16.gmra.mxu0 %v1317
      %v1430 = vpop.f32.mrf.mxu0
      %v1431 = vadd.f32 0.0, %v1430
      %v1432 = vpop.f32.mrf.mxu0
      %v1433 = vadd.f32 0.0, %v1432
      %1434 = vmatmul.bf16.gmra.mxu0 %v1318
      %v1435 = vpop.f32.mrf.mxu0
      %v1436 = vadd.f32 0.0, %v1435
      %v1437 = vpop.f32.mrf.mxu0
      %v1438 = vadd.f32 0.0, %v1437
      %1439 = vmatmul.bf16.gmra.mxu0 %v1319
      %v1440 = vpop.f32.mrf.mxu0
      %v1441 = vadd.f32 0.0, %v1440
      %v1442 = vpop.f32.mrf.mxu0
      %v1443 = vadd.f32 0.0, %v1442
      %1444 = vmatmul.bf16.gmra.mxu0 %v1320
      %v1445 = vpop.f32.mrf.mxu0
      %v1446 = vadd.f32 0.0, %v1445
      %v1447 = vpop.f32.mrf.mxu0
      %v1448 = vadd.f32 0.0, %v1447
      %1449 = vmatmul.bf16.gmra.mxu0 %v1321
      %v1450 = vpop.f32.mrf.mxu0
      %v1451 = vadd.f32 0.0, %v1450
      %v1452 = vpop.f32.mrf.mxu0
      %v1453 = vadd.f32 0.0, %v1452
      %1454 = vmatmul.bf16.gmra.mxu0 %v1322
      %v1455 = vpop.f32.mrf.mxu0
      %v1456 = vadd.f32 0.0, %v1455
      %v1457 = vpop.f32.mrf.mxu0
      %v1458 = vadd.f32 0.0, %v1457
      %1459 = vmatmul.bf16.gmra.mxu0 %v1323
      %v1460 = vpop.f32.mrf.mxu0
      %v1461 = vadd.f32 0.0, %v1460
      %v1462 = vpop.f32.mrf.mxu0
      %v1463 = vadd.f32 0.0, %v1462
      %1464 = vmatmul.bf16.gmra.mxu0 %v1324
      %v1465 = vpop.f32.mrf.mxu0
      %v1466 = vadd.f32 0.0, %v1465
      %v1467 = vpop.f32.mrf.mxu0
      %v1468 = vadd.f32 0.0, %v1467
      %1469 = vmatmul.bf16.gmra.mxu0 %v1325
      %v1470 = vpop.f32.mrf.mxu0
      %v1471 = vadd.f32 0.0, %v1470
      %v1472 = vpop.f32.mrf.mxu0
      %v1473 = vadd.f32 0.0, %v1472
      %1474 = vmatmul.bf16.gmra.mxu0 %v1326
      %v1475 = vpop.f32.mrf.mxu0
      %v1476 = vadd.f32 0.0, %v1475
      %v1477 = vpop.f32.mrf.mxu0
      %v1478 = vadd.f32 0.0, %v1477
      %1479 = vdwg.mxu0
      %v1480 = vadd.f32 %v1052, %v1401
      %v1481 = vadd.f32 %v1054, %v1403
      %v1482 = vadd.f32 %v1057, %v1406
      %v1483 = vadd.f32 %v1059, %v1408
      %v1484 = vadd.f32 %v1062, %v1411
      %v1485 = vadd.f32 %v1064, %v1413
      %v1486 = vadd.f32 %v1067, %v1416
      %v1487 = vadd.f32 %v1069, %v1418
      %v1488 = vadd.f32 %v1072, %v1421
      %v1489 = vadd.f32 %v1074, %v1423
      %v1490 = vadd.f32 %v1077, %v1426
      %v1491 = vadd.f32 %v1079, %v1428
      %v1492 = vadd.f32 %v1082, %v1431
      %v1493 = vadd.f32 %v1084, %v1433
      %v1494 = vadd.f32 %v1087, %v1436
      %v1495 = vadd.f32 %v1089, %v1438
      %v1496 = vadd.f32 %v1092, %v1441
      %v1497 = vadd.f32 %v1094, %v1443
      %v1498 = vadd.f32 %v1097, %v1446
      %v1499 = vadd.f32 %v1099, %v1448
      %v1500 = vadd.f32 %v1102, %v1451
      %v1501 = vadd.f32 %v1104, %v1453
      %v1502 = vadd.f32 %v1107, %v1456
      %v1503 = vadd.f32 %v1109, %v1458
      %v1504 = vadd.f32 %v1112, %v1461
      %v1505 = vadd.f32 %v1114, %v1463
      %v1506 = vadd.f32 %v1117, %v1466
      %v1507 = vadd.f32 %v1119, %v1468
      %v1508 = vadd.f32 %v1122, %v1471
      %v1509 = vadd.f32 %v1124, %v1473
      %v1510 = vadd.f32 %v1127, %v1476
      %v1511 = vadd.f32 %v1129, %v1478
      %s1512 = scalar_lea.vmem %s1, 192
      %v1513 = vld [vmem:[%s1512] sm:$0xf]
      %v1514 = vld [vmem:[%s1512 + $0x4] sm:$0xf]
      %v1515 = vld [vmem:[%s1512 + $0x8] sm:$0xf]
      %v1516 = vld [vmem:[%s1512 + $0xc] sm:$0xf]
      %v1517 = vld [vmem:[%s1512 + $0x10] sm:$0xf]
      %v1518 = vld [vmem:[%s1512 + $0x14] sm:$0xf]
      %v1519 = vld [vmem:[%s1512 + $0x18] sm:$0xf]
      %v1520 = vld [vmem:[%s1512 + $0x1c] sm:$0xf]
      %v1521 = vld [vmem:[%s1512 + $0x20] sm:$0xf]
      %v1522 = vld [vmem:[%s1512 + $0x24] sm:$0xf]
      %v1523 = vld [vmem:[%s1512 + $0x28] sm:$0xf]
      %v1524 = vld [vmem:[%s1512 + $0x2c] sm:$0xf]
      %v1525 = vld [vmem:[%s1512 + $0x30] sm:$0xf]
      %v1526 = vld [vmem:[%s1512 + $0x34] sm:$0xf]
      %v1527 = vld [vmem:[%s1512 + $0x38] sm:$0xf]
      %v1528 = vld [vmem:[%s1512 + $0x3c] sm:$0xf]
      %v1531 = vunpack.c.l.b16 %v271
      %v1532 = vunpack.c.l.b16 %v272
      %v1533 = vpack.c.b16 %v1532, %v1531
      %v1551 = vunpack.c.l.b16 %v1513
      %v1552 = vunpack.c.l.b16 %v1514
      %v1553 = vunpack.c.l.b16 %v1515
      %v1554 = vunpack.c.l.b16 %v1516
      %v1555 = vunpack.c.l.b16 %v1517
      %v1556 = vunpack.c.l.b16 %v1518
      %v1557 = vunpack.c.l.b16 %v1519
      %v1558 = vunpack.c.l.b16 %v1520
      %v1559 = vunpack.c.l.b16 %v1521
      %v1560 = vunpack.c.l.b16 %v1522
      %v1561 = vunpack.c.l.b16 %v1523
      %v1562 = vunpack.c.l.b16 %v1524
      %v1563 = vunpack.c.l.b16 %v1525
      %v1564 = vunpack.c.l.b16 %v1526
      %v1565 = vunpack.c.l.b16 %v1527
      %v1566 = vunpack.c.l.b16 %v1528
      %v1567 = vpack.c.b16 %v1552, %v1551
      %v1568 = vpack.c.b16 %v1554, %v1553
      %v1569 = vpack.c.b16 %v1556, %v1555
      %v1570 = vpack.c.b16 %v1558, %v1557
      %v1571 = vpack.c.b16 %v1560, %v1559
      %v1572 = vpack.c.b16 %v1562, %v1561
      %v1573 = vpack.c.b16 %v1564, %v1563
      %v1574 = vpack.c.b16 %v1566, %v1565
      %1583 = vmatpush.bf16.msra.mxu0 %v1574
      %1584 = vmatpush.bf16.msra.mxu0 %v1573
      %1585 = vmatpush.bf16.msra.mxu0 %v1572
      %1586 = vmatpush.bf16.msra.mxu0 %v1571
      %1587 = vmatpush.bf16.msra.mxu0 %v1570
      %1588 = vmatpush.bf16.msra.mxu0 %v1569
      %1589 = vmatpush.bf16.msra.mxu0 %v1568
      %1590 = vmatpush.bf16.msra.mxu0 %v1567
      %1591 = vmatmul.bf16.gmra.mxu0 %v963
      %v1592 = vpop.f32.mrf.mxu0
      %v1593 = vadd.f32 0.0, %v1592
      %v1594 = vpop.f32.mrf.mxu0
      %v1595 = vadd.f32 0.0, %v1594
      %1596 = vmatmul.bf16.gmra.mxu0 %v964
      %v1597 = vpop.f32.mrf.mxu0
      %v1598 = vadd.f32 0.0, %v1597
      %v1599 = vpop.f32.mrf.mxu0
      %v1600 = vadd.f32 0.0, %v1599
      %1601 = vmatmul.bf16.gmra.mxu0 %v965
      %v1602 = vpop.f32.mrf.mxu0
      %v1603 = vadd.f32 0.0, %v1602
      %v1604 = vpop.f32.mrf.mxu0
      %v1605 = vadd.f32 0.0, %v1604
      %1606 = vmatmul.bf16.gmra.mxu0 %v966
      %v1607 = vpop.f32.mrf.mxu0
      %v1608 = vadd.f32 0.0, %v1607
      %v1609 = vpop.f32.mrf.mxu0
      %v1610 = vadd.f32 0.0, %v1609
      %1611 = vmatmul.bf16.gmra.mxu0 %v967
      %v1612 = vpop.f32.mrf.mxu0
      %v1613 = vadd.f32 0.0, %v1612
      %v1614 = vpop.f32.mrf.mxu0
      %v1615 = vadd.f32 0.0, %v1614
      %1616 = vmatmul.bf16.gmra.mxu0 %v968
      %v1617 = vpop.f32.mrf.mxu0
      %v1618 = vadd.f32 0.0, %v1617
      %v1619 = vpop.f32.mrf.mxu0
      %v1620 = vadd.f32 0.0, %v1619
      %1621 = vmatmul.bf16.gmra.mxu0 %v969
      %v1622 = vpop.f32.mrf.mxu0
      %v1623 = vadd.f32 0.0, %v1622
      %v1624 = vpop.f32.mrf.mxu0
      %v1625 = vadd.f32 0.0, %v1624
      %1626 = vmatmul.bf16.gmra.mxu0 %v970
      %v1627 = vpop.f32.mrf.mxu0
      %v1628 = vadd.f32 0.0, %v1627
      %v1629 = vpop.f32.mrf.mxu0
      %v1630 = vadd.f32 0.0, %v1629
      %1631 = vmatmul.bf16.gmra.mxu0 %v971
      %v1632 = vpop.f32.mrf.mxu0
      %v1633 = vadd.f32 0.0, %v1632
      %v1634 = vpop.f32.mrf.mxu0
      %v1635 = vadd.f32 0.0, %v1634
      %1636 = vmatmul.bf16.gmra.mxu0 %v972
      %v1637 = vpop.f32.mrf.mxu0
      %v1638 = vadd.f32 0.0, %v1637
      %v1639 = vpop.f32.mrf.mxu0
      %v1640 = vadd.f32 0.0, %v1639
      %1641 = vmatmul.bf16.gmra.mxu0 %v973
      %v1642 = vpop.f32.mrf.mxu0
      %v1643 = vadd.f32 0.0, %v1642
      %v1644 = vpop.f32.mrf.mxu0
      %v1645 = vadd.f32 0.0, %v1644
      %1646 = vmatmul.bf16.gmra.mxu0 %v974
      %v1647 = vpop.f32.mrf.mxu0
      %v1648 = vadd.f32 0.0, %v1647
      %v1649 = vpop.f32.mrf.mxu0
      %v1650 = vadd.f32 0.0, %v1649
      %1651 = vmatmul.bf16.gmra.mxu0 %v975
      %v1652 = vpop.f32.mrf.mxu0
      %v1653 = vadd.f32 0.0, %v1652
      %v1654 = vpop.f32.mrf.mxu0
      %v1655 = vadd.f32 0.0, %v1654
      %1656 = vmatmul.bf16.gmra.mxu0 %v976
      %v1657 = vpop.f32.mrf.mxu0
      %v1658 = vadd.f32 0.0, %v1657
      %v1659 = vpop.f32.mrf.mxu0
      %v1660 = vadd.f32 0.0, %v1659
      %1661 = vmatmul.bf16.gmra.mxu0 %v977
      %v1662 = vpop.f32.mrf.mxu0
      %v1663 = vadd.f32 0.0, %v1662
      %v1664 = vpop.f32.mrf.mxu0
      %v1665 = vadd.f32 0.0, %v1664
      %1666 = vmatmul.bf16.gmra.mxu0 %v1533
      %v1667 = vpop.f32.mrf.mxu0
      %v1668 = vadd.f32 0.0, %v1667
      %v1669 = vpop.f32.mrf.mxu0
      %v1670 = vadd.f32 0.0, %v1669
      %1671 = vdwg.mxu0
      %v1672 = vadd.f32 %v1480, %v1593
      %v1673 = vadd.f32 %v1481, %v1595
      %v1674 = vadd.f32 %v1482, %v1598
      %v1675 = vadd.f32 %v1483, %v1600
      %v1676 = vadd.f32 %v1484, %v1603
      %v1677 = vadd.f32 %v1485, %v1605
      %v1678 = vadd.f32 %v1486, %v1608
      %v1679 = vadd.f32 %v1487, %v1610
      %v1680 = vadd.f32 %v1488, %v1613
      %v1681 = vadd.f32 %v1489, %v1615
      %v1682 = vadd.f32 %v1490, %v1618
      %v1683 = vadd.f32 %v1491, %v1620
      %v1684 = vadd.f32 %v1492, %v1623
      %v1685 = vadd.f32 %v1493, %v1625
      %v1686 = vadd.f32 %v1494, %v1628
      %v1687 = vadd.f32 %v1495, %v1630
      %v1688 = vadd.f32 %v1496, %v1633
      %v1689 = vadd.f32 %v1497, %v1635
      %v1690 = vadd.f32 %v1498, %v1638
      %v1691 = vadd.f32 %v1499, %v1640
      %v1692 = vadd.f32 %v1500, %v1643
      %v1693 = vadd.f32 %v1501, %v1645
      %v1694 = vadd.f32 %v1502, %v1648
      %v1695 = vadd.f32 %v1503, %v1650
      %v1696 = vadd.f32 %v1504, %v1653
      %v1697 = vadd.f32 %v1505, %v1655
      %v1698 = vadd.f32 %v1506, %v1658
      %v1699 = vadd.f32 %v1507, %v1660
      %v1700 = vadd.f32 %v1508, %v1663
      %v1701 = vadd.f32 %v1509, %v1665
      %v1702 = vadd.f32 %v1510, %v1668
      %v1703 = vadd.f32 %v1511, %v1670
      %v1705 = vshrl.u32 %v271, 16
      %v1707 = vrot.slane %v1705, 4
      %v1708 = vshll.u32 %v271, 16
      %v1710 = vrot.slane %v1708, 5
      %v1711 = vor.u32 %v1707, %v1710
      %v1712 = vrot.slane %v1711, 4
      %v1714 = vshll.u32 %v272, 16
      %v1716 = vrot.slane %v1714, 5
      %v1717 = vsel %vm295, %v1712, %v1716
      %v1718 = vshrl.u32 %v272, 16
      %v1720 = vrot.slane %v1718, 4
      %v1721 = vor.u32 %v1720, %v1716
      %v1722 = vrot.slane %v1721, 4
      %v1724 = vshll.u32 %v273, 16
      %v1726 = vrot.slane %v1724, 5
      %v1727 = vsel %vm295, %v1722, %v1726
      %s1728 = scalar_lea.vmem %s1, 256
      %v1729 = vld [vmem:[%s1728] sm:$0xf]
      %v1730 = vld [vmem:[%s1728 + $0x4] sm:$0xf]
      %v1731 = vld [vmem:[%s1728 + $0x8] sm:$0xf]
      %v1732 = vld [vmem:[%s1728 + $0xc] sm:$0xf]
      %v1733 = vld [vmem:[%s1728 + $0x10] sm:$0xf]
      %v1734 = vld [vmem:[%s1728 + $0x14] sm:$0xf]
      %v1735 = vld [vmem:[%s1728 + $0x18] sm:$0xf]
      %v1736 = vld [vmem:[%s1728 + $0x1c] sm:$0xf]
      %v1737 = vld [vmem:[%s1728 + $0x20] sm:$0xf]
      %v1738 = vld [vmem:[%s1728 + $0x24] sm:$0xf]
      %v1739 = vld [vmem:[%s1728 + $0x28] sm:$0xf]
      %v1740 = vld [vmem:[%s1728 + $0x2c] sm:$0xf]
      %v1741 = vld [vmem:[%s1728 + $0x30] sm:$0xf]
      %v1742 = vld [vmem:[%s1728 + $0x34] sm:$0xf]
      %v1743 = vld [vmem:[%s1728 + $0x38] sm:$0xf]
      %v1744 = vld [vmem:[%s1728 + $0x3c] sm:$0xf]
      %v1745 = vunpack.c.l.b16 %v1717
      %v1746 = vunpack.c.l.b16 %v1727
      %v1747 = vpack.c.b16 %v1746, %v1745
      %v1765 = vunpack.c.l.b16 %v1729
      %v1766 = vunpack.c.l.b16 %v1730
      %v1767 = vunpack.c.l.b16 %v1731
      %v1768 = vunpack.c.l.b16 %v1732
      %v1769 = vunpack.c.l.b16 %v1733
      %v1770 = vunpack.c.l.b16 %v1734
      %v1771 = vunpack.c.l.b16 %v1735
      %v1772 = vunpack.c.l.b16 %v1736
      %v1773 = vunpack.c.l.b16 %v1737
      %v1774 = vunpack.c.l.b16 %v1738
      %v1775 = vunpack.c.l.b16 %v1739
      %v1776 = vunpack.c.l.b16 %v1740
      %v1777 = vunpack.c.l.b16 %v1741
      %v1778 = vunpack.c.l.b16 %v1742
      %v1779 = vunpack.c.l.b16 %v1743
      %v1780 = vunpack.c.l.b16 %v1744
      %v1781 = vpack.c.b16 %v1766, %v1765
      %v1782 = vpack.c.b16 %v1768, %v1767
      %v1783 = vpack.c.b16 %v1770, %v1769
      %v1784 = vpack.c.b16 %v1772, %v1771
      %v1785 = vpack.c.b16 %v1774, %v1773
      %v1786 = vpack.c.b16 %v1776, %v1775
      %v1787 = vpack.c.b16 %v1778, %v1777
      %v1788 = vpack.c.b16 %v1780, %v1779
      %1797 = vmatpush.bf16.msra.mxu0 %v1788
      %1798 = vmatpush.bf16.msra.mxu0 %v1787
      %1799 = vmatpush.bf16.msra.mxu0 %v1786
      %1800 = vmatpush.bf16.msra.mxu0 %v1785
      %1801 = vmatpush.bf16.msra.mxu0 %v1784
      %1802 = vmatpush.bf16.msra.mxu0 %v1783
      %1803 = vmatpush.bf16.msra.mxu0 %v1782
      %1804 = vmatpush.bf16.msra.mxu0 %v1781
      %1805 = vmatmul.bf16.gmra.mxu0 %v730
      %v1806 = vpop.f32.mrf.mxu0
      %v1807 = vadd.f32 0.0, %v1806
      %v1808 = vpop.f32.mrf.mxu0
      %v1809 = vadd.f32 0.0, %v1808
      %1810 = vmatmul.bf16.gmra.mxu0 %v731
      %v1811 = vpop.f32.mrf.mxu0
      %v1812 = vadd.f32 0.0, %v1811
      %v1813 = vpop.f32.mrf.mxu0
      %v1814 = vadd.f32 0.0, %v1813
      %1815 = vmatmul.bf16.gmra.mxu0 %v732
      %v1816 = vpop.f32.mrf.mxu0
      %v1817 = vadd.f32 0.0, %v1816
      %v1818 = vpop.f32.mrf.mxu0
      %v1819 = vadd.f32 0.0, %v1818
      %1820 = vmatmul.bf16.gmra.mxu0 %v733
      %v1821 = vpop.f32.mrf.mxu0
      %v1822 = vadd.f32 0.0, %v1821
      %v1823 = vpop.f32.mrf.mxu0
      %v1824 = vadd.f32 0.0, %v1823
      %1825 = vmatmul.bf16.gmra.mxu0 %v734
      %v1826 = vpop.f32.mrf.mxu0
      %v1827 = vadd.f32 0.0, %v1826
      %v1828 = vpop.f32.mrf.mxu0
      %v1829 = vadd.f32 0.0, %v1828
      %1830 = vmatmul.bf16.gmra.mxu0 %v735
      %v1831 = vpop.f32.mrf.mxu0
      %v1832 = vadd.f32 0.0, %v1831
      %v1833 = vpop.f32.mrf.mxu0
      %v1834 = vadd.f32 0.0, %v1833
      %1835 = vmatmul.bf16.gmra.mxu0 %v736
      %v1836 = vpop.f32.mrf.mxu0
      %v1837 = vadd.f32 0.0, %v1836
      %v1838 = vpop.f32.mrf.mxu0
      %v1839 = vadd.f32 0.0, %v1838
      %1840 = vmatmul.bf16.gmra.mxu0 %v737
      %v1841 = vpop.f32.mrf.mxu0
      %v1842 = vadd.f32 0.0, %v1841
      %v1843 = vpop.f32.mrf.mxu0
      %v1844 = vadd.f32 0.0, %v1843
      %1845 = vmatmul.bf16.gmra.mxu0 %v738
      %v1846 = vpop.f32.mrf.mxu0
      %v1847 = vadd.f32 0.0, %v1846
      %v1848 = vpop.f32.mrf.mxu0
      %v1849 = vadd.f32 0.0, %v1848
      %1850 = vmatmul.bf16.gmra.mxu0 %v739
      %v1851 = vpop.f32.mrf.mxu0
      %v1852 = vadd.f32 0.0, %v1851
      %v1853 = vpop.f32.mrf.mxu0
      %v1854 = vadd.f32 0.0, %v1853
      %1855 = vmatmul.bf16.gmra.mxu0 %v740
      %v1856 = vpop.f32.mrf.mxu0
      %v1857 = vadd.f32 0.0, %v1856
      %v1858 = vpop.f32.mrf.mxu0
      %v1859 = vadd.f32 0.0, %v1858
      %1860 = vmatmul.bf16.gmra.mxu0 %v741
      %v1861 = vpop.f32.mrf.mxu0
      %v1862 = vadd.f32 0.0, %v1861
      %v1863 = vpop.f32.mrf.mxu0
      %v1864 = vadd.f32 0.0, %v1863
      %1865 = vmatmul.bf16.gmra.mxu0 %v742
      %v1866 = vpop.f32.mrf.mxu0
      %v1867 = vadd.f32 0.0, %v1866
      %v1868 = vpop.f32.mrf.mxu0
      %v1869 = vadd.f32 0.0, %v1868
      %1870 = vmatmul.bf16.gmra.mxu0 %v743
      %v1871 = vpop.f32.mrf.mxu0
      %v1872 = vadd.f32 0.0, %v1871
      %v1873 = vpop.f32.mrf.mxu0
      %v1874 = vadd.f32 0.0, %v1873
      %1875 = vmatmul.bf16.gmra.mxu0 %v744
      %v1876 = vpop.f32.mrf.mxu0
      %v1877 = vadd.f32 0.0, %v1876
      %v1878 = vpop.f32.mrf.mxu0
      %v1879 = vadd.f32 0.0, %v1878
      %1880 = vmatmul.bf16.gmra.mxu0 %v1747
      %v1881 = vpop.f32.mrf.mxu0
      %v1882 = vadd.f32 0.0, %v1881
      %v1883 = vpop.f32.mrf.mxu0
      %v1884 = vadd.f32 0.0, %v1883
      %1885 = vdwg.mxu0
      %v1886 = vadd.f32 %v1672, %v1807
      %v1887 = vadd.f32 %v1673, %v1809
      %v1888 = vadd.f32 %v1674, %v1812
      %v1889 = vadd.f32 %v1675, %v1814
      %v1890 = vadd.f32 %v1676, %v1817
      %v1891 = vadd.f32 %v1677, %v1819
      %v1892 = vadd.f32 %v1678, %v1822
      %v1893 = vadd.f32 %v1679, %v1824
      %v1894 = vadd.f32 %v1680, %v1827
      %v1895 = vadd.f32 %v1681, %v1829
      %v1896 = vadd.f32 %v1682, %v1832
      %v1897 = vadd.f32 %v1683, %v1834
      %v1898 = vadd.f32 %v1684, %v1837
      %v1899 = vadd.f32 %v1685, %v1839
      %v1900 = vadd.f32 %v1686, %v1842
      %v1901 = vadd.f32 %v1687, %v1844
      %v1902 = vadd.f32 %v1688, %v1847
      %v1903 = vadd.f32 %v1689, %v1849
      %v1904 = vadd.f32 %v1690, %v1852
      %v1905 = vadd.f32 %v1691, %v1854
      %v1906 = vadd.f32 %v1692, %v1857
      %v1907 = vadd.f32 %v1693, %v1859
      %v1908 = vadd.f32 %v1694, %v1862
      %v1909 = vadd.f32 %v1695, %v1864
      %v1910 = vadd.f32 %v1696, %v1867
      %v1911 = vadd.f32 %v1697, %v1869
      %v1912 = vadd.f32 %v1698, %v1872
      %v1913 = vadd.f32 %v1699, %v1874
      %v1914 = vadd.f32 %v1700, %v1877
      %v1915 = vadd.f32 %v1701, %v1879
      %v1916 = vadd.f32 %v1702, %v1882
      %v1917 = vadd.f32 %v1703, %v1884
      %v1919 = vrot.slane %v271, 5
      %v1920 = vrot.slane %v1919, 4
      %v1921 = vrot.slane %v272, 5
      %v1922 = vsel %vm1149, %v1920, %v1921
      %v1923 = vrot.slane %v1921, 4
      %v1924 = vrot.slane %v273, 5
      %v1925 = vsel %vm1149, %v1923, %v1924
      %s1926 = scalar_lea.vmem %s1, 320
      %v1927 = vld [vmem:[%s1926] sm:$0xf]
      %v1928 = vld [vmem:[%s1926 + $0x4] sm:$0xf]
      %v1929 = vld [vmem:[%s1926 + $0x8] sm:$0xf]
      %v1930 = vld [vmem:[%s1926 + $0xc] sm:$0xf]
      %v1931 = vld [vmem:[%s1926 + $0x10] sm:$0xf]
      %v1932 = vld [vmem:[%s1926 + $0x14] sm:$0xf]
      %v1933 = vld [vmem:[%s1926 + $0x18] sm:$0xf]
      %v1934 = vld [vmem:[%s1926 + $0x1c] sm:$0xf]
      %v1935 = vld [vmem:[%s1926 + $0x20] sm:$0xf]
      %v1936 = vld [vmem:[%s1926 + $0x24] sm:$0xf]
      %v1937 = vld [vmem:[%s1926 + $0x28] sm:$0xf]
      %v1938 = vld [vmem:[%s1926 + $0x2c] sm:$0xf]
      %v1939 = vld [vmem:[%s1926 + $0x30] sm:$0xf]
      %v1940 = vld [vmem:[%s1926 + $0x34] sm:$0xf]
      %v1941 = vld [vmem:[%s1926 + $0x38] sm:$0xf]
      %v1942 = vld [vmem:[%s1926 + $0x3c] sm:$0xf]
      %v1943 = vunpack.c.l.b16 %v1922
      %v1944 = vunpack.c.l.b16 %v1925
      %v1945 = vpack.c.b16 %v1944, %v1943
      %v1963 = vunpack.c.l.b16 %v1927
      %v1964 = vunpack.c.l.b16 %v1928
      %v1965 = vunpack.c.l.b16 %v1929
      %v1966 = vunpack.c.l.b16 %v1930
      %v1967 = vunpack.c.l.b16 %v1931
      %v1968 = vunpack.c.l.b16 %v1932
      %v1969 = vunpack.c.l.b16 %v1933
      %v1970 = vunpack.c.l.b16 %v1934
      %v1971 = vunpack.c.l.b16 %v1935
      %v1972 = vunpack.c.l.b16 %v1936
      %v1973 = vunpack.c.l.b16 %v1937
      %v1974 = vunpack.c.l.b16 %v1938
      %v1975 = vunpack.c.l.b16 %v1939
      %v1976 = vunpack.c.l.b16 %v1940
      %v1977 = vunpack.c.l.b16 %v1941
      %v1978 = vunpack.c.l.b16 %v1942
      %v1979 = vpack.c.b16 %v1964, %v1963
      %v1980 = vpack.c.b16 %v1966, %v1965
      %v1981 = vpack.c.b16 %v1968, %v1967
      %v1982 = vpack.c.b16 %v1970, %v1969
      %v1983 = vpack.c.b16 %v1972, %v1971
      %v1984 = vpack.c.b16 %v1974, %v1973
      %v1985 = vpack.c.b16 %v1976, %v1975
      %v1986 = vpack.c.b16 %v1978, %v1977
      %1995 = vmatpush.bf16.msra.mxu0 %v1986
      %1996 = vmatpush.bf16.msra.mxu0 %v1985
      %1997 = vmatpush.bf16.msra.mxu0 %v1984
      %1998 = vmatpush.bf16.msra.mxu0 %v1983
      %1999 = vmatpush.bf16.msra.mxu0 %v1982
      %2000 = vmatpush.bf16.msra.mxu0 %v1981
      %2001 = vmatpush.bf16.msra.mxu0 %v1980
      %2002 = vmatpush.bf16.msra.mxu0 %v1979
      %2003 = vmatmul.bf16.gmra.mxu0 %v1312
      %v2004 = vpop.f32.mrf.mxu0
      %v2005 = vadd.f32 0.0, %v2004
      %v2006 = vpop.f32.mrf.mxu0
      %v2007 = vadd.f32 0.0, %v2006
      %2008 = vmatmul.bf16.gmra.mxu0 %v1313
      %v2009 = vpop.f32.mrf.mxu0
      %v2010 = vadd.f32 0.0, %v2009
      %v2011 = vpop.f32.mrf.mxu0
      %v2012 = vadd.f32 0.0, %v2011
      %2013 = vmatmul.bf16.gmra.mxu0 %v1314
      %v2014 = vpop.f32.mrf.mxu0
      %v2015 = vadd.f32 0.0, %v2014
      %v2016 = vpop.f32.mrf.mxu0
      %v2017 = vadd.f32 0.0, %v2016
      %2018 = vmatmul.bf16.gmra.mxu0 %v1315
      %v2019 = vpop.f32.mrf.mxu0
      %v2020 = vadd.f32 0.0, %v2019
      %v2021 = vpop.f32.mrf.mxu0
      %v2022 = vadd.f32 0.0, %v2021
      %2023 = vmatmul.bf16.gmra.mxu0 %v1316
      %v2024 = vpop.f32.mrf.mxu0
      %v2025 = vadd.f32 0.0, %v2024
      %v2026 = vpop.f32.mrf.mxu0
      %v2027 = vadd.f32 0.0, %v2026
      %2028 = vmatmul.bf16.gmra.mxu0 %v1317
      %v2029 = vpop.f32.mrf.mxu0
      %v2030 = vadd.f32 0.0, %v2029
      %v2031 = vpop.f32.mrf.mxu0
      %v2032 = vadd.f32 0.0, %v2031
      %2033 = vmatmul.bf16.gmra.mxu0 %v1318
      %v2034 = vpop.f32.mrf.mxu0
      %v2035 = vadd.f32 0.0, %v2034
      %v2036 = vpop.f32.mrf.mxu0
      %v2037 = vadd.f32 0.0, %v2036
      %2038 = vmatmul.bf16.gmra.mxu0 %v1319
      %v2039 = vpop.f32.mrf.mxu0
      %v2040 = vadd.f32 0.0, %v2039
      %v2041 = vpop.f32.mrf.mxu0
      %v2042 = vadd.f32 0.0, %v2041
      %2043 = vmatmul.bf16.gmra.mxu0 %v1320
      %v2044 = vpop.f32.mrf.mxu0
      %v2045 = vadd.f32 0.0, %v2044
      %v2046 = vpop.f32.mrf.mxu0
      %v2047 = vadd.f32 0.0, %v2046
      %2048 = vmatmul.bf16.gmra.mxu0 %v1321
      %v2049 = vpop.f32.mrf.mxu0
      %v2050 = vadd.f32 0.0, %v2049
      %v2051 = vpop.f32.mrf.mxu0
      %v2052 = vadd.f32 0.0, %v2051
      %2053 = vmatmul.bf16.gmra.mxu0 %v1322
      %v2054 = vpop.f32.mrf.mxu0
      %v2055 = vadd.f32 0.0, %v2054
      %v2056 = vpop.f32.mrf.mxu0
      %v2057 = vadd.f32 0.0, %v2056
      %2058 = vmatmul.bf16.gmra.mxu0 %v1323
      %v2059 = vpop.f32.mrf.mxu0
      %v2060 = vadd.f32 0.0, %v2059
      %v2061 = vpop.f32.mrf.mxu0
      %v2062 = vadd.f32 0.0, %v2061
      %2063 = vmatmul.bf16.gmra.mxu0 %v1324
      %v2064 = vpop.f32.mrf.mxu0
      %v2065 = vadd.f32 0.0, %v2064
      %v2066 = vpop.f32.mrf.mxu0
      %v2067 = vadd.f32 0.0, %v2066
      %2068 = vmatmul.bf16.gmra.mxu0 %v1325
      %v2069 = vpop.f32.mrf.mxu0
      %v2070 = vadd.f32 0.0, %v2069
      %v2071 = vpop.f32.mrf.mxu0
      %v2072 = vadd.f32 0.0, %v2071
      %2073 = vmatmul.bf16.gmra.mxu0 %v1326
      %v2074 = vpop.f32.mrf.mxu0
      %v2075 = vadd.f32 0.0, %v2074
      %v2076 = vpop.f32.mrf.mxu0
      %v2077 = vadd.f32 0.0, %v2076
      %2078 = vmatmul.bf16.gmra.mxu0 %v1945
      %v2079 = vpop.f32.mrf.mxu0
      %v2080 = vadd.f32 0.0, %v2079
      %v2081 = vpop.f32.mrf.mxu0
      %v2082 = vadd.f32 0.0, %v2081
      %2083 = vdwg.mxu0
      %v2084 = vadd.f32 %v1886, %v2005
      %v2085 = vadd.f32 %v1887, %v2007
      %v2086 = vadd.f32 %v1888, %v2010
      %v2087 = vadd.f32 %v1889, %v2012
      %v2088 = vadd.f32 %v1890, %v2015
      %v2089 = vadd.f32 %v1891, %v2017
      %v2090 = vadd.f32 %v1892, %v2020
      %v2091 = vadd.f32 %v1893, %v2022
      %v2092 = vadd.f32 %v1894, %v2025
      %v2093 = vadd.f32 %v1895, %v2027
      %v2094 = vadd.f32 %v1896, %v2030
      %v2095 = vadd.f32 %v1897, %v2032
      %v2096 = vadd.f32 %v1898, %v2035
      %v2097 = vadd.f32 %v1899, %v2037
      %v2098 = vadd.f32 %v1900, %v2040
      %v2099 = vadd.f32 %v1901, %v2042
      %v2100 = vadd.f32 %v1902, %v2045
      %v2101 = vadd.f32 %v1903, %v2047
      %v2102 = vadd.f32 %v1904, %v2050
      %v2103 = vadd.f32 %v1905, %v2052
      %v2104 = vadd.f32 %v1906, %v2055
      %v2105 = vadd.f32 %v1907, %v2057
      %v2106 = vadd.f32 %v1908, %v2060
      %v2107 = vadd.f32 %v1909, %v2062
      %v2108 = vadd.f32 %v1910, %v2065
      %v2109 = vadd.f32 %v1911, %v2067
      %v2110 = vadd.f32 %v1912, %v2070
      %v2111 = vadd.f32 %v1913, %v2072
      %v2112 = vadd.f32 %v1914, %v2075
      %v2113 = vadd.f32 %v1915, %v2077
      %v2114 = vadd.f32 %v1916, %v2080
      %v2115 = vadd.f32 %v1917, %v2082
      %s2116 = scalar_lea.vmem %s1, 384
      %v2117 = vld [vmem:[%s2116] sm:$0xf]
      %v2118 = vld [vmem:[%s2116 + $0x4] sm:$0xf]
      %v2119 = vld [vmem:[%s2116 + $0x8] sm:$0xf]
      %v2120 = vld [vmem:[%s2116 + $0xc] sm:$0xf]
      %v2121 = vld [vmem:[%s2116 + $0x10] sm:$0xf]
      %v2122 = vld [vmem:[%s2116 + $0x14] sm:$0xf]
      %v2123 = vld [vmem:[%s2116 + $0x18] sm:$0xf]
      %v2124 = vld [vmem:[%s2116 + $0x1c] sm:$0xf]
      %v2125 = vld [vmem:[%s2116 + $0x20] sm:$0xf]
      %v2126 = vld [vmem:[%s2116 + $0x24] sm:$0xf]
      %v2127 = vld [vmem:[%s2116 + $0x28] sm:$0xf]
      %v2128 = vld [vmem:[%s2116 + $0x2c] sm:$0xf]
      %v2129 = vld [vmem:[%s2116 + $0x30] sm:$0xf]
      %v2130 = vld [vmem:[%s2116 + $0x34] sm:$0xf]
      %v2131 = vld [vmem:[%s2116 + $0x38] sm:$0xf]
      %v2132 = vld [vmem:[%s2116 + $0x3c] sm:$0xf]
      %v2135 = vunpack.c.l.b16 %v274
      %v2136 = vunpack.c.l.b16 %v275
      %v2137 = vpack.c.b16 %v2136, %v2135
      %v2155 = vunpack.c.l.b16 %v2117
      %v2156 = vunpack.c.l.b16 %v2118
      %v2157 = vunpack.c.l.b16 %v2119
      %v2158 = vunpack.c.l.b16 %v2120
      %v2159 = vunpack.c.l.b16 %v2121
      %v2160 = vunpack.c.l.b16 %v2122
      %v2161 = vunpack.c.l.b16 %v2123
      %v2162 = vunpack.c.l.b16 %v2124
      %v2163 = vunpack.c.l.b16 %v2125
      %v2164 = vunpack.c.l.b16 %v2126
      %v2165 = vunpack.c.l.b16 %v2127
      %v2166 = vunpack.c.l.b16 %v2128
      %v2167 = vunpack.c.l.b16 %v2129
      %v2168 = vunpack.c.l.b16 %v2130
      %v2169 = vunpack.c.l.b16 %v2131
      %v2170 = vunpack.c.l.b16 %v2132
      %v2171 = vpack.c.b16 %v2156, %v2155
      %v2172 = vpack.c.b16 %v2158, %v2157
      %v2173 = vpack.c.b16 %v2160, %v2159
      %v2174 = vpack.c.b16 %v2162, %v2161
      %v2175 = vpack.c.b16 %v2164, %v2163
      %v2176 = vpack.c.b16 %v2166, %v2165
      %v2177 = vpack.c.b16 %v2168, %v2167
      %v2178 = vpack.c.b16 %v2170, %v2169
      %2187 = vmatpush.bf16.msra.mxu0 %v2178
      %2188 = vmatpush.bf16.msra.mxu0 %v2177
      %2189 = vmatpush.bf16.msra.mxu0 %v2176
      %2190 = vmatpush.bf16.msra.mxu0 %v2175
      %2191 = vmatpush.bf16.msra.mxu0 %v2174
      %2192 = vmatpush.bf16.msra.mxu0 %v2173
      %2193 = vmatpush.bf16.msra.mxu0 %v2172
      %2194 = vmatpush.bf16.msra.mxu0 %v2171
      %2195 = vmatmul.bf16.gmra.mxu0 %v964
      %v2196 = vpop.f32.mrf.mxu0
      %v2197 = vadd.f32 0.0, %v2196
      %v2198 = vpop.f32.mrf.mxu0
      %v2199 = vadd.f32 0.0, %v2198
      %2200 = vmatmul.bf16.gmra.mxu0 %v965
      %v2201 = vpop.f32.mrf.mxu0
      %v2202 = vadd.f32 0.0, %v2201
      %v2203 = vpop.f32.mrf.mxu0
      %v2204 = vadd.f32 0.0, %v2203
      %2205 = vmatmul.bf16.gmra.mxu0 %v966
      %v2206 = vpop.f32.mrf.mxu0
      %v2207 = vadd.f32 0.0, %v2206
      %v2208 = vpop.f32.mrf.mxu0
      %v2209 = vadd.f32 0.0, %v2208
      %2210 = vmatmul.bf16.gmra.mxu0 %v967
      %v2211 = vpop.f32.mrf.mxu0
      %v2212 = vadd.f32 0.0, %v2211
      %v2213 = vpop.f32.mrf.mxu0
      %v2214 = vadd.f32 0.0, %v2213
      %2215 = vmatmul.bf16.gmra.mxu0 %v968
      %v2216 = vpop.f32.mrf.mxu0
      %v2217 = vadd.f32 0.0, %v2216
      %v2218 = vpop.f32.mrf.mxu0
      %v2219 = vadd.f32 0.0, %v2218
      %2220 = vmatmul.bf16.gmra.mxu0 %v969
      %v2221 = vpop.f32.mrf.mxu0
      %v2222 = vadd.f32 0.0, %v2221
      %v2223 = vpop.f32.mrf.mxu0
      %v2224 = vadd.f32 0.0, %v2223
      %2225 = vmatmul.bf16.gmra.mxu0 %v970
      %v2226 = vpop.f32.mrf.mxu0
      %v2227 = vadd.f32 0.0, %v2226
      %v2228 = vpop.f32.mrf.mxu0
      %v2229 = vadd.f32 0.0, %v2228
      %2230 = vmatmul.bf16.gmra.mxu0 %v971
      %v2231 = vpop.f32.mrf.mxu0
      %v2232 = vadd.f32 0.0, %v2231
      %v2233 = vpop.f32.mrf.mxu0
      %v2234 = vadd.f32 0.0, %v2233
      %2235 = vmatmul.bf16.gmra.mxu0 %v972
      %v2236 = vpop.f32.mrf.mxu0
      %v2237 = vadd.f32 0.0, %v2236
      %v2238 = vpop.f32.mrf.mxu0
      %v2239 = vadd.f32 0.0, %v2238
      %2240 = vmatmul.bf16.gmra.mxu0 %v973
      %v2241 = vpop.f32.mrf.mxu0
      %v2242 = vadd.f32 0.0, %v2241
      %v2243 = vpop.f32.mrf.mxu0
      %v2244 = vadd.f32 0.0, %v2243
      %2245 = vmatmul.bf16.gmra.mxu0 %v974
      %v2246 = vpop.f32.mrf.mxu0
      %v2247 = vadd.f32 0.0, %v2246
      %v2248 = vpop.f32.mrf.mxu0
      %v2249 = vadd.f32 0.0, %v2248
      %2250 = vmatmul.bf16.gmra.mxu0 %v975
      %v2251 = vpop.f32.mrf.mxu0
      %v2252 = vadd.f32 0.0, %v2251
      %v2253 = vpop.f32.mrf.mxu0
      %v2254 = vadd.f32 0.0, %v2253
      %2255 = vmatmul.bf16.gmra.mxu0 %v976
      %v2256 = vpop.f32.mrf.mxu0
      %v2257 = vadd.f32 0.0, %v2256
      %v2258 = vpop.f32.mrf.mxu0
      %v2259 = vadd.f32 0.0, %v2258
      %2260 = vmatmul.bf16.gmra.mxu0 %v977
      %v2261 = vpop.f32.mrf.mxu0
      %v2262 = vadd.f32 0.0, %v2261
      %v2263 = vpop.f32.mrf.mxu0
      %v2264 = vadd.f32 0.0, %v2263
      %2265 = vmatmul.bf16.gmra.mxu0 %v1533
      %v2266 = vpop.f32.mrf.mxu0
      %v2267 = vadd.f32 0.0, %v2266
      %v2268 = vpop.f32.mrf.mxu0
      %v2269 = vadd.f32 0.0, %v2268
      %2270 = vmatmul.bf16.gmra.mxu0 %v2137
      %v2271 = vpop.f32.mrf.mxu0
      %v2272 = vadd.f32 0.0, %v2271
      %v2273 = vpop.f32.mrf.mxu0
      %v2274 = vadd.f32 0.0, %v2273
      %2275 = vdwg.mxu0
      %v2276 = vadd.f32 %v2084, %v2197
      %v2277 = vadd.f32 %v2085, %v2199
      %v2278 = vadd.f32 %v2086, %v2202
      %v2279 = vadd.f32 %v2087, %v2204
      %v2280 = vadd.f32 %v2088, %v2207
      %v2281 = vadd.f32 %v2089, %v2209
      %v2282 = vadd.f32 %v2090, %v2212
      %v2283 = vadd.f32 %v2091, %v2214
      %v2284 = vadd.f32 %v2092, %v2217
      %v2285 = vadd.f32 %v2093, %v2219
      %v2286 = vadd.f32 %v2094, %v2222
      %v2287 = vadd.f32 %v2095, %v2224
      %v2288 = vadd.f32 %v2096, %v2227
      %v2289 = vadd.f32 %v2097, %v2229
      %v2290 = vadd.f32 %v2098, %v2232
      %v2291 = vadd.f32 %v2099, %v2234
      %v2292 = vadd.f32 %v2100, %v2237
      %v2293 = vadd.f32 %v2101, %v2239
      %v2294 = vadd.f32 %v2102, %v2242
      %v2295 = vadd.f32 %v2103, %v2244
      %v2296 = vadd.f32 %v2104, %v2247
      %v2297 = vadd.f32 %v2105, %v2249
      %v2298 = vadd.f32 %v2106, %v2252
      %v2299 = vadd.f32 %v2107, %v2254
      %v2300 = vadd.f32 %v2108, %v2257
      %v2301 = vadd.f32 %v2109, %v2259
      %v2302 = vadd.f32 %v2110, %v2262
      %v2303 = vadd.f32 %v2111, %v2264
      %v2304 = vadd.f32 %v2112, %v2267
      %v2305 = vadd.f32 %v2113, %v2269
      %v2306 = vadd.f32 %v2114, %v2272
      %v2307 = vadd.f32 %v2115, %v2274
      %v2309 = vshrl.u32 %v274, 16
      %v2311 = vrot.slane %v2309, 4
      %v2312 = vshll.u32 %v274, 16
      %v2314 = vrot.slane %v2312, 5
      %v2315 = vor.u32 %v2311, %v2314
      %v2316 = vrot.slane %v2315, 4
      %v2318 = vshll.u32 %v275, 16
      %v2320 = vrot.slane %v2318, 5
      %v2321 = vsel %vm295, %v2316, %v2320
      %v2322 = vshrl.u32 %v275, 16
      %v2324 = vrot.slane %v2322, 4
      %v2325 = vor.u32 %v2324, %v2320
      %v2326 = vrot.slane %v2325, 4
      %v2328 = vshll.u32 %v276, 16
      %v2330 = vrot.slane %v2328, 5
      %v2331 = vsel %vm295, %v2326, %v2330
      %s2332 = scalar_lea.vmem %s1, 448
      %v2333 = vld [vmem:[%s2332] sm:$0xf]
      %v2334 = vld [vmem:[%s2332 + $0x4] sm:$0xf]
      %v2335 = vld [vmem:[%s2332 + $0x8] sm:$0xf]
      %v2336 = vld [vmem:[%s2332 + $0xc] sm:$0xf]
      %v2337 = vld [vmem:[%s2332 + $0x10] sm:$0xf]
      %v2338 = vld [vmem:[%s2332 + $0x14] sm:$0xf]
      %v2339 = vld [vmem:[%s2332 + $0x18] sm:$0xf]
      %v2340 = vld [vmem:[%s2332 + $0x1c] sm:$0xf]
      %v2341 = vld [vmem:[%s2332 + $0x20] sm:$0xf]
      %v2342 = vld [vmem:[%s2332 + $0x24] sm:$0xf]
      %v2343 = vld [vmem:[%s2332 + $0x28] sm:$0xf]
      %v2344 = vld [vmem:[%s2332 + $0x2c] sm:$0xf]
      %v2345 = vld [vmem:[%s2332 + $0x30] sm:$0xf]
      %v2346 = vld [vmem:[%s2332 + $0x34] sm:$0xf]
      %v2347 = vld [vmem:[%s2332 + $0x38] sm:$0xf]
      %v2348 = vld [vmem:[%s2332 + $0x3c] sm:$0xf]
      %v2349 = vunpack.c.l.b16 %v2321
      %v2350 = vunpack.c.l.b16 %v2331
      %v2351 = vpack.c.b16 %v2350, %v2349
      %v2369 = vunpack.c.l.b16 %v2333
      %v2370 = vunpack.c.l.b16 %v2334
      %v2371 = vunpack.c.l.b16 %v2335
      %v2372 = vunpack.c.l.b16 %v2336
      %v2373 = vunpack.c.l.b16 %v2337
      %v2374 = vunpack.c.l.b16 %v2338
      %v2375 = vunpack.c.l.b16 %v2339
      %v2376 = vunpack.c.l.b16 %v2340
      %v2377 = vunpack.c.l.b16 %v2341
      %v2378 = vunpack.c.l.b16 %v2342
      %v2379 = vunpack.c.l.b16 %v2343
      %v2380 = vunpack.c.l.b16 %v2344
      %v2381 = vunpack.c.l.b16 %v2345
      %v2382 = vunpack.c.l.b16 %v2346
      %v2383 = vunpack.c.l.b16 %v2347
      %v2384 = vunpack.c.l.b16 %v2348
      %v2385 = vpack.c.b16 %v2370, %v2369
      %v2386 = vpack.c.b16 %v2372, %v2371
      %v2387 = vpack.c.b16 %v2374, %v2373
      %v2388 = vpack.c.b16 %v2376, %v2375
      %v2389 = vpack.c.b16 %v2378, %v2377
      %v2390 = vpack.c.b16 %v2380, %v2379
      %v2391 = vpack.c.b16 %v2382, %v2381
      %v2392 = vpack.c.b16 %v2384, %v2383
      %2401 = vmatpush.bf16.msra.mxu0 %v2392
      %2402 = vmatpush.bf16.msra.mxu0 %v2391
      %2403 = vmatpush.bf16.msra.mxu0 %v2390
      %2404 = vmatpush.bf16.msra.mxu0 %v2389
      %2405 = vmatpush.bf16.msra.mxu0 %v2388
      %2406 = vmatpush.bf16.msra.mxu0 %v2387
      %2407 = vmatpush.bf16.msra.mxu0 %v2386
      %2408 = vmatpush.bf16.msra.mxu0 %v2385
      %2409 = vmatmul.bf16.gmra.mxu0 %v731
      %v2410 = vpop.f32.mrf.mxu0
      %v2411 = vadd.f32 0.0, %v2410
      %v2412 = vpop.f32.mrf.mxu0
      %v2413 = vadd.f32 0.0, %v2412
      %2414 = vmatmul.bf16.gmra.mxu0 %v732
      %v2415 = vpop.f32.mrf.mxu0
      %v2416 = vadd.f32 0.0, %v2415
      %v2417 = vpop.f32.mrf.mxu0
      %v2418 = vadd.f32 0.0, %v2417
      %2419 = vmatmul.bf16.gmra.mxu0 %v733
      %v2420 = vpop.f32.mrf.mxu0
      %v2421 = vadd.f32 0.0, %v2420
      %v2422 = vpop.f32.mrf.mxu0
      %v2423 = vadd.f32 0.0, %v2422
      %2424 = vmatmul.bf16.gmra.mxu0 %v734
      %v2425 = vpop.f32.mrf.mxu0
      %v2426 = vadd.f32 0.0, %v2425
      %v2427 = vpop.f32.mrf.mxu0
      %v2428 = vadd.f32 0.0, %v2427
      %2429 = vmatmul.bf16.gmra.mxu0 %v735
      %v2430 = vpop.f32.mrf.mxu0
      %v2431 = vadd.f32 0.0, %v2430
      %v2432 = vpop.f32.mrf.mxu0
      %v2433 = vadd.f32 0.0, %v2432
      %2434 = vmatmul.bf16.gmra.mxu0 %v736
      %v2435 = vpop.f32.mrf.mxu0
      %v2436 = vadd.f32 0.0, %v2435
      %v2437 = vpop.f32.mrf.mxu0
      %v2438 = vadd.f32 0.0, %v2437
      %2439 = vmatmul.bf16.gmra.mxu0 %v737
      %v2440 = vpop.f32.mrf.mxu0
      %v2441 = vadd.f32 0.0, %v2440
      %v2442 = vpop.f32.mrf.mxu0
      %v2443 = vadd.f32 0.0, %v2442
      %2444 = vmatmul.bf16.gmra.mxu0 %v738
      %v2445 = vpop.f32.mrf.mxu0
      %v2446 = vadd.f32 0.0, %v2445
      %v2447 = vpop.f32.mrf.mxu0
      %v2448 = vadd.f32 0.0, %v2447
      %2449 = vmatmul.bf16.gmra.mxu0 %v739
      %v2450 = vpop.f32.mrf.mxu0
      %v2451 = vadd.f32 0.0, %v2450
      %v2452 = vpop.f32.mrf.mxu0
      %v2453 = vadd.f32 0.0, %v2452
      %2454 = vmatmul.bf16.gmra.mxu0 %v740
      %v2455 = vpop.f32.mrf.mxu0
      %v2456 = vadd.f32 0.0, %v2455
      %v2457 = vpop.f32.mrf.mxu0
      %v2458 = vadd.f32 0.0, %v2457
      %2459 = vmatmul.bf16.gmra.mxu0 %v741
      %v2460 = vpop.f32.mrf.mxu0
      %v2461 = vadd.f32 0.0, %v2460
      %v2462 = vpop.f32.mrf.mxu0
      %v2463 = vadd.f32 0.0, %v2462
      %2464 = vmatmul.bf16.gmra.mxu0 %v742
      %v2465 = vpop.f32.mrf.mxu0
      %v2466 = vadd.f32 0.0, %v2465
      %v2467 = vpop.f32.mrf.mxu0
      %v2468 = vadd.f32 0.0, %v2467
      %2469 = vmatmul.bf16.gmra.mxu0 %v743
      %v2470 = vpop.f32.mrf.mxu0
      %v2471 = vadd.f32 0.0, %v2470
      %v2472 = vpop.f32.mrf.mxu0
      %v2473 = vadd.f32 0.0, %v2472
      %2474 = vmatmul.bf16.gmra.mxu0 %v744
      %v2475 = vpop.f32.mrf.mxu0
      %v2476 = vadd.f32 0.0, %v2475
      %v2477 = vpop.f32.mrf.mxu0
      %v2478 = vadd.f32 0.0, %v2477
      %2479 = vmatmul.bf16.gmra.mxu0 %v1747
      %v2480 = vpop.f32.mrf.mxu0
      %v2481 = vadd.f32 0.0, %v2480
      %v2482 = vpop.f32.mrf.mxu0
      %v2483 = vadd.f32 0.0, %v2482
      %2484 = vmatmul.bf16.gmra.mxu0 %v2351
      %v2485 = vpop.f32.mrf.mxu0
      %v2486 = vadd.f32 0.0, %v2485
      %v2487 = vpop.f32.mrf.mxu0
      %v2488 = vadd.f32 0.0, %v2487
      %2489 = vdwg.mxu0
      %v2490 = vadd.f32 %v2276, %v2411
      %v2491 = vadd.f32 %v2277, %v2413
      %v2492 = vadd.f32 %v2278, %v2416
      %v2493 = vadd.f32 %v2279, %v2418
      %v2494 = vadd.f32 %v2280, %v2421
      %v2495 = vadd.f32 %v2281, %v2423
      %v2496 = vadd.f32 %v2282, %v2426
      %v2497 = vadd.f32 %v2283, %v2428
      %v2498 = vadd.f32 %v2284, %v2431
      %v2499 = vadd.f32 %v2285, %v2433
      %v2500 = vadd.f32 %v2286, %v2436
      %v2501 = vadd.f32 %v2287, %v2438
      %v2502 = vadd.f32 %v2288, %v2441
      %v2503 = vadd.f32 %v2289, %v2443
      %v2504 = vadd.f32 %v2290, %v2446
      %v2505 = vadd.f32 %v2291, %v2448
      %v2506 = vadd.f32 %v2292, %v2451
      %v2507 = vadd.f32 %v2293, %v2453
      %v2508 = vadd.f32 %v2294, %v2456
      %v2509 = vadd.f32 %v2295, %v2458
      %v2510 = vadd.f32 %v2296, %v2461
      %v2511 = vadd.f32 %v2297, %v2463
      %v2512 = vadd.f32 %v2298, %v2466
      %v2513 = vadd.f32 %v2299, %v2468
      %v2514 = vadd.f32 %v2300, %v2471
      %v2515 = vadd.f32 %v2301, %v2473
      %v2516 = vadd.f32 %v2302, %v2476
      %v2517 = vadd.f32 %v2303, %v2478
      %v2518 = vadd.f32 %v2304, %v2481
      %v2519 = vadd.f32 %v2305, %v2483
      %v2520 = vadd.f32 %v2306, %v2486
      %v2521 = vadd.f32 %v2307, %v2488
      %v2523 = vrot.slane %v274, 5
      %v2524 = vrot.slane %v2523, 4
      %v2525 = vrot.slane %v275, 5
      %v2526 = vsel %vm1149, %v2524, %v2525
      %v2527 = vrot.slane %v2525, 4
      %v2528 = vrot.slane %v276, 5
      %v2529 = vsel %vm1149, %v2527, %v2528
      %s2530 = scalar_lea.vmem %s1, 512
      %v2531 = vld [vmem:[%s2530] sm:$0xf]
      %v2532 = vld [vmem:[%s2530 + $0x4] sm:$0xf]
      %v2533 = vld [vmem:[%s2530 + $0x8] sm:$0xf]
      %v2534 = vld [vmem:[%s2530 + $0xc] sm:$0xf]
      %v2535 = vld [vmem:[%s2530 + $0x10] sm:$0xf]
      %v2536 = vld [vmem:[%s2530 + $0x14] sm:$0xf]
      %v2537 = vld [vmem:[%s2530 + $0x18] sm:$0xf]
      %v2538 = vld [vmem:[%s2530 + $0x1c] sm:$0xf]
      %v2539 = vld [vmem:[%s2530 + $0x20] sm:$0xf]
      %v2540 = vld [vmem:[%s2530 + $0x24] sm:$0xf]
      %v2541 = vld [vmem:[%s2530 + $0x28] sm:$0xf]
      %v2542 = vld [vmem:[%s2530 + $0x2c] sm:$0xf]
      %v2543 = vld [vmem:[%s2530 + $0x30] sm:$0xf]
      %v2544 = vld [vmem:[%s2530 + $0x34] sm:$0xf]
      %v2545 = vld [vmem:[%s2530 + $0x38] sm:$0xf]
      %v2546 = vld [vmem:[%s2530 + $0x3c] sm:$0xf]
      %v2547 = vunpack.c.l.b16 %v2526
      %v2548 = vunpack.c.l.b16 %v2529
      %v2549 = vpack.c.b16 %v2548, %v2547
      %v2567 = vunpack.c.l.b16 %v2531
      %v2568 = vunpack.c.l.b16 %v2532
      %v2569 = vunpack.c.l.b16 %v2533
      %v2570 = vunpack.c.l.b16 %v2534
      %v2571 = vunpack.c.l.b16 %v2535
      %v2572 = vunpack.c.l.b16 %v2536
      %v2573 = vunpack.c.l.b16 %v2537
      %v2574 = vunpack.c.l.b16 %v2538
      %v2575 = vunpack.c.l.b16 %v2539
      %v2576 = vunpack.c.l.b16 %v2540
      %v2577 = vunpack.c.l.b16 %v2541
      %v2578 = vunpack.c.l.b16 %v2542
      %v2579 = vunpack.c.l.b16 %v2543
      %v2580 = vunpack.c.l.b16 %v2544
      %v2581 = vunpack.c.l.b16 %v2545
      %v2582 = vunpack.c.l.b16 %v2546
      %v2583 = vpack.c.b16 %v2568, %v2567
      %v2584 = vpack.c.b16 %v2570, %v2569
      %v2585 = vpack.c.b16 %v2572, %v2571
      %v2586 = vpack.c.b16 %v2574, %v2573
      %v2587 = vpack.c.b16 %v2576, %v2575
      %v2588 = vpack.c.b16 %v2578, %v2577
      %v2589 = vpack.c.b16 %v2580, %v2579
      %v2590 = vpack.c.b16 %v2582, %v2581
      %2599 = vmatpush.bf16.msra.mxu0 %v2590
      %2600 = vmatpush.bf16.msra.mxu0 %v2589
      %2601 = vmatpush.bf16.msra.mxu0 %v2588
      %2602 = vmatpush.bf16.msra.mxu0 %v2587
      %2603 = vmatpush.bf16.msra.mxu0 %v2586
      %2604 = vmatpush.bf16.msra.mxu0 %v2585
      %2605 = vmatpush.bf16.msra.mxu0 %v2584
      %2606 = vmatpush.bf16.msra.mxu0 %v2583
      %2607 = vmatmul.bf16.gmra.mxu0 %v1313
      %v2608 = vpop.f32.mrf.mxu0
      %v2609 = vadd.f32 0.0, %v2608
      %v2610 = vpop.f32.mrf.mxu0
      %v2611 = vadd.f32 0.0, %v2610
      %2612 = vmatmul.bf16.gmra.mxu0 %v1314
      %v2613 = vpop.f32.mrf.mxu0
      %v2614 = vadd.f32 0.0, %v2613
      %v2615 = vpop.f32.mrf.mxu0
      %v2616 = vadd.f32 0.0, %v2615
      %2617 = vmatmul.bf16.gmra.mxu0 %v1315
      %v2618 = vpop.f32.mrf.mxu0
      %v2619 = vadd.f32 0.0, %v2618
      %v2620 = vpop.f32.mrf.mxu0
      %v2621 = vadd.f32 0.0, %v2620
      %2622 = vmatmul.bf16.gmra.mxu0 %v1316
      %v2623 = vpop.f32.mrf.mxu0
      %v2624 = vadd.f32 0.0, %v2623
      %v2625 = vpop.f32.mrf.mxu0
      %v2626 = vadd.f32 0.0, %v2625
      %2627 = vmatmul.bf16.gmra.mxu0 %v1317
      %v2628 = vpop.f32.mrf.mxu0
      %v2629 = vadd.f32 0.0, %v2628
      %v2630 = vpop.f32.mrf.mxu0
      %v2631 = vadd.f32 0.0, %v2630
      %2632 = vmatmul.bf16.gmra.mxu0 %v1318
      %v2633 = vpop.f32.mrf.mxu0
      %v2634 = vadd.f32 0.0, %v2633
      %v2635 = vpop.f32.mrf.mxu0
      %v2636 = vadd.f32 0.0, %v2635
      %2637 = vmatmul.bf16.gmra.mxu0 %v1319
      %v2638 = vpop.f32.mrf.mxu0
      %v2639 = vadd.f32 0.0, %v2638
      %v2640 = vpop.f32.mrf.mxu0
      %v2641 = vadd.f32 0.0, %v2640
      %2642 = vmatmul.bf16.gmra.mxu0 %v1320
      %v2643 = vpop.f32.mrf.mxu0
      %v2644 = vadd.f32 0.0, %v2643
      %v2645 = vpop.f32.mrf.mxu0
      %v2646 = vadd.f32 0.0, %v2645
      %2647 = vmatmul.bf16.gmra.mxu0 %v1321
      %v2648 = vpop.f32.mrf.mxu0
      %v2649 = vadd.f32 0.0, %v2648
      %v2650 = vpop.f32.mrf.mxu0
      %v2651 = vadd.f32 0.0, %v2650
      %2652 = vmatmul.bf16.gmra.mxu0 %v1322
      %v2653 = vpop.f32.mrf.mxu0
      %v2654 = vadd.f32 0.0, %v2653
      %v2655 = vpop.f32.mrf.mxu0
      %v2656 = vadd.f32 0.0, %v2655
      %2657 = vmatmul.bf16.gmra.mxu0 %v1323
      %v2658 = vpop.f32.mrf.mxu0
      %v2659 = vadd.f32 0.0, %v2658
      %v2660 = vpop.f32.mrf.mxu0
      %v2661 = vadd.f32 0.0, %v2660
      %2662 = vmatmul.bf16.gmra.mxu0 %v1324
      %v2663 = vpop.f32.mrf.mxu0
      %v2664 = vadd.f32 0.0, %v2663
      %v2665 = vpop.f32.mrf.mxu0
      %v2666 = vadd.f32 0.0, %v2665
      %2667 = vmatmul.bf16.gmra.mxu0 %v1325
      %v2668 = vpop.f32.mrf.mxu0
      %v2669 = vadd.f32 0.0, %v2668
      %v2670 = vpop.f32.mrf.mxu0
      %v2671 = vadd.f32 0.0, %v2670
      %2672 = vmatmul.bf16.gmra.mxu0 %v1326
      %v2673 = vpop.f32.mrf.mxu0
      %v2674 = vadd.f32 0.0, %v2673
      %v2675 = vpop.f32.mrf.mxu0
      %v2676 = vadd.f32 0.0, %v2675
      %2677 = vmatmul.bf16.gmra.mxu0 %v1945
      %v2678 = vpop.f32.mrf.mxu0
      %v2679 = vadd.f32 0.0, %v2678
      %v2680 = vpop.f32.mrf.mxu0
      %v2681 = vadd.f32 0.0, %v2680
      %2682 = vmatmul.bf16.gmra.mxu0 %v2549
      %v2683 = vpop.f32.mrf.mxu0
      %v2684 = vadd.f32 0.0, %v2683
      %v2685 = vpop.f32.mrf.mxu0
      %v2686 = vadd.f32 0.0, %v2685
      %2687 = vdwg.mxu0
      %v2688 = vadd.f32 %v2490, %v2609
      %v2689 = vadd.f32 %v2491, %v2611
      %v2690 = vadd.f32 %v2492, %v2614
      %v2691 = vadd.f32 %v2493, %v2616
      %v2692 = vadd.f32 %v2494, %v2619
      %v2693 = vadd.f32 %v2495, %v2621
      %v2694 = vadd.f32 %v2496, %v2624
      %v2695 = vadd.f32 %v2497, %v2626
      %v2696 = vadd.f32 %v2498, %v2629
      %v2697 = vadd.f32 %v2499, %v2631
      %v2698 = vadd.f32 %v2500, %v2634
      %v2699 = vadd.f32 %v2501, %v2636
      %v2700 = vadd.f32 %v2502, %v2639
      %v2701 = vadd.f32 %v2503, %v2641
      %v2702 = vadd.f32 %v2504, %v2644
      %v2703 = vadd.f32 %v2505, %v2646
      %v2704 = vadd.f32 %v2506, %v2649
      %v2705 = vadd.f32 %v2507, %v2651
      %v2706 = vadd.f32 %v2508, %v2654
      %v2707 = vadd.f32 %v2509, %v2656
      %v2708 = vadd.f32 %v2510, %v2659
      %v2709 = vadd.f32 %v2511, %v2661
      %v2710 = vadd.f32 %v2512, %v2664
      %v2711 = vadd.f32 %v2513, %v2666
      %v2712 = vadd.f32 %v2514, %v2669
      %v2713 = vadd.f32 %v2515, %v2671
      %v2714 = vadd.f32 %v2516, %v2674
      %v2715 = vadd.f32 %v2517, %v2676
      %v2716 = vadd.f32 %v2518, %v2679
      %v2717 = vadd.f32 %v2519, %v2681
      %v2718 = vadd.f32 %v2520, %v2684
      %v2719 = vadd.f32 %v2521, %v2686
      %v2720 = vld [vmem:[%s2] sm:$0x1]
      %v2722 = vperm.slane %v2720, 0
      %v2724 = vadd.f32 %v2688, %v2722
      %v2725 = vadd.f32 %v2689, %v2722
      %v2726 = vadd.f32 %v2690, %v2722
      %v2727 = vadd.f32 %v2691, %v2722
      %v2728 = vadd.f32 %v2692, %v2722
      %v2729 = vadd.f32 %v2693, %v2722
      %v2730 = vadd.f32 %v2694, %v2722
      %v2731 = vadd.f32 %v2695, %v2722
      %v2732 = vadd.f32 %v2696, %v2722
      %v2733 = vadd.f32 %v2697, %v2722
      %v2734 = vadd.f32 %v2698, %v2722
      %v2735 = vadd.f32 %v2699, %v2722
      %v2736 = vadd.f32 %v2700, %v2722
      %v2737 = vadd.f32 %v2701, %v2722
      %v2738 = vadd.f32 %v2702, %v2722
      %v2739 = vadd.f32 %v2703, %v2722
      %v2740 = vadd.f32 %v2704, %v2722
      %v2741 = vadd.f32 %v2705, %v2722
      %v2742 = vadd.f32 %v2706, %v2722
      %v2743 = vadd.f32 %v2707, %v2722
      %v2744 = vadd.f32 %v2708, %v2722
      %v2745 = vadd.f32 %v2709, %v2722
      %v2746 = vadd.f32 %v2710, %v2722
      %v2747 = vadd.f32 %v2711, %v2722
      %v2748 = vadd.f32 %v2712, %v2722
      %v2749 = vadd.f32 %v2713, %v2722
      %v2750 = vadd.f32 %v2714, %v2722
      %v2751 = vadd.f32 %v2715, %v2722
      %v2752 = vadd.f32 %v2716, %v2722
      %v2753 = vadd.f32 %v2717, %v2722
      %v2754 = vadd.f32 %v2718, %v2722
      %v2755 = vadd.f32 %v2719, %v2722
      %v2756 = vmax.f32 %v2724, 0.0
      %v2757 = vmax.f32 %v2725, 0.0
      %v2758 = vmax.f32 %v2726, 0.0
      %v2759 = vmax.f32 %v2727, 0.0
      %v2760 = vmax.f32 %v2728, 0.0
      %v2761 = vmax.f32 %v2729, 0.0
      %v2762 = vmax.f32 %v2730, 0.0
      %v2763 = vmax.f32 %v2731, 0.0
      %v2764 = vmax.f32 %v2732, 0.0
      %v2765 = vmax.f32 %v2733, 0.0
      %v2766 = vmax.f32 %v2734, 0.0
      %v2767 = vmax.f32 %v2735, 0.0
      %v2768 = vmax.f32 %v2736, 0.0
      %v2769 = vmax.f32 %v2737, 0.0
      %v2770 = vmax.f32 %v2738, 0.0
      %v2771 = vmax.f32 %v2739, 0.0
      %v2772 = vmax.f32 %v2740, 0.0
      %v2773 = vmax.f32 %v2741, 0.0
      %v2774 = vmax.f32 %v2742, 0.0
      %v2775 = vmax.f32 %v2743, 0.0
      %v2776 = vmax.f32 %v2744, 0.0
      %v2777 = vmax.f32 %v2745, 0.0
      %v2778 = vmax.f32 %v2746, 0.0
      %v2779 = vmax.f32 %v2747, 0.0
      %v2780 = vmax.f32 %v2748, 0.0
      %v2781 = vmax.f32 %v2749, 0.0
      %v2782 = vmax.f32 %v2750, 0.0
      %v2783 = vmax.f32 %v2751, 0.0
      %v2784 = vmax.f32 %v2752, 0.0
      %v2785 = vmax.f32 %v2753, 0.0
      %v2786 = vmax.f32 %v2754, 0.0
      %v2787 = vmax.f32 %v2755, 0.0
      %v2788 = vadd.f32 %v2756, %v2757
      %v2789 = vadd.f32 %v2788, %v2758
      %v2790 = vadd.f32 %v2789, %v2759
      %v2791 = vadd.f32 %v2790, %v2760
      %v2792 = vadd.f32 %v2791, %v2761
      %v2793 = vadd.f32 %v2792, %v2762
      %v2794 = vadd.f32 %v2793, %v2763
      %v2795 = vadd.f32 %v2794, %v2764
      %v2796 = vadd.f32 %v2795, %v2765
      %v2797 = vadd.f32 %v2796, %v2766
      %v2798 = vadd.f32 %v2797, %v2767
      %v2799 = vadd.f32 %v2798, %v2768
      %v2800 = vadd.f32 %v2799, %v2769
      %v2801 = vadd.f32 %v2800, %v2770
      %v2802 = vadd.f32 %v2801, %v2771
      %v2803 = vadd.f32 %v2802, %v2772
      %v2804 = vadd.f32 %v2803, %v2773
      %v2805 = vadd.f32 %v2804, %v2774
      %v2806 = vadd.f32 %v2805, %v2775
      %v2807 = vadd.f32 %v2806, %v2776
      %v2808 = vadd.f32 %v2807, %v2777
      %v2809 = vadd.f32 %v2808, %v2778
      %v2810 = vadd.f32 %v2809, %v2779
      %v2811 = vadd.f32 %v2810, %v2780
      %v2812 = vadd.f32 %v2811, %v2781
      %v2813 = vadd.f32 %v2812, %v2782
      %v2814 = vadd.f32 %v2813, %v2783
      %v2815 = vadd.f32 %v2814, %v2784
      %v2816 = vadd.f32 %v2815, %v2785
      %v2817 = vadd.f32 %v2816, %v2786
      %v2818 = vadd.f32 %v2817, %v2787
      %v2819 = vrot.slane %v2818, 4
      %v2820 = vadd.f32 %v2818, %v2819
      %v2821 = vrot.slane %v2820, 2
      %v2822 = vadd.f32 %v2820, %v2821
      %v2823 = vrot.slane %v2822, 1
      %v2824 = vadd.f32 %v2822, %v2823
      %v2825 = vrcp.pop 256.0
      %v2826 = vmul.f32 256.0, %v2825
      %v2827 = vsub.f32 1.0, %v2826
      %v2828 = vmul.f32 %v2825, %v2827
      %v2829 = vadd.f32 %v2825, %v2828
      %vm2830 = vweird.f32 %v2825
      %v2831 = vsel %vm2830, %v2825, %v2829
      %v2832 = vmul.f32 %v2824, %v2831
      %v2833 = vld [vmem:[%s3] sm:$0xff]
      %v2834 = vld [vmem:[%s3 + $0x8] sm:$0xff]
      %v2835 = vld [vmem:[%s3 + $0x10] sm:$0xff]
      %v2836 = vld [vmem:[%s3 + $0x18] sm:$0xff]
      %v2837 = vld [vmem:[%s3 + $0x20] sm:$0xff]
      %v2838 = vld [vmem:[%s3 + $0x28] sm:$0xff]
      %v2839 = vld [vmem:[%s3 + $0x30] sm:$0xff]
      %v2840 = vld [vmem:[%s3 + $0x38] sm:$0xff]
      %v2841 = vld [vmem:[%s3 + $0x40] sm:$0xff]
      %v2842 = vld [vmem:[%s3 + $0x48] sm:$0xff]
      %v2843 = vld [vmem:[%s3 + $0x50] sm:$0xff]
      %v2844 = vld [vmem:[%s3 + $0x58] sm:$0xff]
      %v2845 = vld [vmem:[%s3 + $0x60] sm:$0xff]
      %v2846 = vld [vmem:[%s3 + $0x68] sm:$0xff]
      %v2847 = vld [vmem:[%s3 + $0x70] sm:$0xff]
      %v2848 = vld [vmem:[%s3 + $0x78] sm:$0xff]
      %v2849 = vld [vmem:[%s4] sm:$0x1]
      %2850 = vmatpush.msra.mxu0 %v2848
      %2851 = vmatpush.msra.mxu0 %v2847
      %2852 = vmatpush.msra.mxu0 %v2846
      %2853 = vmatpush.msra.mxu0 %v2845
      %2854 = vmatpush.msra.mxu0 %v2844
      %2855 = vmatpush.msra.mxu0 %v2843
      %2856 = vmatpush.msra.mxu0 %v2842
      %2857 = vmatpush.msra.mxu0 %v2841
      %2858 = vmatpush.msra.mxu0 %v2840
      %2859 = vmatpush.msra.mxu0 %v2839
      %2860 = vmatpush.msra.mxu0 %v2838
      %2861 = vmatpush.msra.mxu0 %v2837
      %2862 = vmatpush.msra.mxu0 %v2836
      %2863 = vmatpush.msra.mxu0 %v2835
      %2864 = vmatpush.msra.mxu0 %v2834
      %2865 = vmatpush.msra.mxu0 %v2833
      %2866 = vmatmul.f32.gmra.mxu0 %v2832
      %v2867 = vpop.f32.mrf.mxu0
      %v2868 = vadd.f32 %v2849, %v2867
      %2869 = vdwg.mxu0
      %v2870 = vperm.slane %v2868, 0
      %2871 = vst [vmem:[%s222] sm:$0xff] %v2870
      %p2872 = scmp.lt.s32.totalorder %s16, 1
      %s2873 = scalar_select %p2872, %s16, 1
      %s2874 = smul.addr %s2873, 8
      %s2875 = scalar_lea.vmem %s5, %s2874
      // Predicated region
      $region41: #{dr_classifier_forward.3} parent=39 // pred_check
        %p2876 = pneg %p144
      $region42: #{dr_classifier_forward.3} parent=39 // pred_check_branch
        %2878 = sbr.rel (%p2876) target = $region44
      $region43: #{dr_classifier_forward.3} parent=39 // pred_region
        _
      $region44: #{dr_classifier_forward.3} parent=39 // pred_fallthru
        _
    $region40: #{dr_classifier_forward.3} parent=5 // pred_fallthru
      _
    %p2879 = scmp.le.s32.totalorder 2, %s11
    // Predicated region
    $region45: #{dr_classifier_forward.3} parent=5 // pred_check
      %p2880 = pneg %p2879
    $region46: #{dr_classifier_forward.3} parent=5 // pred_check_branch
      %2882 = sbr.rel (%p2880) target = $region48
    $region47: #{dr_classifier_forward.3} parent=5 // pred_region
      %s2883 = ssub.s32 %s11, 2
      // Predicated region
      $region49: #{dr_classifier_forward.3} parent=47 // pred_check
        %p2884 = pneg %p150
      $region50: #{dr_classifier_forward.3} parent=47 // pred_check_branch
        %2886 = sbr.rel (%p2884) target = $region52
      $region51: #{dr_classifier_forward.3} parent=47 // pred_region
        %p2887 = scmp.lt.s32.totalorder %s17, 1
        %s2888 = scalar_select %p2887, %s17, 1
        %s2889 = smul.addr %s2888, 8
        %s2890 = scalar_lea.vmem %s5, %s2889
      $region52: #{dr_classifier_forward.3} parent=47 // pred_fallthru
        _
    $region48: #{dr_classifier_forward.3} parent=5 // pred_fallthru
      _
  $region6: #{dr_classifier_forward.3} parent=0 // loop_footer
    %s15 = sadd.s32 1, %s11
  $region7: #{dr_classifier_forward.3} parent=0 // loop_footer_branch
    %10 = sbr.rel target = $region3
  $region8: #{dr_classifier_forward.3} parent=0 // loop_exit
    _

</llo_original>
